<compile_context>
chip_gen: v7x
topology: tpu7x:2x2x1
jax: 0.10.0
libtpu: 0.0.40
codegen_flags: <defaults>
</compile_context>

<pallas_src>
import functools

import jax
import jax.numpy as jnp
from jax.experimental import pallas as pl
from jax.experimental.pallas import tpu as pltpu


def _sigmoid(x):
    # sigmoid(x) = 0.5 * (1 + tanh(x/2)): one EUP op instead of exp + recip.
    return 0.5 * (jnp.tanh(0.5 * x) + 1.0)


# ----------------------------------------------------------------------------
# VMEM-budget helpers (v7x has 64 MiB/TC; v5e/v6e have 128 MiB).
# ----------------------------------------------------------------------------
def _vmem_limit_bytes():
    try:
        kind = jax.devices()[0].device_kind.lower()
    except Exception:
        kind = ""
    if "v5" in kind or "v6" in kind:
        return 96 * 1024 * 1024      # 128 MiB physical -> generous scoped limit
    return 48 * 1024 * 1024          # conservative default, safe on v7x (64 MiB)


def _derive_window(T, B, H, vmem_limit):
    """Window length tw (timesteps per grid step) from a VMEM budget."""
    # per timestep, both directions, bf16, double-buffered: gates (4H) + out (H)
    bytes_per_step = 2 * 2 * B * (4 * H + H) * 2
    budget = vmem_limit // 2                      # headroom for W_hh + scratch
    tw = max(1, min(16, budget // max(bytes_per_step, 1)))
    tw = min(tw, T)
    t_pad = -(-T // tw) * tw                      # pad T so tw always divides
    return tw, t_pad


def _derive_bt(T, B, H, vmem_limit):
    """Attention batch tile from a VMEM budget (must divide B, 8-aligned)."""
    budget = vmem_limit // 2
    bytes_per_b = 2 * 2 * T * H * 2               # both dirs, bf16, double-buffered
    cap = max(1, budget // max(bytes_per_b, 1))
    if cap >= B:
        return B
    for cand in range(min(cap, B), 0, -1):
        if B % cand == 0 and (cand % 8 == 0 or cand == B):
            return cand
    return B


# ----------------------------------------------------------------------------
# Fused bidirectional LSTM recurrence kernel.
#   grid = (NW,) windows over (padded) time, serial ("arbitrary").
#   Forward reads/writes window w; backward reads/writes window NW-1-w (its
#   own BlockSpecs), so every in-kernel index is a static Python int.
#   Input projection is precomputed, so each step is h @ W_hh + nonlinearities.
# ----------------------------------------------------------------------------
def _bilstm_layer_kernel(len_ref, gf_ref, gb_ref, whh_ref, of_ref, ob_ref,
                         hf_sc, cf_sc, hb_sc, cb_sc, *, hidden, tw):
    H = hidden
    w = pl.program_id(0)
    t_total = pl.num_programs(0) * tw            # padded sequence length

    # NOTE: the single grid axis is serial and in-order, so this reset aligns
    # with the start of the recurrence; scratch persists across windows.
    @pl.when(w == 0)
    def _init():
        hf_sc[...] = jnp.zeros_like(hf_sc)
        cf_sc[...] = jnp.zeros_like(cf_sc)
        hb_sc[...] = jnp.zeros_like(hb_sc)
        cb_sc[...] = jnp.zeros_like(cb_sc)

    lens = len_ref[...]                          # (B, 1) int32
    whh_f = whh_ref[0]                           # (H, 4H) bf16
    whh_b = whh_ref[1]

    def cell(g_in, h, c, whh):
        # gate accumulation in f32; MXU runs bf16 x bf16 -> f32
        gates = g_in.astype(jnp.float32) + jnp.dot(
            h.astype(jnp.bfloat16), whh, preferred_element_type=jnp.float32)
        sig = _sigmoid(gates[:, :3 * H])         # contiguous [i | f | o] slab
        i_g = sig[:, 0 * H:1 * H]
        f_g = sig[:, 1 * H:2 * H]
        o_g = sig[:, 2 * H:3 * H]
        g_g = jnp.tanh(gates[:, 3 * H:])
        c_new = f_g * c + i_g * g_g
        h_new = o_g * jnp.tanh(c_new)
        return h_new, c_new

    # Static Python unroll over the window. The forward and backward chains
    # are independent, so the scheduler interleaves their MXU/EUP/VPU work.
    # TODO(synk): for H < 128 the per-gate slices / (B,H) stores are
    # lane-sparse; padding H to 128 would restore full-lane operation.
    for s in range(tw):
        # ---- forward direction: global time w*tw + s ----
        t_f = w * tw + s
        h, c = hf_sc[...], cf_sc[...]
        h_new, c_new = cell(gf_ref[s], h, c, whh_f)
        valid = t_f < lens                                     # (B, 1) bool
        hf_sc[...] = jnp.where(valid, h_new, h)                # freeze past len
        cf_sc[...] = jnp.where(valid, c_new, c)
        of_ref[s] = jnp.where(valid, h_new, 0.0).astype(jnp.bfloat16)

        # ---- backward direction: mirrored position in the mirrored window ----
        sb = tw - 1 - s
        t_b = t_total - 1 - t_f
        hb, cb = hb_sc[...], cb_sc[...]
        hb_new, cb_new = cell(gb_ref[sb], hb, cb, whh_b)
        valid_b = t_b < lens
        hb_sc[...] = jnp.where(valid_b, hb_new, hb)
        cb_sc[...] = jnp.where(valid_b, cb_new, cb)
        ob_ref[sb] = jnp.where(valid_b, hb_new, 0.0).astype(jnp.bfloat16)


def _run_bilstm_layer(gates_f, gates_b, len_col, w_hh, hidden, tw, vmem_limit):
    """gates_f / gates_b: (T_pad, B, 4H) bf16 precomputed x@W_ih + b."""
    t_pad, B, four_h = gates_f.shape
    nw = t_pad // tw
    kernel = functools.partial(_bilstm_layer_kernel, hidden=hidden, tw=tw)
    return pl.pallas_call(
        kernel,
        out_shape=(jax.ShapeDtypeStruct((t_pad, B, hidden), jnp.bfloat16),
                   jax.ShapeDtypeStruct((t_pad, B, hidden), jnp.bfloat16)),
        grid=(nw,),
        in_specs=[
            pl.BlockSpec((B, 1), lambda w: (0, 0)),                 # lengths
            pl.BlockSpec((tw, B, four_h), lambda w: (w, 0, 0)),     # fwd gates
            pl.BlockSpec((tw, B, four_h),
                         lambda w: (nw - 1 - w, 0, 0)),             # bwd gates
            pl.BlockSpec((2, hidden, four_h), lambda w: (0, 0, 0)), # W_hh
        ],
        out_specs=(
            pl.BlockSpec((tw, B, hidden), lambda w: (w, 0, 0)),           # fwd
            pl.BlockSpec((tw, B, hidden), lambda w: (nw - 1 - w, 0, 0)),  # bwd
        ),
        scratch_shapes=[pltpu.VMEM((B, hidden), jnp.float32) for _ in range(4)],
        compiler_params=pltpu.CompilerParams(
            dimension_semantics=("arbitrary",),
            vmem_limit_bytes=vmem_limit),
    )(len_col, gates_f, gates_b, w_hh)


# ----------------------------------------------------------------------------
# Attention pooling over time + final linear + sigmoid (mask=None).
# Consumes the time-major bf16 LSTM outputs; lane-dense (bt, T) weight output.
# ----------------------------------------------------------------------------
def _attn_fc_kernel(of_ref, ob_ref, aw_ref, ab_ref, fw_ref, fb_ref,
                    attn_ref, prob_ref):
    o_f = of_ref[...].astype(jnp.float32)        # (T, bt, H)
    o_b = ob_ref[...].astype(jnp.float32)
    aw = aw_ref[...]                             # (2, H) f32
    fw = fw_ref[...]                             # (2, H) f32

    # attention scores = Linear([fwd | bwd]) computed without concatenation
    s = (jnp.sum(o_f * aw[0], axis=-1)
         + jnp.sum(o_b * aw[1], axis=-1)) + ab_ref[...]       # (T, bt)

    # softmax over the time axis (mask=None, as in the reference forward)
    m = jnp.max(s, axis=0, keepdims=True)
    e = jnp.exp(s - m)
    attn = e / jnp.sum(e, axis=0, keepdims=True)              # (T, bt)
    attn_ref[...] = jnp.transpose(attn)                       # (bt, T) store

    ctx_f = jnp.sum(attn[:, :, None] * o_f, axis=0)           # (bt, H)
    ctx_b = jnp.sum(attn[:, :, None] * o_b, axis=0)
    logit = (jnp.sum(ctx_f * fw[0], axis=-1, keepdims=True)
             + jnp.sum(ctx_b * fw[1], axis=-1, keepdims=True)
             + fb_ref[...])                                   # (bt, 1)
    prob_ref[...] = _sigmoid(logit)


def _run_attention_fc(out_f, out_b, att_w, att_b, fc_w, fc_b, hidden,
                      vmem_limit):
    T, B, H = out_f.shape
    bt = _derive_bt(T, B, H, vmem_limit)
    aw = att_w.reshape(2, hidden).astype(jnp.float32)   # [fwd half; bwd half]
    fw = fc_w.reshape(2, hidden).astype(jnp.float32)
    ab = att_b.reshape(1, 1).astype(jnp.float32)
    fb = fc_b.reshape(1, 1).astype(jnp.float32)

    attn_bt, prob_b1 = pl.pallas_call(
        _attn_fc_kernel,
        out_shape=(jax.ShapeDtypeStruct((B, T), jnp.float32),
                   jax.ShapeDtypeStruct((B, 1), jnp.float32)),
        grid=(B // bt,),
        in_specs=[
            pl.BlockSpec((T, bt, H), lambda b: (0, b, 0)),
            pl.BlockSpec((T, bt, H), lambda b: (0, b, 0)),
            pl.BlockSpec((2, H), lambda b: (0, 0)),
            pl.BlockSpec((1, 1), lambda b: (0, 0)),
            pl.BlockSpec((2, H), lambda b: (0, 0)),
            pl.BlockSpec((1, 1), lambda b: (0, 0)),
        ],
        out_specs=(
            pl.BlockSpec((bt, T), lambda b: (b, 0)),
            pl.BlockSpec((bt, 1), lambda b: (b, 0)),
        ),
        compiler_params=pltpu.CompilerParams(
            dimension_semantics=("arbitrary",),
            vmem_limit_bytes=vmem_limit),
    )(out_f, out_b, aw, ab, fw, fb)
    return prob_b1, attn_bt


# ----------------------------------------------------------------------------
# Weight preparation: permute PyTorch gate order (i,f,g,o) -> (i,f,o,g) so the
# three sigmoid gates form one contiguous 3H slab; cast matmul weights to bf16.
# ----------------------------------------------------------------------------
def _reorder_ifgo(w):
    i, f, g, o = jnp.split(w, 4, axis=-1)
    return jnp.concatenate([i, f, o, g], axis=-1)


def _prepare_layer(layer):
    w_ih = _reorder_ifgo(layer["w_ih"]).astype(jnp.bfloat16)
    w_hh = _reorder_ifgo(layer["w_hh"]).astype(jnp.bfloat16)
    b = _reorder_ifgo(layer["b"]).astype(jnp.float32)
    return w_ih, w_hh, b


# ----------------------------------------------------------------------------
# Full forward pass
# ----------------------------------------------------------------------------
def bilstm_attention_forward(params, text, lengths):
    B, T = text.shape
    H = params["hidden_dim"]
    vmem_limit = _vmem_limit_bytes()
    tw, t_pad = _derive_window(T, B, H, vmem_limit)

    # Embedding gathered directly in time-major layout (glue; dropout = id).
    emb = params["embedding"][text.T].astype(jnp.bfloat16)       # (T, B, E)
    if t_pad > T:
        emb = jnp.pad(emb, ((0, t_pad - T), (0, 0), (0, 0)))
    len_col = lengths.reshape(-1, 1).astype(jnp.int32)           # (B, 1)

    out_f = out_b = None
    for li, layer in enumerate(params["lstm"]):
        w_ih, w_hh, b = _prepare_layer(layer)
        # Hoisted input projection: dense bf16 matmuls over all timesteps and
        # both directions; only h @ W_hh remains on the serial path.
        if li == 0:
            gates = jnp.einsum("tbe,deg->dtbg", emb, w_ih,
                               preferred_element_type=jnp.float32)
        else:
            gates = (jnp.einsum("tbh,dhg->dtbg", out_f, w_ih[:, :H],
                                preferred_element_type=jnp.float32)
                     + jnp.einsum("tbh,dhg->dtbg", out_b, w_ih[:, H:],
                                  preferred_element_type=jnp.float32))
        gates = (gates + b[:, None, None, :]).astype(jnp.bfloat16)  # (2,Tp,B,4H)
        out_f, out_b = _run_bilstm_layer(gates[0], gates[1], len_col, w_hh,
                                         H, tw, vmem_limit)
        # TODO(synk): inter-layer LSTM dropout skipped (eval-mode identity).

    if t_pad > T:
        out_f = out_f[:T]
        out_b = out_b[:T]

    # TODO(synk): assumes max(lengths) == T (pad_packed_sequence would shrink
    # the time axis to max(lengths) otherwise).
    prob_b1, attn_bt = _run_attention_fc(
        out_f, out_b, params["att_w"], params["att_b"],
        params["fc_w"], params["fc_b"], H, vmem_limit)

    prob = jnp.squeeze(prob_b1, axis=-1)          # (B,)
    attn = attn_bt[:, :, None]                    # (B, T, 1)
    return prob, attn


# ----------------------------------------------------------------------------
# Deterministic parameter init (shapes follow the PyTorch module)
# ----------------------------------------------------------------------------
def init_params(key, vocab_size, embedding_dim, hidden_dim, num_layers):
    keys = jax.random.split(key, 4 + 2 * num_layers)
    k = iter(keys)
    params = {
        "hidden_dim": hidden_dim,
        "num_layers": num_layers,
        "embedding": 0.1 * jax.random.normal(
            next(k), (vocab_size, embedding_dim), jnp.float32),
        "lstm": [],
        # attention: nn.Linear(2H, 1); fc: nn.Linear(2H, 1); biases init to 0
        "att_w": 0.1 * jax.random.normal(next(k), (1, 2 * hidden_dim), jnp.float32),
        "att_b": jnp.zeros((1,), jnp.float32),
        "fc_w": 0.1 * jax.random.normal(next(k), (1, 2 * hidden_dim), jnp.float32),
        "fc_b": jnp.zeros((1,), jnp.float32),
    }
    in_size = embedding_dim
    for _ in range(num_layers):
        # Weights stacked over direction (0 = fwd, 1 = bwd) and pre-transposed
        # to (in, 4H) / (H, 4H); gate order i, f, g, o (PyTorch convention).
        params["lstm"].append({
            "w_ih": 0.1 * jax.random.normal(
                next(k), (2, in_size, 4 * hidden_dim), jnp.float32),
            "w_hh": 0.1 * jax.random.normal(
                next(k), (2, hidden_dim, 4 * hidden_dim), jnp.float32),
            # b_ih + b_hh; both constant-0 in the reference _init_weights
            "b": jnp.zeros((2, 4 * hidden_dim), jnp.float32),
        })
        in_size = 2 * hidden_dim
    return params


# ----------------------------------------------------------------------------
if __name__ == "__main__":
    VOCAB, EMB, HID, LAYERS = 50, 32, 32, 2
    B, T = 2, 8

    key = jax.random.PRNGKey(0)
    k_param, k_text = jax.random.split(key)
    params = init_params(k_param, VOCAB, EMB, HID, LAYERS)

    text = jax.random.randint(k_text, (B, T), 1, VOCAB, dtype=jnp.int32)
    lengths = jnp.array([T, 5], dtype=jnp.int32)   # max length == T
    pos = jnp.arange(T)[None, :]
    text = jnp.where(pos < lengths[:, None], text, 0)   # pad_idx = 0

    prob, attn_weights = bilstm_attention_forward(params, text, lengths)
    jax.block_until_ready((prob, attn_weights))

    assert prob.shape == (B,)
    assert attn_weights.shape == (B, T, 1)
    assert bool(jnp.all(jnp.isfinite(prob)))
    assert bool(jnp.all(jnp.isfinite(attn_weights)))
    print("KERNEL_OK")
</pallas_src>

<mosaic_0001>
module attributes {stable_mosaic.version = 11 : i64} {
  func.func @_bilstm_layer_kernel(%arg0: i32, %arg1: memref<2x1xi32, #tpu.memory_space<vmem>>, %arg2: memref<8x2x128xbf16, #tpu.memory_space<vmem>>, %arg3: memref<8x2x128xbf16, #tpu.memory_space<vmem>>, %arg4: memref<2x32x128xbf16, #tpu.memory_space<vmem>>, %arg5: memref<8x2x32xbf16, #tpu.memory_space<vmem>>, %arg6: memref<8x2x32xbf16, #tpu.memory_space<vmem>>, %arg7: memref<2x32xf32, #tpu.memory_space<vmem>>, %arg8: memref<2x32xf32, #tpu.memory_space<vmem>>, %arg9: memref<2x32xf32, #tpu.memory_space<vmem>>, %arg10: memref<2x32xf32, #tpu.memory_space<vmem>>) attributes {dimension_semantics = [#tpu.dimension_semantics<arbitrary>], iteration_bounds = array<i64: 1>, scalar_prefetch = 0 : i64, scratch_operands = 4 : i64, tpu.core_type = #tpu.core_type<tc>, window_params = [{pipeline_mode = #tpu.pipeline_mode<synchronous>, transform_indices = @transform_0, window_bounds = array<i64: 2, 1>}, {transform_indices = @transform_1, window_bounds = array<i64: 8, 2, 128>}, {transform_indices = @transform_2, window_bounds = array<i64: 8, 2, 128>}, {pipeline_mode = #tpu.pipeline_mode<synchronous>, transform_indices = @transform_3, window_bounds = array<i64: 2, 32, 128>}, {transform_indices = @transform_4, window_bounds = array<i64: 8, 2, 32>}, {transform_indices = @transform_5, window_bounds = array<i64: 8, 2, 32>}]} {
    %c0_i32 = arith.constant 0 : i32
    %0 = arith.cmpi eq, %arg0, %c0_i32 : i32
    %1 = arith.extui %0 : i1 to i32
    %c0_i32_0 = arith.constant 0 : i32
    %2 = arith.cmpi ne, %1, %c0_i32_0 : i32
    scf.if %2 {
      %cst_320 = arith.constant 0.000000e+00 : f32
      %736 = vector.broadcast %cst_320 : f32 to vector<2x32xf32>
      %c0_321 = arith.constant 0 : index
      %c0_322 = arith.constant 0 : index
      %737 = vector.load %arg7[%c0_321, %c0_322] : memref<2x32xf32, #tpu.memory_space<vmem>>, vector<2x32xf32>
      tpu.vector_store %arg7[%c0_321, %c0_322], %736 {strides = array<i32>} : memref<2x32xf32, #tpu.memory_space<vmem>>, vector<2x32xf32>,
      %cst_323 = arith.constant 0.000000e+00 : f32
      %738 = vector.broadcast %cst_323 : f32 to vector<2x32xf32>
      %c0_324 = arith.constant 0 : index
      %c0_325 = arith.constant 0 : index
      %739 = vector.load %arg8[%c0_324, %c0_325] : memref<2x32xf32, #tpu.memory_space<vmem>>, vector<2x32xf32>
      tpu.vector_store %arg8[%c0_324, %c0_325], %738 {strides = array<i32>} : memref<2x32xf32, #tpu.memory_space<vmem>>, vector<2x32xf32>,
      %cst_326 = arith.constant 0.000000e+00 : f32
      %740 = vector.broadcast %cst_326 : f32 to vector<2x32xf32>
      %c0_327 = arith.constant 0 : index
      %c0_328 = arith.constant 0 : index
      %741 = vector.load %arg9[%c0_327, %c0_328] : memref<2x32xf32, #tpu.memory_space<vmem>>, vector<2x32xf32>
      tpu.vector_store %arg9[%c0_327, %c0_328], %740 {strides = array<i32>} : memref<2x32xf32, #tpu.memory_space<vmem>>, vector<2x32xf32>,
      %cst_329 = arith.constant 0.000000e+00 : f32
      %742 = vector.broadcast %cst_329 : f32 to vector<2x32xf32>
      %c0_330 = arith.constant 0 : index
      %c0_331 = arith.constant 0 : index
      %743 = vector.load %arg10[%c0_330, %c0_331] : memref<2x32xf32, #tpu.memory_space<vmem>>, vector<2x32xf32>
      tpu.vector_store %arg10[%c0_330, %c0_331], %742 {strides = array<i32>} : memref<2x32xf32, #tpu.memory_space<vmem>>, vector<2x32xf32>,
    } else {
    }
    %c0 = arith.constant 0 : index
    %c0_1 = arith.constant 0 : index
    %3 = vector.load %arg1[%c0, %c0_1] : memref<2x1xi32, #tpu.memory_space<vmem>>, vector<2x1xi32>
    %c0_2 = arith.constant 0 : index
    %c0_3 = arith.constant 0 : index
    %c0_4 = arith.constant 0 : index
    %4 = vector.load %arg4[%c0_2, %c0_3, %c0_4] : memref<2x32x128xbf16, #tpu.memory_space<vmem>>, vector<1x32x128xbf16>
    %5 = vector.shape_cast %4 : vector<1x32x128xbf16> to vector<32x128xbf16>
    %c1 = arith.constant 1 : index
    %c0_5 = arith.constant 0 : index
    %c0_6 = arith.constant 0 : index
    %6 = vector.load %arg4[%c1, %c0_5, %c0_6] : memref<2x32x128xbf16, #tpu.memory_space<vmem>>, vector<1x32x128xbf16>
    %7 = vector.shape_cast %6 : vector<1x32x128xbf16> to vector<32x128xbf16>
    %c8_i32 = arith.constant 8 : i32
    %8 = arith.muli %arg0, %c8_i32 : i32
    %c0_i32_7 = arith.constant 0 : i32
    %9 = arith.addi %8, %c0_i32_7 : i32
    %c0_8 = arith.constant 0 : index
    %c0_9 = arith.constant 0 : index
    %10 = vector.load %arg7[%c0_8, %c0_9] : memref<2x32xf32, #tpu.memory_space<vmem>>, vector<2x32xf32>
    %c0_10 = arith.constant 0 : index
    %c0_11 = arith.constant 0 : index
    %11 = vector.load %arg8[%c0_10, %c0_11] : memref<2x32xf32, #tpu.memory_space<vmem>>, vector<2x32xf32>
    %c0_12 = arith.constant 0 : index
    %c0_13 = arith.constant 0 : index
    %c0_14 = arith.constant 0 : index
    %12 = vector.load %arg2[%c0_12, %c0_13, %c0_14] : memref<8x2x128xbf16, #tpu.memory_space<vmem>>, vector<1x2x128xbf16>
    %13 = vector.shape_cast %12 : vector<1x2x128xbf16> to vector<2x128xbf16>
    %14 = arith.extf %13 : vector<2x128xbf16> to vector<2x128xf32>
    %15 = arith.truncf %10 : vector<2x32xf32> to vector<2x32xbf16>
    %cst = arith.constant dense<0.000000e+00> : vector<2x128xf32>
    %16 = tpu.matmul %15, %5, %cst {dimension_numbers = #tpu.dot_dimension_numbers<[1], [0], [0], [1], [0, 0, 1, 1], [], []>} : vector<2x32xbf16>, vector<32x128xbf16>, vector<2x128xf32> -> vector<2x128xf32>
    %17 = arith.addf %14, %16 : vector<2x128xf32>
    %18 = vector.extract_strided_slice %17 {offsets = [0, 0], sizes = [2, 96], strides = [1, 1]} : vector<2x128xf32> to vector<2x96xf32>
    %cst_15 = arith.constant 5.000000e-01 : f32
    %19 = vector.broadcast %cst_15 : f32 to vector<2x96xf32>
    %20 = arith.mulf %19, %18 : vector<2x96xf32>
    %21 = math.tanh %20 : vector<2x96xf32>
    %cst_16 = arith.constant 1.000000e+00 : f32
    %22 = vector.broadcast %cst_16 : f32 to vector<2x96xf32>
    %23 = arith.addf %21, %22 : vector<2x96xf32>
    %cst_17 = arith.constant 5.000000e-01 : f32
    %24 = vector.broadcast %cst_17 : f32 to vector<2x96xf32>
    %25 = arith.mulf %24, %23 : vector<2x96xf32>
    %26 = vector.extract_strided_slice %25 {offsets = [0, 0], sizes = [2, 32], strides = [1, 1]} : vector<2x96xf32> to vector<2x32xf32>
    %27 = vector.extract_strided_slice %25 {offsets = [0, 32], sizes = [2, 32], strides = [1, 1]} : vector<2x96xf32> to vector<2x32xf32>
    %28 = vector.extract_strided_slice %25 {offsets = [0, 64], sizes = [2, 32], strides = [1, 1]} : vector<2x96xf32> to vector<2x32xf32>
    %29 = vector.extract_strided_slice %17 {offsets = [0, 96], sizes = [2, 32], strides = [1, 1]} : vector<2x128xf32> to vector<2x32xf32>
    %30 = math.tanh %29 : vector<2x32xf32>
    %31 = arith.mulf %27, %11 : vector<2x32xf32>
    %32 = arith.mulf %26, %30 : vector<2x32xf32>
    %33 = arith.addf %31, %32 : vector<2x32xf32>
    %34 = math.tanh %33 : vector<2x32xf32>
    %35 = arith.mulf %28, %34 : vector<2x32xf32>
    %36 = vector.broadcast %9 : i32 to vector<2x1xi32>
    %37 = arith.cmpi slt, %36, %3 : vector<2x1xi32>
    %38 = vector.shape_cast %37 : vector<2x1xi1> to vector<2x1xi1>
    %39 = vector.broadcast %38 : vector<2x1xi1> to vector<2x32xi1>
    %40 = arith.select %39, %35, %10 : vector<2x32xi1>, vector<2x32xf32>
    %c0_18 = arith.constant 0 : index
    %c0_19 = arith.constant 0 : index
    %41 = vector.load %arg7[%c0_18, %c0_19] : memref<2x32xf32, #tpu.memory_space<vmem>>, vector<2x32xf32>
    tpu.vector_store %arg7[%c0_18, %c0_19], %40 {strides = array<i32>} : memref<2x32xf32, #tpu.memory_space<vmem>>, vector<2x32xf32>,
    %42 = vector.shape_cast %37 : vector<2x1xi1> to vector<2x1xi1>
    %43 = vector.broadcast %42 : vector<2x1xi1> to vector<2x32xi1>
    %44 = arith.select %43, %33, %11 : vector<2x32xi1>, vector<2x32xf32>
    %c0_20 = arith.constant 0 : index
    %c0_21 = arith.constant 0 : index
    %45 = vector.load %arg8[%c0_20, %c0_21] : memref<2x32xf32, #tpu.memory_space<vmem>>, vector<2x32xf32>
    tpu.vector_store %arg8[%c0_20, %c0_21], %44 {strides = array<i32>} : memref<2x32xf32, #tpu.memory_space<vmem>>, vector<2x32xf32>,
    %cst_22 = arith.constant 0.000000e+00 : f32
    %46 = vector.shape_cast %37 : vector<2x1xi1> to vector<2x1xi1>
    %47 = vector.broadcast %46 : vector<2x1xi1> to vector<2x32xi1>
    %48 = vector.broadcast %cst_22 : f32 to vector<2x32xf32>
    %49 = arith.select %47, %35, %48 : vector<2x32xi1>, vector<2x32xf32>
    %50 = arith.truncf %49 : vector<2x32xf32> to vector<2x32xbf16>
    %c0_23 = arith.constant 0 : index
    %c0_24 = arith.constant 0 : index
    %c0_25 = arith.constant 0 : index
    %51 = vector.load %arg5[%c0_23, %c0_24, %c0_25] : memref<8x2x32xbf16, #tpu.memory_space<vmem>>, vector<1x2x32xbf16>
    %52 = vector.shape_cast %51 : vector<1x2x32xbf16> to vector<2x32xbf16>
    %53 = vector.shape_cast %50 : vector<2x32xbf16> to vector<1x2x32xbf16>
    tpu.vector_store %arg5[%c0_23, %c0_24, %c0_25], %53 {strides = array<i32>} : memref<8x2x32xbf16, #tpu.memory_space<vmem>>, vector<1x2x32xbf16>,
    %c7_i32 = arith.constant 7 : i32
    %54 = arith.subi %c7_i32, %9 : i32
    %c0_26 = arith.constant 0 : index
    %c0_27 = arith.constant 0 : index
    %55 = vector.load %arg9[%c0_26, %c0_27] : memref<2x32xf32, #tpu.memory_space<vmem>>, vector<2x32xf32>
    %c0_28 = arith.constant 0 : index
    %c0_29 = arith.constant 0 : index
    %56 = vector.load %arg10[%c0_28, %c0_29] : memref<2x32xf32, #tpu.memory_space<vmem>>, vector<2x32xf32>
    %c7 = arith.constant 7 : index
    %c0_30 = arith.constant 0 : index
    %c0_31 = arith.constant 0 : index
    %57 = vector.load %arg3[%c7, %c0_30, %c0_31] : memref<8x2x128xbf16, #tpu.memory_space<vmem>>, vector<1x2x128xbf16>
    %58 = vector.shape_cast %57 : vector<1x2x128xbf16> to vector<2x128xbf16>
    %59 = arith.extf %58 : vector<2x128xbf16> to vector<2x128xf32>
    %60 = arith.truncf %55 : vector<2x32xf32> to vector<2x32xbf16>
    %cst_32 = arith.constant dense<0.000000e+00> : vector<2x128xf32>
    %61 = tpu.matmul %60, %7, %cst_32 {dimension_numbers = #tpu.dot_dimension_numbers<[1], [0], [0], [1], [0, 0, 1, 1], [], []>} : vector<2x32xbf16>, vector<32x128xbf16>, vector<2x128xf32> -> vector<2x128xf32>
    %62 = arith.addf %59, %61 : vector<2x128xf32>
    %63 = vector.extract_strided_slice %62 {offsets = [0, 0], sizes = [2, 96], strides = [1, 1]} : vector<2x128xf32> to vector<2x96xf32>
    %cst_33 = arith.constant 5.000000e-01 : f32
    %64 = vector.broadcast %cst_33 : f32 to vector<2x96xf32>
    %65 = arith.mulf %64, %63 : vector<2x96xf32>
    %66 = math.tanh %65 : vector<2x96xf32>
    %cst_34 = arith.constant 1.000000e+00 : f32
    %67 = vector.broadcast %cst_34 : f32 to vector<2x96xf32>
    %68 = arith.addf %66, %67 : vector<2x96xf32>
    %cst_35 = arith.constant 5.000000e-01 : f32
    %69 = vector.broadcast %cst_35 : f32 to vector<2x96xf32>
    %70 = arith.mulf %69, %68 : vector<2x96xf32>
    %71 = vector.extract_strided_slice %70 {offsets = [0, 0], sizes = [2, 32], strides = [1, 1]} : vector<2x96xf32> to vector<2x32xf32>
    %72 = vector.extract_strided_slice %70 {offsets = [0, 32], sizes = [2, 32], strides = [1, 1]} : vector<2x96xf32> to vector<2x32xf32>
    %73 = vector.extract_strided_slice %70 {offsets = [0, 64], sizes = [2, 32], strides = [1, 1]} : vector<2x96xf32> to vector<2x32xf32>
    %74 = vector.extract_strided_slice %62 {offsets = [0, 96], sizes = [2, 32], strides = [1, 1]} : vector<2x128xf32> to vector<2x32xf32>
    %75 = math.tanh %74 : vector<2x32xf32>
    %76 = arith.mulf %72, %56 : vector<2x32xf32>
    %77 = arith.mulf %71, %75 : vector<2x32xf32>
    %78 = arith.addf %76, %77 : vector<2x32xf32>
    %79 = math.tanh %78 : vector<2x32xf32>
    %80 = arith.mulf %73, %79 : vector<2x32xf32>
    %81 = vector.broadcast %54 : i32 to vector<2x1xi32>
    %82 = arith.cmpi slt, %81, %3 : vector<2x1xi32>
    %83 = vector.shape_cast %82 : vector<2x1xi1> to vector<2x1xi1>
    %84 = vector.broadcast %83 : vector<2x1xi1> to vector<2x32xi1>
    %85 = arith.select %84, %80, %55 : vector<2x32xi1>, vector<2x32xf32>
    %c0_36 = arith.constant 0 : index
    %c0_37 = arith.constant 0 : index
    %86 = vector.load %arg9[%c0_36, %c0_37] : memref<2x32xf32, #tpu.memory_space<vmem>>, vector<2x32xf32>
    tpu.vector_store %arg9[%c0_36, %c0_37], %85 {strides = array<i32>} : memref<2x32xf32, #tpu.memory_space<vmem>>, vector<2x32xf32>,
    %87 = vector.shape_cast %82 : vector<2x1xi1> to vector<2x1xi1>
    %88 = vector.broadcast %87 : vector<2x1xi1> to vector<2x32xi1>
    %89 = arith.select %88, %78, %56 : vector<2x32xi1>, vector<2x32xf32>
    %c0_38 = arith.constant 0 : index
    %c0_39 = arith.constant 0 : index
    %90 = vector.load %arg10[%c0_38, %c0_39] : memref<2x32xf32, #tpu.memory_space<vmem>>, vector<2x32xf32>
    tpu.vector_store %arg10[%c0_38, %c0_39], %89 {strides = array<i32>} : memref<2x32xf32, #tpu.memory_space<vmem>>, vector<2x32xf32>,
    %cst_40 = arith.constant 0.000000e+00 : f32
    %91 = vector.shape_cast %82 : vector<2x1xi1> to vector<2x1xi1>
    %92 = vector.broadcast %91 : vector<2x1xi1> to vector<2x32xi1>
    %93 = vector.broadcast %cst_40 : f32 to vector<2x32xf32>
    %94 = arith.select %92, %80, %93 : vector<2x32xi1>, vector<2x32xf32>
    %95 = arith.truncf %94 : vector<2x32xf32> to vector<2x32xbf16>
    %c7_41 = arith.constant 7 : index
    %c0_42 = arith.constant 0 : index
    %c0_43 = arith.constant 0 : index
    %96 = vector.load %arg6[%c7_41, %c0_42, %c0_43] : memref<8x2x32xbf16, #tpu.memory_space<vmem>>, vector<1x2x32xbf16>
    %97 = vector.shape_cast %96 : vector<1x2x32xbf16> to vector<2x32xbf16>
    %98 = vector.shape_cast %95 : vector<2x32xbf16> to vector<1x2x32xbf16>
    tpu.vector_store %arg6[%c7_41, %c0_42, %c0_43], %98 {strides = array<i32>} : memref<8x2x32xbf16, #tpu.memory_space<vmem>>, vector<1x2x32xbf16>,
    %c8_i32_44 = arith.constant 8 : i32
    %99 = arith.muli %arg0, %c8_i32_44 : i32
    %c1_i32 = arith.constant 1 : i32
    %100 = arith.addi %99, %c1_i32 : i32
    %c0_45 = arith.constant 0 : index
    %c0_46 = arith.constant 0 : index
    %101 = vector.load %arg7[%c0_45, %c0_46] : memref<2x32xf32, #tpu.memory_space<vmem>>, vector<2x32xf32>
    %c0_47 = arith.constant 0 : index
    %c0_48 = arith.constant 0 : index
    %102 = vector.load %arg8[%c0_47, %c0_48] : memref<2x32xf32, #tpu.memory_space<vmem>>, vector<2x32xf32>
    %c1_49 = arith.constant 1 : index
    %c0_50 = arith.constant 0 : index
    %c0_51 = arith.constant 0 : index
    %103 = vector.load %arg2[%c1_49, %c0_50, %c0_51] : memref<8x2x128xbf16, #tpu.memory_space<vmem>>, vector<1x2x128xbf16>
    %104 = vector.shape_cast %103 : vector<1x2x128xbf16> to vector<2x128xbf16>
    %105 = arith.extf %104 : vector<2x128xbf16> to vector<2x128xf32>
    %106 = arith.truncf %101 : vector<2x32xf32> to vector<2x32xbf16>
    %cst_52 = arith.constant dense<0.000000e+00> : vector<2x128xf32>
    %107 = tpu.matmul %106, %5, %cst_52 {dimension_numbers = #tpu.dot_dimension_numbers<[1], [0], [0], [1], [0, 0, 1, 1], [], []>} : vector<2x32xbf16>, vector<32x128xbf16>, vector<2x128xf32> -> vector<2x128xf32>
    %108 = arith.addf %105, %107 : vector<2x128xf32>
    %109 = vector.extract_strided_slice %108 {offsets = [0, 0], sizes = [2, 96], strides = [1, 1]} : vector<2x128xf32> to vector<2x96xf32>
    %cst_53 = arith.constant 5.000000e-01 : f32
    %110 = vector.broadcast %cst_53 : f32 to vector<2x96xf32>
    %111 = arith.mulf %110, %109 : vector<2x96xf32>
    %112 = math.tanh %111 : vector<2x96xf32>
    %cst_54 = arith.constant 1.000000e+00 : f32
    %113 = vector.broadcast %cst_54 : f32 to vector<2x96xf32>
    %114 = arith.addf %112, %113 : vector<2x96xf32>
    %cst_55 = arith.constant 5.000000e-01 : f32
    %115 = vector.broadcast %cst_55 : f32 to vector<2x96xf32>
    %116 = arith.mulf %115, %114 : vector<2x96xf32>
    %117 = vector.extract_strided_slice %116 {offsets = [0, 0], sizes = [2, 32], strides = [1, 1]} : vector<2x96xf32> to vector<2x32xf32>
    %118 = vector.extract_strided_slice %116 {offsets = [0, 32], sizes = [2, 32], strides = [1, 1]} : vector<2x96xf32> to vector<2x32xf32>
    %119 = vector.extract_strided_slice %116 {offsets = [0, 64], sizes = [2, 32], strides = [1, 1]} : vector<2x96xf32> to vector<2x32xf32>
    %120 = vector.extract_strided_slice %108 {offsets = [0, 96], sizes = [2, 32], strides = [1, 1]} : vector<2x128xf32> to vector<2x32xf32>
    %121 = math.tanh %120 : vector<2x32xf32>
    %122 = arith.mulf %118, %102 : vector<2x32xf32>
    %123 = arith.mulf %117, %121 : vector<2x32xf32>
    %124 = arith.addf %122, %123 : vector<2x32xf32>
    %125 = math.tanh %124 : vector<2x32xf32>
    %126 = arith.mulf %119, %125 : vector<2x32xf32>
    %127 = vector.broadcast %100 : i32 to vector<2x1xi32>
    %128 = arith.cmpi slt, %127, %3 : vector<2x1xi32>
    %129 = vector.shape_cast %128 : vector<2x1xi1> to vector<2x1xi1>
    %130 = vector.broadcast %129 : vector<2x1xi1> to vector<2x32xi1>
    %131 = arith.select %130, %126, %101 : vector<2x32xi1>, vector<2x32xf32>
    %c0_56 = arith.constant 0 : index
    %c0_57 = arith.constant 0 : index
    %132 = vector.load %arg7[%c0_56, %c0_57] : memref<2x32xf32, #tpu.memory_space<vmem>>, vector<2x32xf32>
    tpu.vector_store %arg7[%c0_56, %c0_57], %131 {strides = array<i32>} : memref<2x32xf32, #tpu.memory_space<vmem>>, vector<2x32xf32>,
    %133 = vector.shape_cast %128 : vector<2x1xi1> to vector<2x1xi1>
    %134 = vector.broadcast %133 : vector<2x1xi1> to vector<2x32xi1>
    %135 = arith.select %134, %124, %102 : vector<2x32xi1>, vector<2x32xf32>
    %c0_58 = arith.constant 0 : index
    %c0_59 = arith.constant 0 : index
    %136 = vector.load %arg8[%c0_58, %c0_59] : memref<2x32xf32, #tpu.memory_space<vmem>>, vector<2x32xf32>
    tpu.vector_store %arg8[%c0_58, %c0_59], %135 {strides = array<i32>} : memref<2x32xf32, #tpu.memory_space<vmem>>, vector<2x32xf32>,
    %cst_60 = arith.constant 0.000000e+00 : f32
    %137 = vector.shape_cast %128 : vector<2x1xi1> to vector<2x1xi1>
    %138 = vector.broadcast %137 : vector<2x1xi1> to vector<2x32xi1>
    %139 = vector.broadcast %cst_60 : f32 to vector<2x32xf32>
    %140 = arith.select %138, %126, %139 : vector<2x32xi1>, vector<2x32xf32>
    %141 = arith.truncf %140 : vector<2x32xf32> to vector<2x32xbf16>
    %c1_61 = arith.constant 1 : index
    %c0_62 = arith.constant 0 : index
    %c0_63 = arith.constant 0 : index
    %142 = vector.load %arg5[%c1_61, %c0_62, %c0_63] : memref<8x2x32xbf16, #tpu.memory_space<vmem>>, vector<1x2x32xbf16>
    %143 = vector.shape_cast %142 : vector<1x2x32xbf16> to vector<2x32xbf16>
    %144 = vector.shape_cast %141 : vector<2x32xbf16> to vector<1x2x32xbf16>
    tpu.vector_store %arg5[%c1_61, %c0_62, %c0_63], %144 {strides = array<i32>} : memref<8x2x32xbf16, #tpu.memory_space<vmem>>, vector<1x2x32xbf16>,
    %c7_i32_64 = arith.constant 7 : i32
    %145 = arith.subi %c7_i32_64, %100 : i32
    %c0_65 = arith.constant 0 : index
    %c0_66 = arith.constant 0 : index
    %146 = vector.load %arg9[%c0_65, %c0_66] : memref<2x32xf32, #tpu.memory_space<vmem>>, vector<2x32xf32>
    %c0_67 = arith.constant 0 : index
    %c0_68 = arith.constant 0 : index
    %147 = vector.load %arg10[%c0_67, %c0_68] : memref<2x32xf32, #tpu.memory_space<vmem>>, vector<2x32xf32>
    %c6 = arith.constant 6 : index
    %c0_69 = arith.constant 0 : index
    %c0_70 = arith.constant 0 : index
    %148 = vector.load %arg3[%c6, %c0_69, %c0_70] : memref<8x2x128xbf16, #tpu.memory_space<vmem>>, vector<1x2x128xbf16>
    %149 = vector.shape_cast %148 : vector<1x2x128xbf16> to vector<2x128xbf16>
    %150 = arith.extf %149 : vector<2x128xbf16> to vector<2x128xf32>
    %151 = arith.truncf %146 : vector<2x32xf32> to vector<2x32xbf16>
    %cst_71 = arith.constant dense<0.000000e+00> : vector<2x128xf32>
    %152 = tpu.matmul %151, %7, %cst_71 {dimension_numbers = #tpu.dot_dimension_numbers<[1], [0], [0], [1], [0, 0, 1, 1], [], []>} : vector<2x32xbf16>, vector<32x128xbf16>, vector<2x128xf32> -> vector<2x128xf32>
    %153 = arith.addf %150, %152 : vector<2x128xf32>
    %154 = vector.extract_strided_slice %153 {offsets = [0, 0], sizes = [2, 96], strides = [1, 1]} : vector<2x128xf32> to vector<2x96xf32>
    %cst_72 = arith.constant 5.000000e-01 : f32
    %155 = vector.broadcast %cst_72 : f32 to vector<2x96xf32>
    %156 = arith.mulf %155, %154 : vector<2x96xf32>
    %157 = math.tanh %156 : vector<2x96xf32>
    %cst_73 = arith.constant 1.000000e+00 : f32
    %158 = vector.broadcast %cst_73 : f32 to vector<2x96xf32>
    %159 = arith.addf %157, %158 : vector<2x96xf32>
    %cst_74 = arith.constant 5.000000e-01 : f32
    %160 = vector.broadcast %cst_74 : f32 to vector<2x96xf32>
    %161 = arith.mulf %160, %159 : vector<2x96xf32>
    %162 = vector.extract_strided_slice %161 {offsets = [0, 0], sizes = [2, 32], strides = [1, 1]} : vector<2x96xf32> to vector<2x32xf32>
    %163 = vector.extract_strided_slice %161 {offsets = [0, 32], sizes = [2, 32], strides = [1, 1]} : vector<2x96xf32> to vector<2x32xf32>
    %164 = vector.extract_strided_slice %161 {offsets = [0, 64], sizes = [2, 32], strides = [1, 1]} : vector<2x96xf32> to vector<2x32xf32>
    %165 = vector.extract_strided_slice %153 {offsets = [0, 96], sizes = [2, 32], strides = [1, 1]} : vector<2x128xf32> to vector<2x32xf32>
    %166 = math.tanh %165 : vector<2x32xf32>
    %167 = arith.mulf %163, %147 : vector<2x32xf32>
    %168 = arith.mulf %162, %166 : vector<2x32xf32>
    %169 = arith.addf %167, %168 : vector<2x32xf32>
    %170 = math.tanh %169 : vector<2x32xf32>
    %171 = arith.mulf %164, %170 : vector<2x32xf32>
    %172 = vector.broadcast %145 : i32 to vector<2x1xi32>
    %173 = arith.cmpi slt, %172, %3 : vector<2x1xi32>
    %174 = vector.shape_cast %173 : vector<2x1xi1> to vector<2x1xi1>
    %175 = vector.broadcast %174 : vector<2x1xi1> to vector<2x32xi1>
    %176 = arith.select %175, %171, %146 : vector<2x32xi1>, vector<2x32xf32>
    %c0_75 = arith.constant 0 : index
    %c0_76 = arith.constant 0 : index
    %177 = vector.load %arg9[%c0_75, %c0_76] : memref<2x32xf32, #tpu.memory_space<vmem>>, vector<2x32xf32>
    tpu.vector_store %arg9[%c0_75, %c0_76], %176 {strides = array<i32>} : memref<2x32xf32, #tpu.memory_space<vmem>>, vector<2x32xf32>,
    %178 = vector.shape_cast %173 : vector<2x1xi1> to vector<2x1xi1>
    %179 = vector.broadcast %178 : vector<2x1xi1> to vector<2x32xi1>
    %180 = arith.select %179, %169, %147 : vector<2x32xi1>, vector<2x32xf32>
    %c0_77 = arith.constant 0 : index
    %c0_78 = arith.constant 0 : index
    %181 = vector.load %arg10[%c0_77, %c0_78] : memref<2x32xf32, #tpu.memory_space<vmem>>, vector<2x32xf32>
    tpu.vector_store %arg10[%c0_77, %c0_78], %180 {strides = array<i32>} : memref<2x32xf32, #tpu.memory_space<vmem>>, vector<2x32xf32>,
    %cst_79 = arith.constant 0.000000e+00 : f32
    %182 = vector.shape_cast %173 : vector<2x1xi1> to vector<2x1xi1>
    %183 = vector.broadcast %182 : vector<2x1xi1> to vector<2x32xi1>
    %184 = vector.broadcast %cst_79 : f32 to vector<2x32xf32>
    %185 = arith.select %183, %171, %184 : vector<2x32xi1>, vector<2x32xf32>
    %186 = arith.truncf %185 : vector<2x32xf32> to vector<2x32xbf16>
    %c6_80 = arith.constant 6 : index
    %c0_81 = arith.constant 0 : index
    %c0_82 = arith.constant 0 : index
    %187 = vector.load %arg6[%c6_80, %c0_81, %c0_82] : memref<8x2x32xbf16, #tpu.memory_space<vmem>>, vector<1x2x32xbf16>
    %188 = vector.shape_cast %187 : vector<1x2x32xbf16> to vector<2x32xbf16>
    %189 = vector.shape_cast %186 : vector<2x32xbf16> to vector<1x2x32xbf16>
    tpu.vector_store %arg6[%c6_80, %c0_81, %c0_82], %189 {strides = array<i32>} : memref<8x2x32xbf16, #tpu.memory_space<vmem>>, vector<1x2x32xbf16>,
    %c8_i32_83 = arith.constant 8 : i32
    %190 = arith.muli %arg0, %c8_i32_83 : i32
    %c2_i32 = arith.constant 2 : i32
    %191 = arith.addi %190, %c2_i32 : i32
    %c0_84 = arith.constant 0 : index
    %c0_85 = arith.constant 0 : index
    %192 = vector.load %arg7[%c0_84, %c0_85] : memref<2x32xf32, #tpu.memory_space<vmem>>, vector<2x32xf32>
    %c0_86 = arith.constant 0 : index
    %c0_87 = arith.constant 0 : index
    %193 = vector.load %arg8[%c0_86, %c0_87] : memref<2x32xf32, #tpu.memory_space<vmem>>, vector<2x32xf32>
    %c2 = arith.constant 2 : index
    %c0_88 = arith.constant 0 : index
    %c0_89 = arith.constant 0 : index
    %194 = vector.load %arg2[%c2, %c0_88, %c0_89] : memref<8x2x128xbf16, #tpu.memory_space<vmem>>, vector<1x2x128xbf16>
    %195 = vector.shape_cast %194 : vector<1x2x128xbf16> to vector<2x128xbf16>
    %196 = arith.extf %195 : vector<2x128xbf16> to vector<2x128xf32>
    %197 = arith.truncf %192 : vector<2x32xf32> to vector<2x32xbf16>
    %cst_90 = arith.constant dense<0.000000e+00> : vector<2x128xf32>
    %198 = tpu.matmul %197, %5, %cst_90 {dimension_numbers = #tpu.dot_dimension_numbers<[1], [0], [0], [1], [0, 0, 1, 1], [], []>} : vector<2x32xbf16>, vector<32x128xbf16>, vector<2x128xf32> -> vector<2x128xf32>
    %199 = arith.addf %196, %198 : vector<2x128xf32>
    %200 = vector.extract_strided_slice %199 {offsets = [0, 0], sizes = [2, 96], strides = [1, 1]} : vector<2x128xf32> to vector<2x96xf32>
    %cst_91 = arith.constant 5.000000e-01 : f32
    %201 = vector.broadcast %cst_91 : f32 to vector<2x96xf32>
    %202 = arith.mulf %201, %200 : vector<2x96xf32>
    %203 = math.tanh %202 : vector<2x96xf32>
    %cst_92 = arith.constant 1.000000e+00 : f32
    %204 = vector.broadcast %cst_92 : f32 to vector<2x96xf32>
    %205 = arith.addf %203, %204 : vector<2x96xf32>
    %cst_93 = arith.constant 5.000000e-01 : f32
    %206 = vector.broadcast %cst_93 : f32 to vector<2x96xf32>
    %207 = arith.mulf %206, %205 : vector<2x96xf32>
    %208 = vector.extract_strided_slice %207 {offsets = [0, 0], sizes = [2, 32], strides = [1, 1]} : vector<2x96xf32> to vector<2x32xf32>
    %209 = vector.extract_strided_slice %207 {offsets = [0, 32], sizes = [2, 32], strides = [1, 1]} : vector<2x96xf32> to vector<2x32xf32>
    %210 = vector.extract_strided_slice %207 {offsets = [0, 64], sizes = [2, 32], strides = [1, 1]} : vector<2x96xf32> to vector<2x32xf32>
    %211 = vector.extract_strided_slice %199 {offsets = [0, 96], sizes = [2, 32], strides = [1, 1]} : vector<2x128xf32> to vector<2x32xf32>
    %212 = math.tanh %211 : vector<2x32xf32>
    %213 = arith.mulf %209, %193 : vector<2x32xf32>
    %214 = arith.mulf %208, %212 : vector<2x32xf32>
    %215 = arith.addf %213, %214 : vector<2x32xf32>
    %216 = math.tanh %215 : vector<2x32xf32>
    %217 = arith.mulf %210, %216 : vector<2x32xf32>
    %218 = vector.broadcast %191 : i32 to vector<2x1xi32>
    %219 = arith.cmpi slt, %218, %3 : vector<2x1xi32>
    %220 = vector.shape_cast %219 : vector<2x1xi1> to vector<2x1xi1>
    %221 = vector.broadcast %220 : vector<2x1xi1> to vector<2x32xi1>
    %222 = arith.select %221, %217, %192 : vector<2x32xi1>, vector<2x32xf32>
    %c0_94 = arith.constant 0 : index
    %c0_95 = arith.constant 0 : index
    %223 = vector.load %arg7[%c0_94, %c0_95] : memref<2x32xf32, #tpu.memory_space<vmem>>, vector<2x32xf32>
    tpu.vector_store %arg7[%c0_94, %c0_95], %222 {strides = array<i32>} : memref<2x32xf32, #tpu.memory_space<vmem>>, vector<2x32xf32>,
    %224 = vector.shape_cast %219 : vector<2x1xi1> to vector<2x1xi1>
    %225 = vector.broadcast %224 : vector<2x1xi1> to vector<2x32xi1>
    %226 = arith.select %225, %215, %193 : vector<2x32xi1>, vector<2x32xf32>
    %c0_96 = arith.constant 0 : index
    %c0_97 = arith.constant 0 : index
    %227 = vector.load %arg8[%c0_96, %c0_97] : memref<2x32xf32, #tpu.memory_space<vmem>>, vector<2x32xf32>
    tpu.vector_store %arg8[%c0_96, %c0_97], %226 {strides = array<i32>} : memref<2x32xf32, #tpu.memory_space<vmem>>, vector<2x32xf32>,
    %cst_98 = arith.constant 0.000000e+00 : f32
    %228 = vector.shape_cast %219 : vector<2x1xi1> to vector<2x1xi1>
    %229 = vector.broadcast %228 : vector<2x1xi1> to vector<2x32xi1>
    %230 = vector.broadcast %cst_98 : f32 to vector<2x32xf32>
    %231 = arith.select %229, %217, %230 : vector<2x32xi1>, vector<2x32xf32>
    %232 = arith.truncf %231 : vector<2x32xf32> to vector<2x32xbf16>
    %c2_99 = arith.constant 2 : index
    %c0_100 = arith.constant 0 : index
    %c0_101 = arith.constant 0 : index
    %233 = vector.load %arg5[%c2_99, %c0_100, %c0_101] : memref<8x2x32xbf16, #tpu.memory_space<vmem>>, vector<1x2x32xbf16>
    %234 = vector.shape_cast %233 : vector<1x2x32xbf16> to vector<2x32xbf16>
    %235 = vector.shape_cast %232 : vector<2x32xbf16> to vector<1x2x32xbf16>
    tpu.vector_store %arg5[%c2_99, %c0_100, %c0_101], %235 {strides = array<i32>} : memref<8x2x32xbf16, #tpu.memory_space<vmem>>, vector<1x2x32xbf16>,
    %c7_i32_102 = arith.constant 7 : i32
    %236 = arith.subi %c7_i32_102, %191 : i32
    %c0_103 = arith.constant 0 : index
    %c0_104 = arith.constant 0 : index
    %237 = vector.load %arg9[%c0_103, %c0_104] : memref<2x32xf32, #tpu.memory_space<vmem>>, vector<2x32xf32>
    %c0_105 = arith.constant 0 : index
    %c0_106 = arith.constant 0 : index
    %238 = vector.load %arg10[%c0_105, %c0_106] : memref<2x32xf32, #tpu.memory_space<vmem>>, vector<2x32xf32>
    %c5 = arith.constant 5 : index
    %c0_107 = arith.constant 0 : index
    %c0_108 = arith.constant 0 : index
    %239 = vector.load %arg3[%c5, %c0_107, %c0_108] : memref<8x2x128xbf16, #tpu.memory_space<vmem>>, vector<1x2x128xbf16>
    %240 = vector.shape_cast %239 : vector<1x2x128xbf16> to vector<2x128xbf16>
    %241 = arith.extf %240 : vector<2x128xbf16> to vector<2x128xf32>
    %242 = arith.truncf %237 : vector<2x32xf32> to vector<2x32xbf16>
    %cst_109 = arith.constant dense<0.000000e+00> : vector<2x128xf32>
    %243 = tpu.matmul %242, %7, %cst_109 {dimension_numbers = #tpu.dot_dimension_numbers<[1], [0], [0], [1], [0, 0, 1, 1], [], []>} : vector<2x32xbf16>, vector<32x128xbf16>, vector<2x128xf32> -> vector<2x128xf32>
    %244 = arith.addf %241, %243 : vector<2x128xf32>
    %245 = vector.extract_strided_slice %244 {offsets = [0, 0], sizes = [2, 96], strides = [1, 1]} : vector<2x128xf32> to vector<2x96xf32>
    %cst_110 = arith.constant 5.000000e-01 : f32
    %246 = vector.broadcast %cst_110 : f32 to vector<2x96xf32>
    %247 = arith.mulf %246, %245 : vector<2x96xf32>
    %248 = math.tanh %247 : vector<2x96xf32>
    %cst_111 = arith.constant 1.000000e+00 : f32
    %249 = vector.broadcast %cst_111 : f32 to vector<2x96xf32>
    %250 = arith.addf %248, %249 : vector<2x96xf32>
    %cst_112 = arith.constant 5.000000e-01 : f32
    %251 = vector.broadcast %cst_112 : f32 to vector<2x96xf32>
    %252 = arith.mulf %251, %250 : vector<2x96xf32>
    %253 = vector.extract_strided_slice %252 {offsets = [0, 0], sizes = [2, 32], strides = [1, 1]} : vector<2x96xf32> to vector<2x32xf32>
    %254 = vector.extract_strided_slice %252 {offsets = [0, 32], sizes = [2, 32], strides = [1, 1]} : vector<2x96xf32> to vector<2x32xf32>
    %255 = vector.extract_strided_slice %252 {offsets = [0, 64], sizes = [2, 32], strides = [1, 1]} : vector<2x96xf32> to vector<2x32xf32>
    %256 = vector.extract_strided_slice %244 {offsets = [0, 96], sizes = [2, 32], strides = [1, 1]} : vector<2x128xf32> to vector<2x32xf32>
    %257 = math.tanh %256 : vector<2x32xf32>
    %258 = arith.mulf %254, %238 : vector<2x32xf32>
    %259 = arith.mulf %253, %257 : vector<2x32xf32>
    %260 = arith.addf %258, %259 : vector<2x32xf32>
    %261 = math.tanh %260 : vector<2x32xf32>
    %262 = arith.mulf %255, %261 : vector<2x32xf32>
    %263 = vector.broadcast %236 : i32 to vector<2x1xi32>
    %264 = arith.cmpi slt, %263, %3 : vector<2x1xi32>
    %265 = vector.shape_cast %264 : vector<2x1xi1> to vector<2x1xi1>
    %266 = vector.broadcast %265 : vector<2x1xi1> to vector<2x32xi1>
    %267 = arith.select %266, %262, %237 : vector<2x32xi1>, vector<2x32xf32>
    %c0_113 = arith.constant 0 : index
    %c0_114 = arith.constant 0 : index
    %268 = vector.load %arg9[%c0_113, %c0_114] : memref<2x32xf32, #tpu.memory_space<vmem>>, vector<2x32xf32>
    tpu.vector_store %arg9[%c0_113, %c0_114], %267 {strides = array<i32>} : memref<2x32xf32, #tpu.memory_space<vmem>>, vector<2x32xf32>,
    %269 = vector.shape_cast %264 : vector<2x1xi1> to vector<2x1xi1>
    %270 = vector.broadcast %269 : vector<2x1xi1> to vector<2x32xi1>
    %271 = arith.select %270, %260, %238 : vector<2x32xi1>, vector<2x32xf32>
    %c0_115 = arith.constant 0 : index
    %c0_116 = arith.constant 0 : index
    %272 = vector.load %arg10[%c0_115, %c0_116] : memref<2x32xf32, #tpu.memory_space<vmem>>, vector<2x32xf32>
    tpu.vector_store %arg10[%c0_115, %c0_116], %271 {strides = array<i32>} : memref<2x32xf32, #tpu.memory_space<vmem>>, vector<2x32xf32>,
    %cst_117 = arith.constant 0.000000e+00 : f32
    %273 = vector.shape_cast %264 : vector<2x1xi1> to vector<2x1xi1>
    %274 = vector.broadcast %273 : vector<2x1xi1> to vector<2x32xi1>
    %275 = vector.broadcast %cst_117 : f32 to vector<2x32xf32>
    %276 = arith.select %274, %262, %275 : vector<2x32xi1>, vector<2x32xf32>
    %277 = arith.truncf %276 : vector<2x32xf32> to vector<2x32xbf16>
    %c5_118 = arith.constant 5 : index
    %c0_119 = arith.constant 0 : index
    %c0_120 = arith.constant 0 : index
    %278 = vector.load %arg6[%c5_118, %c0_119, %c0_120] : memref<8x2x32xbf16, #tpu.memory_space<vmem>>, vector<1x2x32xbf16>
    %279 = vector.shape_cast %278 : vector<1x2x32xbf16> to vector<2x32xbf16>
    %280 = vector.shape_cast %277 : vector<2x32xbf16> to vector<1x2x32xbf16>
    tpu.vector_store %arg6[%c5_118, %c0_119, %c0_120], %280 {strides = array<i32>} : memref<8x2x32xbf16, #tpu.memory_space<vmem>>, vector<1x2x32xbf16>,
    %c8_i32_121 = arith.constant 8 : i32
    %281 = arith.muli %arg0, %c8_i32_121 : i32
    %c3_i32 = arith.constant 3 : i32
    %282 = arith.addi %281, %c3_i32 : i32
    %c0_122 = arith.constant 0 : index
    %c0_123 = arith.constant 0 : index
    %283 = vector.load %arg7[%c0_122, %c0_123] : memref<2x32xf32, #tpu.memory_space<vmem>>, vector<2x32xf32>
    %c0_124 = arith.constant 0 : index
    %c0_125 = arith.constant 0 : index
    %284 = vector.load %arg8[%c0_124, %c0_125] : memref<2x32xf32, #tpu.memory_space<vmem>>, vector<2x32xf32>
    %c3 = arith.constant 3 : index
    %c0_126 = arith.constant 0 : index
    %c0_127 = arith.constant 0 : index
    %285 = vector.load %arg2[%c3, %c0_126, %c0_127] : memref<8x2x128xbf16, #tpu.memory_space<vmem>>, vector<1x2x128xbf16>
    %286 = vector.shape_cast %285 : vector<1x2x128xbf16> to vector<2x128xbf16>
    %287 = arith.extf %286 : vector<2x128xbf16> to vector<2x128xf32>
    %288 = arith.truncf %283 : vector<2x32xf32> to vector<2x32xbf16>
    %cst_128 = arith.constant dense<0.000000e+00> : vector<2x128xf32>
    %289 = tpu.matmul %288, %5, %cst_128 {dimension_numbers = #tpu.dot_dimension_numbers<[1], [0], [0], [1], [0, 0, 1, 1], [], []>} : vector<2x32xbf16>, vector<32x128xbf16>, vector<2x128xf32> -> vector<2x128xf32>
    %290 = arith.addf %287, %289 : vector<2x128xf32>
    %291 = vector.extract_strided_slice %290 {offsets = [0, 0], sizes = [2, 96], strides = [1, 1]} : vector<2x128xf32> to vector<2x96xf32>
    %cst_129 = arith.constant 5.000000e-01 : f32
    %292 = vector.broadcast %cst_129 : f32 to vector<2x96xf32>
    %293 = arith.mulf %292, %291 : vector<2x96xf32>
    %294 = math.tanh %293 : vector<2x96xf32>
    %cst_130 = arith.constant 1.000000e+00 : f32
    %295 = vector.broadcast %cst_130 : f32 to vector<2x96xf32>
    %296 = arith.addf %294, %295 : vector<2x96xf32>
    %cst_131 = arith.constant 5.000000e-01 : f32
    %297 = vector.broadcast %cst_131 : f32 to vector<2x96xf32>
    %298 = arith.mulf %297, %296 : vector<2x96xf32>
    %299 = vector.extract_strided_slice %298 {offsets = [0, 0], sizes = [2, 32], strides = [1, 1]} : vector<2x96xf32> to vector<2x32xf32>
    %300 = vector.extract_strided_slice %298 {offsets = [0, 32], sizes = [2, 32], strides = [1, 1]} : vector<2x96xf32> to vector<2x32xf32>
    %301 = vector.extract_strided_slice %298 {offsets = [0, 64], sizes = [2, 32], strides = [1, 1]} : vector<2x96xf32> to vector<2x32xf32>
    %302 = vector.extract_strided_slice %290 {offsets = [0, 96], sizes = [2, 32], strides = [1, 1]} : vector<2x128xf32> to vector<2x32xf32>
    %303 = math.tanh %302 : vector<2x32xf32>
    %304 = arith.mulf %300, %284 : vector<2x32xf32>
    %305 = arith.mulf %299, %303 : vector<2x32xf32>
    %306 = arith.addf %304, %305 : vector<2x32xf32>
    %307 = math.tanh %306 : vector<2x32xf32>
    %308 = arith.mulf %301, %307 : vector<2x32xf32>
    %309 = vector.broadcast %282 : i32 to vector<2x1xi32>
    %310 = arith.cmpi slt, %309, %3 : vector<2x1xi32>
    %311 = vector.shape_cast %310 : vector<2x1xi1> to vector<2x1xi1>
    %312 = vector.broadcast %311 : vector<2x1xi1> to vector<2x32xi1>
    %313 = arith.select %312, %308, %283 : vector<2x32xi1>, vector<2x32xf32>
    %c0_132 = arith.constant 0 : index
    %c0_133 = arith.constant 0 : index
    %314 = vector.load %arg7[%c0_132, %c0_133] : memref<2x32xf32, #tpu.memory_space<vmem>>, vector<2x32xf32>
    tpu.vector_store %arg7[%c0_132, %c0_133], %313 {strides = array<i32>} : memref<2x32xf32, #tpu.memory_space<vmem>>, vector<2x32xf32>,
    %315 = vector.shape_cast %310 : vector<2x1xi1> to vector<2x1xi1>
    %316 = vector.broadcast %315 : vector<2x1xi1> to vector<2x32xi1>
    %317 = arith.select %316, %306, %284 : vector<2x32xi1>, vector<2x32xf32>
    %c0_134 = arith.constant 0 : index
    %c0_135 = arith.constant 0 : index
    %318 = vector.load %arg8[%c0_134, %c0_135] : memref<2x32xf32, #tpu.memory_space<vmem>>, vector<2x32xf32>
    tpu.vector_store %arg8[%c0_134, %c0_135], %317 {strides = array<i32>} : memref<2x32xf32, #tpu.memory_space<vmem>>, vector<2x32xf32>,
    %cst_136 = arith.constant 0.000000e+00 : f32
    %319 = vector.shape_cast %310 : vector<2x1xi1> to vector<2x1xi1>
    %320 = vector.broadcast %319 : vector<2x1xi1> to vector<2x32xi1>
    %321 = vector.broadcast %cst_136 : f32 to vector<2x32xf32>
    %322 = arith.select %320, %308, %321 : vector<2x32xi1>, vector<2x32xf32>
    %323 = arith.truncf %322 : vector<2x32xf32> to vector<2x32xbf16>
    %c3_137 = arith.constant 3 : index
    %c0_138 = arith.constant 0 : index
    %c0_139 = arith.constant 0 : index
    %324 = vector.load %arg5[%c3_137, %c0_138, %c0_139] : memref<8x2x32xbf16, #tpu.memory_space<vmem>>, vector<1x2x32xbf16>
    %325 = vector.shape_cast %324 : vector<1x2x32xbf16> to vector<2x32xbf16>
    %326 = vector.shape_cast %323 : vector<2x32xbf16> to vector<1x2x32xbf16>
    tpu.vector_store %arg5[%c3_137, %c0_138, %c0_139], %326 {strides = array<i32>} : memref<8x2x32xbf16, #tpu.memory_space<vmem>>, vector<1x2x32xbf16>,
    %c7_i32_140 = arith.constant 7 : i32
    %327 = arith.subi %c7_i32_140, %282 : i32
    %c0_141 = arith.constant 0 : index
    %c0_142 = arith.constant 0 : index
    %328 = vector.load %arg9[%c0_141, %c0_142] : memref<2x32xf32, #tpu.memory_space<vmem>>, vector<2x32xf32>
    %c0_143 = arith.constant 0 : index
    %c0_144 = arith.constant 0 : index
    %329 = vector.load %arg10[%c0_143, %c0_144] : memref<2x32xf32, #tpu.memory_space<vmem>>, vector<2x32xf32>
    %c4 = arith.constant 4 : index
    %c0_145 = arith.constant 0 : index
    %c0_146 = arith.constant 0 : index
    %330 = vector.load %arg3[%c4, %c0_145, %c0_146] : memref<8x2x128xbf16, #tpu.memory_space<vmem>>, vector<1x2x128xbf16>
    %331 = vector.shape_cast %330 : vector<1x2x128xbf16> to vector<2x128xbf16>
    %332 = arith.extf %331 : vector<2x128xbf16> to vector<2x128xf32>
    %333 = arith.truncf %328 : vector<2x32xf32> to vector<2x32xbf16>
    %cst_147 = arith.constant dense<0.000000e+00> : vector<2x128xf32>
    %334 = tpu.matmul %333, %7, %cst_147 {dimension_numbers = #tpu.dot_dimension_numbers<[1], [0], [0], [1], [0, 0, 1, 1], [], []>} : vector<2x32xbf16>, vector<32x128xbf16>, vector<2x128xf32> -> vector<2x128xf32>
    %335 = arith.addf %332, %334 : vector<2x128xf32>
    %336 = vector.extract_strided_slice %335 {offsets = [0, 0], sizes = [2, 96], strides = [1, 1]} : vector<2x128xf32> to vector<2x96xf32>
    %cst_148 = arith.constant 5.000000e-01 : f32
    %337 = vector.broadcast %cst_148 : f32 to vector<2x96xf32>
    %338 = arith.mulf %337, %336 : vector<2x96xf32>
    %339 = math.tanh %338 : vector<2x96xf32>
    %cst_149 = arith.constant 1.000000e+00 : f32
    %340 = vector.broadcast %cst_149 : f32 to vector<2x96xf32>
    %341 = arith.addf %339, %340 : vector<2x96xf32>
    %cst_150 = arith.constant 5.000000e-01 : f32
    %342 = vector.broadcast %cst_150 : f32 to vector<2x96xf32>
    %343 = arith.mulf %342, %341 : vector<2x96xf32>
    %344 = vector.extract_strided_slice %343 {offsets = [0, 0], sizes = [2, 32], strides = [1, 1]} : vector<2x96xf32> to vector<2x32xf32>
    %345 = vector.extract_strided_slice %343 {offsets = [0, 32], sizes = [2, 32], strides = [1, 1]} : vector<2x96xf32> to vector<2x32xf32>
    %346 = vector.extract_strided_slice %343 {offsets = [0, 64], sizes = [2, 32], strides = [1, 1]} : vector<2x96xf32> to vector<2x32xf32>
    %347 = vector.extract_strided_slice %335 {offsets = [0, 96], sizes = [2, 32], strides = [1, 1]} : vector<2x128xf32> to vector<2x32xf32>
    %348 = math.tanh %347 : vector<2x32xf32>
    %349 = arith.mulf %345, %329 : vector<2x32xf32>
    %350 = arith.mulf %344, %348 : vector<2x32xf32>
    %351 = arith.addf %349, %350 : vector<2x32xf32>
    %352 = math.tanh %351 : vector<2x32xf32>
    %353 = arith.mulf %346, %352 : vector<2x32xf32>
    %354 = vector.broadcast %327 : i32 to vector<2x1xi32>
    %355 = arith.cmpi slt, %354, %3 : vector<2x1xi32>
    %356 = vector.shape_cast %355 : vector<2x1xi1> to vector<2x1xi1>
    %357 = vector.broadcast %356 : vector<2x1xi1> to vector<2x32xi1>
    %358 = arith.select %357, %353, %328 : vector<2x32xi1>, vector<2x32xf32>
    %c0_151 = arith.constant 0 : index
    %c0_152 = arith.constant 0 : index
    %359 = vector.load %arg9[%c0_151, %c0_152] : memref<2x32xf32, #tpu.memory_space<vmem>>, vector<2x32xf32>
    tpu.vector_store %arg9[%c0_151, %c0_152], %358 {strides = array<i32>} : memref<2x32xf32, #tpu.memory_space<vmem>>, vector<2x32xf32>,
    %360 = vector.shape_cast %355 : vector<2x1xi1> to vector<2x1xi1>
    %361 = vector.broadcast %360 : vector<2x1xi1> to vector<2x32xi1>
    %362 = arith.select %361, %351, %329 : vector<2x32xi1>, vector<2x32xf32>
    %c0_153 = arith.constant 0 : index
    %c0_154 = arith.constant 0 : index
    %363 = vector.load %arg10[%c0_153, %c0_154] : memref<2x32xf32, #tpu.memory_space<vmem>>, vector<2x32xf32>
    tpu.vector_store %arg10[%c0_153, %c0_154], %362 {strides = array<i32>} : memref<2x32xf32, #tpu.memory_space<vmem>>, vector<2x32xf32>,
    %cst_155 = arith.constant 0.000000e+00 : f32
    %364 = vector.shape_cast %355 : vector<2x1xi1> to vector<2x1xi1>
    %365 = vector.broadcast %364 : vector<2x1xi1> to vector<2x32xi1>
    %366 = vector.broadcast %cst_155 : f32 to vector<2x32xf32>
    %367 = arith.select %365, %353, %366 : vector<2x32xi1>, vector<2x32xf32>
    %368 = arith.truncf %367 : vector<2x32xf32> to vector<2x32xbf16>
    %c4_156 = arith.constant 4 : index
    %c0_157 = arith.constant 0 : index
    %c0_158 = arith.constant 0 : index
    %369 = vector.load %arg6[%c4_156, %c0_157, %c0_158] : memref<8x2x32xbf16, #tpu.memory_space<vmem>>, vector<1x2x32xbf16>
    %370 = vector.shape_cast %369 : vector<1x2x32xbf16> to vector<2x32xbf16>
    %371 = vector.shape_cast %368 : vector<2x32xbf16> to vector<1x2x32xbf16>
    tpu.vector_store %arg6[%c4_156, %c0_157, %c0_158], %371 {strides = array<i32>} : memref<8x2x32xbf16, #tpu.memory_space<vmem>>, vector<1x2x32xbf16>,
    %c8_i32_159 = arith.constant 8 : i32
    %372 = arith.muli %arg0, %c8_i32_159 : i32
    %c4_i32 = arith.constant 4 : i32
    %373 = arith.addi %372, %c4_i32 : i32
    %c0_160 = arith.constant 0 : index
    %c0_161 = arith.constant 0 : index
    %374 = vector.load %arg7[%c0_160, %c0_161] : memref<2x32xf32, #tpu.memory_space<vmem>>, vector<2x32xf32>
    %c0_162 = arith.constant 0 : index
    %c0_163 = arith.constant 0 : index
    %375 = vector.load %arg8[%c0_162, %c0_163] : memref<2x32xf32, #tpu.memory_space<vmem>>, vector<2x32xf32>
    %c4_164 = arith.constant 4 : index
    %c0_165 = arith.constant 0 : index
    %c0_166 = arith.constant 0 : index
    %376 = vector.load %arg2[%c4_164, %c0_165, %c0_166] : memref<8x2x128xbf16, #tpu.memory_space<vmem>>, vector<1x2x128xbf16>
    %377 = vector.shape_cast %376 : vector<1x2x128xbf16> to vector<2x128xbf16>
    %378 = arith.extf %377 : vector<2x128xbf16> to vector<2x128xf32>
    %379 = arith.truncf %374 : vector<2x32xf32> to vector<2x32xbf16>
    %cst_167 = arith.constant dense<0.000000e+00> : vector<2x128xf32>
    %380 = tpu.matmul %379, %5, %cst_167 {dimension_numbers = #tpu.dot_dimension_numbers<[1], [0], [0], [1], [0, 0, 1, 1], [], []>} : vector<2x32xbf16>, vector<32x128xbf16>, vector<2x128xf32> -> vector<2x128xf32>
    %381 = arith.addf %378, %380 : vector<2x128xf32>
    %382 = vector.extract_strided_slice %381 {offsets = [0, 0], sizes = [2, 96], strides = [1, 1]} : vector<2x128xf32> to vector<2x96xf32>
    %cst_168 = arith.constant 5.000000e-01 : f32
    %383 = vector.broadcast %cst_168 : f32 to vector<2x96xf32>
    %384 = arith.mulf %383, %382 : vector<2x96xf32>
    %385 = math.tanh %384 : vector<2x96xf32>
    %cst_169 = arith.constant 1.000000e+00 : f32
    %386 = vector.broadcast %cst_169 : f32 to vector<2x96xf32>
    %387 = arith.addf %385, %386 : vector<2x96xf32>
    %cst_170 = arith.constant 5.000000e-01 : f32
    %388 = vector.broadcast %cst_170 : f32 to vector<2x96xf32>
    %389 = arith.mulf %388, %387 : vector<2x96xf32>
    %390 = vector.extract_strided_slice %389 {offsets = [0, 0], sizes = [2, 32], strides = [1, 1]} : vector<2x96xf32> to vector<2x32xf32>
    %391 = vector.extract_strided_slice %389 {offsets = [0, 32], sizes = [2, 32], strides = [1, 1]} : vector<2x96xf32> to vector<2x32xf32>
    %392 = vector.extract_strided_slice %389 {offsets = [0, 64], sizes = [2, 32], strides = [1, 1]} : vector<2x96xf32> to vector<2x32xf32>
    %393 = vector.extract_strided_slice %381 {offsets = [0, 96], sizes = [2, 32], strides = [1, 1]} : vector<2x128xf32> to vector<2x32xf32>
    %394 = math.tanh %393 : vector<2x32xf32>
    %395 = arith.mulf %391, %375 : vector<2x32xf32>
    %396 = arith.mulf %390, %394 : vector<2x32xf32>
    %397 = arith.addf %395, %396 : vector<2x32xf32>
    %398 = math.tanh %397 : vector<2x32xf32>
    %399 = arith.mulf %392, %398 : vector<2x32xf32>
    %400 = vector.broadcast %373 : i32 to vector<2x1xi32>
    %401 = arith.cmpi slt, %400, %3 : vector<2x1xi32>
    %402 = vector.shape_cast %401 : vector<2x1xi1> to vector<2x1xi1>
    %403 = vector.broadcast %402 : vector<2x1xi1> to vector<2x32xi1>
    %404 = arith.select %403, %399, %374 : vector<2x32xi1>, vector<2x32xf32>
    %c0_171 = arith.constant 0 : index
    %c0_172 = arith.constant 0 : index
    %405 = vector.load %arg7[%c0_171, %c0_172] : memref<2x32xf32, #tpu.memory_space<vmem>>, vector<2x32xf32>
    tpu.vector_store %arg7[%c0_171, %c0_172], %404 {strides = array<i32>} : memref<2x32xf32, #tpu.memory_space<vmem>>, vector<2x32xf32>,
    %406 = vector.shape_cast %401 : vector<2x1xi1> to vector<2x1xi1>
    %407 = vector.broadcast %406 : vector<2x1xi1> to vector<2x32xi1>
    %408 = arith.select %407, %397, %375 : vector<2x32xi1>, vector<2x32xf32>
    %c0_173 = arith.constant 0 : index
    %c0_174 = arith.constant 0 : index
    %409 = vector.load %arg8[%c0_173, %c0_174] : memref<2x32xf32, #tpu.memory_space<vmem>>, vector<2x32xf32>
    tpu.vector_store %arg8[%c0_173, %c0_174], %408 {strides = array<i32>} : memref<2x32xf32, #tpu.memory_space<vmem>>, vector<2x32xf32>,
    %cst_175 = arith.constant 0.000000e+00 : f32
    %410 = vector.shape_cast %401 : vector<2x1xi1> to vector<2x1xi1>
    %411 = vector.broadcast %410 : vector<2x1xi1> to vector<2x32xi1>
    %412 = vector.broadcast %cst_175 : f32 to vector<2x32xf32>
    %413 = arith.select %411, %399, %412 : vector<2x32xi1>, vector<2x32xf32>
    %414 = arith.truncf %413 : vector<2x32xf32> to vector<2x32xbf16>
    %c4_176 = arith.constant 4 : index
    %c0_177 = arith.constant 0 : index
    %c0_178 = arith.constant 0 : index
    %415 = vector.load %arg5[%c4_176, %c0_177, %c0_178] : memref<8x2x32xbf16, #tpu.memory_space<vmem>>, vector<1x2x32xbf16>
    %416 = vector.shape_cast %415 : vector<1x2x32xbf16> to vector<2x32xbf16>
    %417 = vector.shape_cast %414 : vector<2x32xbf16> to vector<1x2x32xbf16>
    tpu.vector_store %arg5[%c4_176, %c0_177, %c0_178], %417 {strides = array<i32>} : memref<8x2x32xbf16, #tpu.memory_space<vmem>>, vector<1x2x32xbf16>,
    %c7_i32_179 = arith.constant 7 : i32
    %418 = arith.subi %c7_i32_179, %373 : i32
    %c0_180 = arith.constant 0 : index
    %c0_181 = arith.constant 0 : index
    %419 = vector.load %arg9[%c0_180, %c0_181] : memref<2x32xf32, #tpu.memory_space<vmem>>, vector<2x32xf32>
    %c0_182 = arith.constant 0 : index
    %c0_183 = arith.constant 0 : index
    %420 = vector.load %arg10[%c0_182, %c0_183] : memref<2x32xf32, #tpu.memory_space<vmem>>, vector<2x32xf32>
    %c3_184 = arith.constant 3 : index
    %c0_185 = arith.constant 0 : index
    %c0_186 = arith.constant 0 : index
    %421 = vector.load %arg3[%c3_184, %c0_185, %c0_186] : memref<8x2x128xbf16, #tpu.memory_space<vmem>>, vector<1x2x128xbf16>
    %422 = vector.shape_cast %421 : vector<1x2x128xbf16> to vector<2x128xbf16>
    %423 = arith.extf %422 : vector<2x128xbf16> to vector<2x128xf32>
    %424 = arith.truncf %419 : vector<2x32xf32> to vector<2x32xbf16>
    %cst_187 = arith.constant dense<0.000000e+00> : vector<2x128xf32>
    %425 = tpu.matmul %424, %7, %cst_187 {dimension_numbers = #tpu.dot_dimension_numbers<[1], [0], [0], [1], [0, 0, 1, 1], [], []>} : vector<2x32xbf16>, vector<32x128xbf16>, vector<2x128xf32> -> vector<2x128xf32>
    %426 = arith.addf %423, %425 : vector<2x128xf32>
    %427 = vector.extract_strided_slice %426 {offsets = [0, 0], sizes = [2, 96], strides = [1, 1]} : vector<2x128xf32> to vector<2x96xf32>
    %cst_188 = arith.constant 5.000000e-01 : f32
    %428 = vector.broadcast %cst_188 : f32 to vector<2x96xf32>
    %429 = arith.mulf %428, %427 : vector<2x96xf32>
    %430 = math.tanh %429 : vector<2x96xf32>
    %cst_189 = arith.constant 1.000000e+00 : f32
    %431 = vector.broadcast %cst_189 : f32 to vector<2x96xf32>
    %432 = arith.addf %430, %431 : vector<2x96xf32>
    %cst_190 = arith.constant 5.000000e-01 : f32
    %433 = vector.broadcast %cst_190 : f32 to vector<2x96xf32>
    %434 = arith.mulf %433, %432 : vector<2x96xf32>
    %435 = vector.extract_strided_slice %434 {offsets = [0, 0], sizes = [2, 32], strides = [1, 1]} : vector<2x96xf32> to vector<2x32xf32>
    %436 = vector.extract_strided_slice %434 {offsets = [0, 32], sizes = [2, 32], strides = [1, 1]} : vector<2x96xf32> to vector<2x32xf32>
    %437 = vector.extract_strided_slice %434 {offsets = [0, 64], sizes = [2, 32], strides = [1, 1]} : vector<2x96xf32> to vector<2x32xf32>
    %438 = vector.extract_strided_slice %426 {offsets = [0, 96], sizes = [2, 32], strides = [1, 1]} : vector<2x128xf32> to vector<2x32xf32>
    %439 = math.tanh %438 : vector<2x32xf32>
    %440 = arith.mulf %436, %420 : vector<2x32xf32>
    %441 = arith.mulf %435, %439 : vector<2x32xf32>
    %442 = arith.addf %440, %441 : vector<2x32xf32>
    %443 = math.tanh %442 : vector<2x32xf32>
    %444 = arith.mulf %437, %443 : vector<2x32xf32>
    %445 = vector.broadcast %418 : i32 to vector<2x1xi32>
    %446 = arith.cmpi slt, %445, %3 : vector<2x1xi32>
    %447 = vector.shape_cast %446 : vector<2x1xi1> to vector<2x1xi1>
    %448 = vector.broadcast %447 : vector<2x1xi1> to vector<2x32xi1>
    %449 = arith.select %448, %444, %419 : vector<2x32xi1>, vector<2x32xf32>
    %c0_191 = arith.constant 0 : index
    %c0_192 = arith.constant 0 : index
    %450 = vector.load %arg9[%c0_191, %c0_192] : memref<2x32xf32, #tpu.memory_space<vmem>>, vector<2x32xf32>
    tpu.vector_store %arg9[%c0_191, %c0_192], %449 {strides = array<i32>} : memref<2x32xf32, #tpu.memory_space<vmem>>, vector<2x32xf32>,
    %451 = vector.shape_cast %446 : vector<2x1xi1> to vector<2x1xi1>
    %452 = vector.broadcast %451 : vector<2x1xi1> to vector<2x32xi1>
    %453 = arith.select %452, %442, %420 : vector<2x32xi1>, vector<2x32xf32>
    %c0_193 = arith.constant 0 : index
    %c0_194 = arith.constant 0 : index
    %454 = vector.load %arg10[%c0_193, %c0_194] : memref<2x32xf32, #tpu.memory_space<vmem>>, vector<2x32xf32>
    tpu.vector_store %arg10[%c0_193, %c0_194], %453 {strides = array<i32>} : memref<2x32xf32, #tpu.memory_space<vmem>>, vector<2x32xf32>,
    %cst_195 = arith.constant 0.000000e+00 : f32
    %455 = vector.shape_cast %446 : vector<2x1xi1> to vector<2x1xi1>
    %456 = vector.broadcast %455 : vector<2x1xi1> to vector<2x32xi1>
    %457 = vector.broadcast %cst_195 : f32 to vector<2x32xf32>
    %458 = arith.select %456, %444, %457 : vector<2x32xi1>, vector<2x32xf32>
    %459 = arith.truncf %458 : vector<2x32xf32> to vector<2x32xbf16>
    %c3_196 = arith.constant 3 : index
    %c0_197 = arith.constant 0 : index
    %c0_198 = arith.constant 0 : index
    %460 = vector.load %arg6[%c3_196, %c0_197, %c0_198] : memref<8x2x32xbf16, #tpu.memory_space<vmem>>, vector<1x2x32xbf16>
    %461 = vector.shape_cast %460 : vector<1x2x32xbf16> to vector<2x32xbf16>
    %462 = vector.shape_cast %459 : vector<2x32xbf16> to vector<1x2x32xbf16>
    tpu.vector_store %arg6[%c3_196, %c0_197, %c0_198], %462 {strides = array<i32>} : memref<8x2x32xbf16, #tpu.memory_space<vmem>>, vector<1x2x32xbf16>,
    %c8_i32_199 = arith.constant 8 : i32
    %463 = arith.muli %arg0, %c8_i32_199 : i32
    %c5_i32 = arith.constant 5 : i32
    %464 = arith.addi %463, %c5_i32 : i32
    %c0_200 = arith.constant 0 : index
    %c0_201 = arith.constant 0 : index
    %465 = vector.load %arg7[%c0_200, %c0_201] : memref<2x32xf32, #tpu.memory_space<vmem>>, vector<2x32xf32>
    %c0_202 = arith.constant 0 : index
    %c0_203 = arith.constant 0 : index
    %466 = vector.load %arg8[%c0_202, %c0_203] : memref<2x32xf32, #tpu.memory_space<vmem>>, vector<2x32xf32>
    %c5_204 = arith.constant 5 : index
    %c0_205 = arith.constant 0 : index
    %c0_206 = arith.constant 0 : index
    %467 = vector.load %arg2[%c5_204, %c0_205, %c0_206] : memref<8x2x128xbf16, #tpu.memory_space<vmem>>, vector<1x2x128xbf16>
    %468 = vector.shape_cast %467 : vector<1x2x128xbf16> to vector<2x128xbf16>
    %469 = arith.extf %468 : vector<2x128xbf16> to vector<2x128xf32>
    %470 = arith.truncf %465 : vector<2x32xf32> to vector<2x32xbf16>
    %cst_207 = arith.constant dense<0.000000e+00> : vector<2x128xf32>
    %471 = tpu.matmul %470, %5, %cst_207 {dimension_numbers = #tpu.dot_dimension_numbers<[1], [0], [0], [1], [0, 0, 1, 1], [], []>} : vector<2x32xbf16>, vector<32x128xbf16>, vector<2x128xf32> -> vector<2x128xf32>
    %472 = arith.addf %469, %471 : vector<2x128xf32>
    %473 = vector.extract_strided_slice %472 {offsets = [0, 0], sizes = [2, 96], strides = [1, 1]} : vector<2x128xf32> to vector<2x96xf32>
    %cst_208 = arith.constant 5.000000e-01 : f32
    %474 = vector.broadcast %cst_208 : f32 to vector<2x96xf32>
    %475 = arith.mulf %474, %473 : vector<2x96xf32>
    %476 = math.tanh %475 : vector<2x96xf32>
    %cst_209 = arith.constant 1.000000e+00 : f32
    %477 = vector.broadcast %cst_209 : f32 to vector<2x96xf32>
    %478 = arith.addf %476, %477 : vector<2x96xf32>
    %cst_210 = arith.constant 5.000000e-01 : f32
    %479 = vector.broadcast %cst_210 : f32 to vector<2x96xf32>
    %480 = arith.mulf %479, %478 : vector<2x96xf32>
    %481 = vector.extract_strided_slice %480 {offsets = [0, 0], sizes = [2, 32], strides = [1, 1]} : vector<2x96xf32> to vector<2x32xf32>
    %482 = vector.extract_strided_slice %480 {offsets = [0, 32], sizes = [2, 32], strides = [1, 1]} : vector<2x96xf32> to vector<2x32xf32>
    %483 = vector.extract_strided_slice %480 {offsets = [0, 64], sizes = [2, 32], strides = [1, 1]} : vector<2x96xf32> to vector<2x32xf32>
    %484 = vector.extract_strided_slice %472 {offsets = [0, 96], sizes = [2, 32], strides = [1, 1]} : vector<2x128xf32> to vector<2x32xf32>
    %485 = math.tanh %484 : vector<2x32xf32>
    %486 = arith.mulf %482, %466 : vector<2x32xf32>
    %487 = arith.mulf %481, %485 : vector<2x32xf32>
    %488 = arith.addf %486, %487 : vector<2x32xf32>
    %489 = math.tanh %488 : vector<2x32xf32>
    %490 = arith.mulf %483, %489 : vector<2x32xf32>
    %491 = vector.broadcast %464 : i32 to vector<2x1xi32>
    %492 = arith.cmpi slt, %491, %3 : vector<2x1xi32>
    %493 = vector.shape_cast %492 : vector<2x1xi1> to vector<2x1xi1>
    %494 = vector.broadcast %493 : vector<2x1xi1> to vector<2x32xi1>
    %495 = arith.select %494, %490, %465 : vector<2x32xi1>, vector<2x32xf32>
    %c0_211 = arith.constant 0 : index
    %c0_212 = arith.constant 0 : index
    %496 = vector.load %arg7[%c0_211, %c0_212] : memref<2x32xf32, #tpu.memory_space<vmem>>, vector<2x32xf32>
    tpu.vector_store %arg7[%c0_211, %c0_212], %495 {strides = array<i32>} : memref<2x32xf32, #tpu.memory_space<vmem>>, vector<2x32xf32>,
    %497 = vector.shape_cast %492 : vector<2x1xi1> to vector<2x1xi1>
    %498 = vector.broadcast %497 : vector<2x1xi1> to vector<2x32xi1>
    %499 = arith.select %498, %488, %466 : vector<2x32xi1>, vector<2x32xf32>
    %c0_213 = arith.constant 0 : index
    %c0_214 = arith.constant 0 : index
    %500 = vector.load %arg8[%c0_213, %c0_214] : memref<2x32xf32, #tpu.memory_space<vmem>>, vector<2x32xf32>
    tpu.vector_store %arg8[%c0_213, %c0_214], %499 {strides = array<i32>} : memref<2x32xf32, #tpu.memory_space<vmem>>, vector<2x32xf32>,
    %cst_215 = arith.constant 0.000000e+00 : f32
    %501 = vector.shape_cast %492 : vector<2x1xi1> to vector<2x1xi1>
    %502 = vector.broadcast %501 : vector<2x1xi1> to vector<2x32xi1>
    %503 = vector.broadcast %cst_215 : f32 to vector<2x32xf32>
    %504 = arith.select %502, %490, %503 : vector<2x32xi1>, vector<2x32xf32>
    %505 = arith.truncf %504 : vector<2x32xf32> to vector<2x32xbf16>
    %c5_216 = arith.constant 5 : index
    %c0_217 = arith.constant 0 : index
    %c0_218 = arith.constant 0 : index
    %506 = vector.load %arg5[%c5_216, %c0_217, %c0_218] : memref<8x2x32xbf16, #tpu.memory_space<vmem>>, vector<1x2x32xbf16>
    %507 = vector.shape_cast %506 : vector<1x2x32xbf16> to vector<2x32xbf16>
    %508 = vector.shape_cast %505 : vector<2x32xbf16> to vector<1x2x32xbf16>
    tpu.vector_store %arg5[%c5_216, %c0_217, %c0_218], %508 {strides = array<i32>} : memref<8x2x32xbf16, #tpu.memory_space<vmem>>, vector<1x2x32xbf16>,
    %c7_i32_219 = arith.constant 7 : i32
    %509 = arith.subi %c7_i32_219, %464 : i32
    %c0_220 = arith.constant 0 : index
    %c0_221 = arith.constant 0 : index
    %510 = vector.load %arg9[%c0_220, %c0_221] : memref<2x32xf32, #tpu.memory_space<vmem>>, vector<2x32xf32>
    %c0_222 = arith.constant 0 : index
    %c0_223 = arith.constant 0 : index
    %511 = vector.load %arg10[%c0_222, %c0_223] : memref<2x32xf32, #tpu.memory_space<vmem>>, vector<2x32xf32>
    %c2_224 = arith.constant 2 : index
    %c0_225 = arith.constant 0 : index
    %c0_226 = arith.constant 0 : index
    %512 = vector.load %arg3[%c2_224, %c0_225, %c0_226] : memref<8x2x128xbf16, #tpu.memory_space<vmem>>, vector<1x2x128xbf16>
    %513 = vector.shape_cast %512 : vector<1x2x128xbf16> to vector<2x128xbf16>
    %514 = arith.extf %513 : vector<2x128xbf16> to vector<2x128xf32>
    %515 = arith.truncf %510 : vector<2x32xf32> to vector<2x32xbf16>
    %cst_227 = arith.constant dense<0.000000e+00> : vector<2x128xf32>
    %516 = tpu.matmul %515, %7, %cst_227 {dimension_numbers = #tpu.dot_dimension_numbers<[1], [0], [0], [1], [0, 0, 1, 1], [], []>} : vector<2x32xbf16>, vector<32x128xbf16>, vector<2x128xf32> -> vector<2x128xf32>
    %517 = arith.addf %514, %516 : vector<2x128xf32>
    %518 = vector.extract_strided_slice %517 {offsets = [0, 0], sizes = [2, 96], strides = [1, 1]} : vector<2x128xf32> to vector<2x96xf32>
    %cst_228 = arith.constant 5.000000e-01 : f32
    %519 = vector.broadcast %cst_228 : f32 to vector<2x96xf32>
    %520 = arith.mulf %519, %518 : vector<2x96xf32>
    %521 = math.tanh %520 : vector<2x96xf32>
    %cst_229 = arith.constant 1.000000e+00 : f32
    %522 = vector.broadcast %cst_229 : f32 to vector<2x96xf32>
    %523 = arith.addf %521, %522 : vector<2x96xf32>
    %cst_230 = arith.constant 5.000000e-01 : f32
    %524 = vector.broadcast %cst_230 : f32 to vector<2x96xf32>
    %525 = arith.mulf %524, %523 : vector<2x96xf32>
    %526 = vector.extract_strided_slice %525 {offsets = [0, 0], sizes = [2, 32], strides = [1, 1]} : vector<2x96xf32> to vector<2x32xf32>
    %527 = vector.extract_strided_slice %525 {offsets = [0, 32], sizes = [2, 32], strides = [1, 1]} : vector<2x96xf32> to vector<2x32xf32>
    %528 = vector.extract_strided_slice %525 {offsets = [0, 64], sizes = [2, 32], strides = [1, 1]} : vector<2x96xf32> to vector<2x32xf32>
    %529 = vector.extract_strided_slice %517 {offsets = [0, 96], sizes = [2, 32], strides = [1, 1]} : vector<2x128xf32> to vector<2x32xf32>
    %530 = math.tanh %529 : vector<2x32xf32>
    %531 = arith.mulf %527, %511 : vector<2x32xf32>
    %532 = arith.mulf %526, %530 : vector<2x32xf32>
    %533 = arith.addf %531, %532 : vector<2x32xf32>
    %534 = math.tanh %533 : vector<2x32xf32>
    %535 = arith.mulf %528, %534 : vector<2x32xf32>
    %536 = vector.broadcast %509 : i32 to vector<2x1xi32>
    %537 = arith.cmpi slt, %536, %3 : vector<2x1xi32>
    %538 = vector.shape_cast %537 : vector<2x1xi1> to vector<2x1xi1>
    %539 = vector.broadcast %538 : vector<2x1xi1> to vector<2x32xi1>
    %540 = arith.select %539, %535, %510 : vector<2x32xi1>, vector<2x32xf32>
    %c0_231 = arith.constant 0 : index
    %c0_232 = arith.constant 0 : index
    %541 = vector.load %arg9[%c0_231, %c0_232] : memref<2x32xf32, #tpu.memory_space<vmem>>, vector<2x32xf32>
    tpu.vector_store %arg9[%c0_231, %c0_232], %540 {strides = array<i32>} : memref<2x32xf32, #tpu.memory_space<vmem>>, vector<2x32xf32>,
    %542 = vector.shape_cast %537 : vector<2x1xi1> to vector<2x1xi1>
    %543 = vector.broadcast %542 : vector<2x1xi1> to vector<2x32xi1>
    %544 = arith.select %543, %533, %511 : vector<2x32xi1>, vector<2x32xf32>
    %c0_233 = arith.constant 0 : index
    %c0_234 = arith.constant 0 : index
    %545 = vector.load %arg10[%c0_233, %c0_234] : memref<2x32xf32, #tpu.memory_space<vmem>>, vector<2x32xf32>
    tpu.vector_store %arg10[%c0_233, %c0_234], %544 {strides = array<i32>} : memref<2x32xf32, #tpu.memory_space<vmem>>, vector<2x32xf32>,
    %cst_235 = arith.constant 0.000000e+00 : f32
    %546 = vector.shape_cast %537 : vector<2x1xi1> to vector<2x1xi1>
    %547 = vector.broadcast %546 : vector<2x1xi1> to vector<2x32xi1>
    %548 = vector.broadcast %cst_235 : f32 to vector<2x32xf32>
    %549 = arith.select %547, %535, %548 : vector<2x32xi1>, vector<2x32xf32>
    %550 = arith.truncf %549 : vector<2x32xf32> to vector<2x32xbf16>
    %c2_236 = arith.constant 2 : index
    %c0_237 = arith.constant 0 : index
    %c0_238 = arith.constant 0 : index
    %551 = vector.load %arg6[%c2_236, %c0_237, %c0_238] : memref<8x2x32xbf16, #tpu.memory_space<vmem>>, vector<1x2x32xbf16>
    %552 = vector.shape_cast %551 : vector<1x2x32xbf16> to vector<2x32xbf16>
    %553 = vector.shape_cast %550 : vector<2x32xbf16> to vector<1x2x32xbf16>
    tpu.vector_store %arg6[%c2_236, %c0_237, %c0_238], %553 {strides = array<i32>} : memref<8x2x32xbf16, #tpu.memory_space<vmem>>, vector<1x2x32xbf16>,
    %c8_i32_239 = arith.constant 8 : i32
    %554 = arith.muli %arg0, %c8_i32_239 : i32
    %c6_i32 = arith.constant 6 : i32
    %555 = arith.addi %554, %c6_i32 : i32
    %c0_240 = arith.constant 0 : index
    %c0_241 = arith.constant 0 : index
    %556 = vector.load %arg7[%c0_240, %c0_241] : memref<2x32xf32, #tpu.memory_space<vmem>>, vector<2x32xf32>
    %c0_242 = arith.constant 0 : index
    %c0_243 = arith.constant 0 : index
    %557 = vector.load %arg8[%c0_242, %c0_243] : memref<2x32xf32, #tpu.memory_space<vmem>>, vector<2x32xf32>
    %c6_244 = arith.constant 6 : index
    %c0_245 = arith.constant 0 : index
    %c0_246 = arith.constant 0 : index
    %558 = vector.load %arg2[%c6_244, %c0_245, %c0_246] : memref<8x2x128xbf16, #tpu.memory_space<vmem>>, vector<1x2x128xbf16>
    %559 = vector.shape_cast %558 : vector<1x2x128xbf16> to vector<2x128xbf16>
    %560 = arith.extf %559 : vector<2x128xbf16> to vector<2x128xf32>
    %561 = arith.truncf %556 : vector<2x32xf32> to vector<2x32xbf16>
    %cst_247 = arith.constant dense<0.000000e+00> : vector<2x128xf32>
    %562 = tpu.matmul %561, %5, %cst_247 {dimension_numbers = #tpu.dot_dimension_numbers<[1], [0], [0], [1], [0, 0, 1, 1], [], []>} : vector<2x32xbf16>, vector<32x128xbf16>, vector<2x128xf32> -> vector<2x128xf32>
    %563 = arith.addf %560, %562 : vector<2x128xf32>
    %564 = vector.extract_strided_slice %563 {offsets = [0, 0], sizes = [2, 96], strides = [1, 1]} : vector<2x128xf32> to vector<2x96xf32>
    %cst_248 = arith.constant 5.000000e-01 : f32
    %565 = vector.broadcast %cst_248 : f32 to vector<2x96xf32>
    %566 = arith.mulf %565, %564 : vector<2x96xf32>
    %567 = math.tanh %566 : vector<2x96xf32>
    %cst_249 = arith.constant 1.000000e+00 : f32
    %568 = vector.broadcast %cst_249 : f32 to vector<2x96xf32>
    %569 = arith.addf %567, %568 : vector<2x96xf32>
    %cst_250 = arith.constant 5.000000e-01 : f32
    %570 = vector.broadcast %cst_250 : f32 to vector<2x96xf32>
    %571 = arith.mulf %570, %569 : vector<2x96xf32>
    %572 = vector.extract_strided_slice %571 {offsets = [0, 0], sizes = [2, 32], strides = [1, 1]} : vector<2x96xf32> to vector<2x32xf32>
    %573 = vector.extract_strided_slice %571 {offsets = [0, 32], sizes = [2, 32], strides = [1, 1]} : vector<2x96xf32> to vector<2x32xf32>
    %574 = vector.extract_strided_slice %571 {offsets = [0, 64], sizes = [2, 32], strides = [1, 1]} : vector<2x96xf32> to vector<2x32xf32>
    %575 = vector.extract_strided_slice %563 {offsets = [0, 96], sizes = [2, 32], strides = [1, 1]} : vector<2x128xf32> to vector<2x32xf32>
    %576 = math.tanh %575 : vector<2x32xf32>
    %577 = arith.mulf %573, %557 : vector<2x32xf32>
    %578 = arith.mulf %572, %576 : vector<2x32xf32>
    %579 = arith.addf %577, %578 : vector<2x32xf32>
    %580 = math.tanh %579 : vector<2x32xf32>
    %581 = arith.mulf %574, %580 : vector<2x32xf32>
    %582 = vector.broadcast %555 : i32 to vector<2x1xi32>
    %583 = arith.cmpi slt, %582, %3 : vector<2x1xi32>
    %584 = vector.shape_cast %583 : vector<2x1xi1> to vector<2x1xi1>
    %585 = vector.broadcast %584 : vector<2x1xi1> to vector<2x32xi1>
    %586 = arith.select %585, %581, %556 : vector<2x32xi1>, vector<2x32xf32>
    %c0_251 = arith.constant 0 : index
    %c0_252 = arith.constant 0 : index
    %587 = vector.load %arg7[%c0_251, %c0_252] : memref<2x32xf32, #tpu.memory_space<vmem>>, vector<2x32xf32>
    tpu.vector_store %arg7[%c0_251, %c0_252], %586 {strides = array<i32>} : memref<2x32xf32, #tpu.memory_space<vmem>>, vector<2x32xf32>,
    %588 = vector.shape_cast %583 : vector<2x1xi1> to vector<2x1xi1>
    %589 = vector.broadcast %588 : vector<2x1xi1> to vector<2x32xi1>
    %590 = arith.select %589, %579, %557 : vector<2x32xi1>, vector<2x32xf32>
    %c0_253 = arith.constant 0 : index
    %c0_254 = arith.constant 0 : index
    %591 = vector.load %arg8[%c0_253, %c0_254] : memref<2x32xf32, #tpu.memory_space<vmem>>, vector<2x32xf32>
    tpu.vector_store %arg8[%c0_253, %c0_254], %590 {strides = array<i32>} : memref<2x32xf32, #tpu.memory_space<vmem>>, vector<2x32xf32>,
    %cst_255 = arith.constant 0.000000e+00 : f32
    %592 = vector.shape_cast %583 : vector<2x1xi1> to vector<2x1xi1>
    %593 = vector.broadcast %592 : vector<2x1xi1> to vector<2x32xi1>
    %594 = vector.broadcast %cst_255 : f32 to vector<2x32xf32>
    %595 = arith.select %593, %581, %594 : vector<2x32xi1>, vector<2x32xf32>
    %596 = arith.truncf %595 : vector<2x32xf32> to vector<2x32xbf16>
    %c6_256 = arith.constant 6 : index
    %c0_257 = arith.constant 0 : index
    %c0_258 = arith.constant 0 : index
    %597 = vector.load %arg5[%c6_256, %c0_257, %c0_258] : memref<8x2x32xbf16, #tpu.memory_space<vmem>>, vector<1x2x32xbf16>
    %598 = vector.shape_cast %597 : vector<1x2x32xbf16> to vector<2x32xbf16>
    %599 = vector.shape_cast %596 : vector<2x32xbf16> to vector<1x2x32xbf16>
    tpu.vector_store %arg5[%c6_256, %c0_257, %c0_258], %599 {strides = array<i32>} : memref<8x2x32xbf16, #tpu.memory_space<vmem>>, vector<1x2x32xbf16>,
    %c7_i32_259 = arith.constant 7 : i32
    %600 = arith.subi %c7_i32_259, %555 : i32
    %c0_260 = arith.constant 0 : index
    %c0_261 = arith.constant 0 : index
    %601 = vector.load %arg9[%c0_260, %c0_261] : memref<2x32xf32, #tpu.memory_space<vmem>>, vector<2x32xf32>
    %c0_262 = arith.constant 0 : index
    %c0_263 = arith.constant 0 : index
    %602 = vector.load %arg10[%c0_262, %c0_263] : memref<2x32xf32, #tpu.memory_space<vmem>>, vector<2x32xf32>
    %c1_264 = arith.constant 1 : index
    %c0_265 = arith.constant 0 : index
    %c0_266 = arith.constant 0 : index
    %603 = vector.load %arg3[%c1_264, %c0_265, %c0_266] : memref<8x2x128xbf16, #tpu.memory_space<vmem>>, vector<1x2x128xbf16>
    %604 = vector.shape_cast %603 : vector<1x2x128xbf16> to vector<2x128xbf16>
    %605 = arith.extf %604 : vector<2x128xbf16> to vector<2x128xf32>
    %606 = arith.truncf %601 : vector<2x32xf32> to vector<2x32xbf16>
    %cst_267 = arith.constant dense<0.000000e+00> : vector<2x128xf32>
    %607 = tpu.matmul %606, %7, %cst_267 {dimension_numbers = #tpu.dot_dimension_numbers<[1], [0], [0], [1], [0, 0, 1, 1], [], []>} : vector<2x32xbf16>, vector<32x128xbf16>, vector<2x128xf32> -> vector<2x128xf32>
    %608 = arith.addf %605, %607 : vector<2x128xf32>
    %609 = vector.extract_strided_slice %608 {offsets = [0, 0], sizes = [2, 96], strides = [1, 1]} : vector<2x128xf32> to vector<2x96xf32>
    %cst_268 = arith.constant 5.000000e-01 : f32
    %610 = vector.broadcast %cst_268 : f32 to vector<2x96xf32>
    %611 = arith.mulf %610, %609 : vector<2x96xf32>
    %612 = math.tanh %611 : vector<2x96xf32>
    %cst_269 = arith.constant 1.000000e+00 : f32
    %613 = vector.broadcast %cst_269 : f32 to vector<2x96xf32>
    %614 = arith.addf %612, %613 : vector<2x96xf32>
    %cst_270 = arith.constant 5.000000e-01 : f32
    %615 = vector.broadcast %cst_270 : f32 to vector<2x96xf32>
    %616 = arith.mulf %615, %614 : vector<2x96xf32>
    %617 = vector.extract_strided_slice %616 {offsets = [0, 0], sizes = [2, 32], strides = [1, 1]} : vector<2x96xf32> to vector<2x32xf32>
    %618 = vector.extract_strided_slice %616 {offsets = [0, 32], sizes = [2, 32], strides = [1, 1]} : vector<2x96xf32> to vector<2x32xf32>
    %619 = vector.extract_strided_slice %616 {offsets = [0, 64], sizes = [2, 32], strides = [1, 1]} : vector<2x96xf32> to vector<2x32xf32>
    %620 = vector.extract_strided_slice %608 {offsets = [0, 96], sizes = [2, 32], strides = [1, 1]} : vector<2x128xf32> to vector<2x32xf32>
    %621 = math.tanh %620 : vector<2x32xf32>
    %622 = arith.mulf %618, %602 : vector<2x32xf32>
    %623 = arith.mulf %617, %621 : vector<2x32xf32>
    %624 = arith.addf %622, %623 : vector<2x32xf32>
    %625 = math.tanh %624 : vector<2x32xf32>
    %626 = arith.mulf %619, %625 : vector<2x32xf32>
    %627 = vector.broadcast %600 : i32 to vector<2x1xi32>
    %628 = arith.cmpi slt, %627, %3 : vector<2x1xi32>
    %629 = vector.shape_cast %628 : vector<2x1xi1> to vector<2x1xi1>
    %630 = vector.broadcast %629 : vector<2x1xi1> to vector<2x32xi1>
    %631 = arith.select %630, %626, %601 : vector<2x32xi1>, vector<2x32xf32>
    %c0_271 = arith.constant 0 : index
    %c0_272 = arith.constant 0 : index
    %632 = vector.load %arg9[%c0_271, %c0_272] : memref<2x32xf32, #tpu.memory_space<vmem>>, vector<2x32xf32>
    tpu.vector_store %arg9[%c0_271, %c0_272], %631 {strides = array<i32>} : memref<2x32xf32, #tpu.memory_space<vmem>>, vector<2x32xf32>,
    %633 = vector.shape_cast %628 : vector<2x1xi1> to vector<2x1xi1>
    %634 = vector.broadcast %633 : vector<2x1xi1> to vector<2x32xi1>
    %635 = arith.select %634, %624, %602 : vector<2x32xi1>, vector<2x32xf32>
    %c0_273 = arith.constant 0 : index
    %c0_274 = arith.constant 0 : index
    %636 = vector.load %arg10[%c0_273, %c0_274] : memref<2x32xf32, #tpu.memory_space<vmem>>, vector<2x32xf32>
    tpu.vector_store %arg10[%c0_273, %c0_274], %635 {strides = array<i32>} : memref<2x32xf32, #tpu.memory_space<vmem>>, vector<2x32xf32>,
    %cst_275 = arith.constant 0.000000e+00 : f32
    %637 = vector.shape_cast %628 : vector<2x1xi1> to vector<2x1xi1>
    %638 = vector.broadcast %637 : vector<2x1xi1> to vector<2x32xi1>
    %639 = vector.broadcast %cst_275 : f32 to vector<2x32xf32>
    %640 = arith.select %638, %626, %639 : vector<2x32xi1>, vector<2x32xf32>
    %641 = arith.truncf %640 : vector<2x32xf32> to vector<2x32xbf16>
    %c1_276 = arith.constant 1 : index
    %c0_277 = arith.constant 0 : index
    %c0_278 = arith.constant 0 : index
    %642 = vector.load %arg6[%c1_276, %c0_277, %c0_278] : memref<8x2x32xbf16, #tpu.memory_space<vmem>>, vector<1x2x32xbf16>
    %643 = vector.shape_cast %642 : vector<1x2x32xbf16> to vector<2x32xbf16>
    %644 = vector.shape_cast %641 : vector<2x32xbf16> to vector<1x2x32xbf16>
    tpu.vector_store %arg6[%c1_276, %c0_277, %c0_278], %644 {strides = array<i32>} : memref<8x2x32xbf16, #tpu.memory_space<vmem>>, vector<1x2x32xbf16>,
    %c8_i32_279 = arith.constant 8 : i32
    %645 = arith.muli %arg0, %c8_i32_279 : i32
    %c7_i32_280 = arith.constant 7 : i32
    %646 = arith.addi %645, %c7_i32_280 : i32
    %c0_281 = arith.constant 0 : index
    %c0_282 = arith.constant 0 : index
    %647 = vector.load %arg7[%c0_281, %c0_282] : memref<2x32xf32, #tpu.memory_space<vmem>>, vector<2x32xf32>
    %c0_283 = arith.constant 0 : index
    %c0_284 = arith.constant 0 : index
    %648 = vector.load %arg8[%c0_283, %c0_284] : memref<2x32xf32, #tpu.memory_space<vmem>>, vector<2x32xf32>
    %c7_285 = arith.constant 7 : index
    %c0_286 = arith.constant 0 : index
    %c0_287 = arith.constant 0 : index
    %649 = vector.load %arg2[%c7_285, %c0_286, %c0_287] : memref<8x2x128xbf16, #tpu.memory_space<vmem>>, vector<1x2x128xbf16>
    %650 = vector.shape_cast %649 : vector<1x2x128xbf16> to vector<2x128xbf16>
    %651 = arith.extf %650 : vector<2x128xbf16> to vector<2x128xf32>
    %652 = arith.truncf %647 : vector<2x32xf32> to vector<2x32xbf16>
    %cst_288 = arith.constant dense<0.000000e+00> : vector<2x128xf32>
    %653 = tpu.matmul %652, %5, %cst_288 {dimension_numbers = #tpu.dot_dimension_numbers<[1], [0], [0], [1], [0, 0, 1, 1], [], []>} : vector<2x32xbf16>, vector<32x128xbf16>, vector<2x128xf32> -> vector<2x128xf32>
    %654 = arith.addf %651, %653 : vector<2x128xf32>
    %655 = vector.extract_strided_slice %654 {offsets = [0, 0], sizes = [2, 96], strides = [1, 1]} : vector<2x128xf32> to vector<2x96xf32>
    %cst_289 = arith.constant 5.000000e-01 : f32
    %656 = vector.broadcast %cst_289 : f32 to vector<2x96xf32>
    %657 = arith.mulf %656, %655 : vector<2x96xf32>
    %658 = math.tanh %657 : vector<2x96xf32>
    %cst_290 = arith.constant 1.000000e+00 : f32
    %659 = vector.broadcast %cst_290 : f32 to vector<2x96xf32>
    %660 = arith.addf %658, %659 : vector<2x96xf32>
    %cst_291 = arith.constant 5.000000e-01 : f32
    %661 = vector.broadcast %cst_291 : f32 to vector<2x96xf32>
    %662 = arith.mulf %661, %660 : vector<2x96xf32>
    %663 = vector.extract_strided_slice %662 {offsets = [0, 0], sizes = [2, 32], strides = [1, 1]} : vector<2x96xf32> to vector<2x32xf32>
    %664 = vector.extract_strided_slice %662 {offsets = [0, 32], sizes = [2, 32], strides = [1, 1]} : vector<2x96xf32> to vector<2x32xf32>
    %665 = vector.extract_strided_slice %662 {offsets = [0, 64], sizes = [2, 32], strides = [1, 1]} : vector<2x96xf32> to vector<2x32xf32>
    %666 = vector.extract_strided_slice %654 {offsets = [0, 96], sizes = [2, 32], strides = [1, 1]} : vector<2x128xf32> to vector<2x32xf32>
    %667 = math.tanh %666 : vector<2x32xf32>
    %668 = arith.mulf %664, %648 : vector<2x32xf32>
    %669 = arith.mulf %663, %667 : vector<2x32xf32>
    %670 = arith.addf %668, %669 : vector<2x32xf32>
    %671 = math.tanh %670 : vector<2x32xf32>
    %672 = arith.mulf %665, %671 : vector<2x32xf32>
    %673 = vector.broadcast %646 : i32 to vector<2x1xi32>
    %674 = arith.cmpi slt, %673, %3 : vector<2x1xi32>
    %675 = vector.shape_cast %674 : vector<2x1xi1> to vector<2x1xi1>
    %676 = vector.broadcast %675 : vector<2x1xi1> to vector<2x32xi1>
    %677 = arith.select %676, %672, %647 : vector<2x32xi1>, vector<2x32xf32>
    %c0_292 = arith.constant 0 : index
    %c0_293 = arith.constant 0 : index
    %678 = vector.load %arg7[%c0_292, %c0_293] : memref<2x32xf32, #tpu.memory_space<vmem>>, vector<2x32xf32>
    tpu.vector_store %arg7[%c0_292, %c0_293], %677 {strides = array<i32>} : memref<2x32xf32, #tpu.memory_space<vmem>>, vector<2x32xf32>,
    %679 = vector.shape_cast %674 : vector<2x1xi1> to vector<2x1xi1>
    %680 = vector.broadcast %679 : vector<2x1xi1> to vector<2x32xi1>
    %681 = arith.select %680, %670, %648 : vector<2x32xi1>, vector<2x32xf32>
    %c0_294 = arith.constant 0 : index
    %c0_295 = arith.constant 0 : index
    %682 = vector.load %arg8[%c0_294, %c0_295] : memref<2x32xf32, #tpu.memory_space<vmem>>, vector<2x32xf32>
    tpu.vector_store %arg8[%c0_294, %c0_295], %681 {strides = array<i32>} : memref<2x32xf32, #tpu.memory_space<vmem>>, vector<2x32xf32>,
    %cst_296 = arith.constant 0.000000e+00 : f32
    %683 = vector.shape_cast %674 : vector<2x1xi1> to vector<2x1xi1>
    %684 = vector.broadcast %683 : vector<2x1xi1> to vector<2x32xi1>
    %685 = vector.broadcast %cst_296 : f32 to vector<2x32xf32>
    %686 = arith.select %684, %672, %685 : vector<2x32xi1>, vector<2x32xf32>
    %687 = arith.truncf %686 : vector<2x32xf32> to vector<2x32xbf16>
    %c7_297 = arith.constant 7 : index
    %c0_298 = arith.constant 0 : index
    %c0_299 = arith.constant 0 : index
    %688 = vector.load %arg5[%c7_297, %c0_298, %c0_299] : memref<8x2x32xbf16, #tpu.memory_space<vmem>>, vector<1x2x32xbf16>
    %689 = vector.shape_cast %688 : vector<1x2x32xbf16> to vector<2x32xbf16>
    %690 = vector.shape_cast %687 : vector<2x32xbf16> to vector<1x2x32xbf16>
    tpu.vector_store %arg5[%c7_297, %c0_298, %c0_299], %690 {strides = array<i32>} : memref<8x2x32xbf16, #tpu.memory_space<vmem>>, vector<1x2x32xbf16>,
    %c7_i32_300 = arith.constant 7 : i32
    %691 = arith.subi %c7_i32_300, %646 : i32
    %c0_301 = arith.constant 0 : index
    %c0_302 = arith.constant 0 : index
    %692 = vector.load %arg9[%c0_301, %c0_302] : memref<2x32xf32, #tpu.memory_space<vmem>>, vector<2x32xf32>
    %c0_303 = arith.constant 0 : index
    %c0_304 = arith.constant 0 : index
    %693 = vector.load %arg10[%c0_303, %c0_304] : memref<2x32xf32, #tpu.memory_space<vmem>>, vector<2x32xf32>
    %c0_305 = arith.constant 0 : index
    %c0_306 = arith.constant 0 : index
    %c0_307 = arith.constant 0 : index
    %694 = vector.load %arg3[%c0_305, %c0_306, %c0_307] : memref<8x2x128xbf16, #tpu.memory_space<vmem>>, vector<1x2x128xbf16>
    %695 = vector.shape_cast %694 : vector<1x2x128xbf16> to vector<2x128xbf16>
    %696 = arith.extf %695 : vector<2x128xbf16> to vector<2x128xf32>
    %697 = arith.truncf %692 : vector<2x32xf32> to vector<2x32xbf16>
    %cst_308 = arith.constant dense<0.000000e+00> : vector<2x128xf32>
    %698 = tpu.matmul %697, %7, %cst_308 {dimension_numbers = #tpu.dot_dimension_numbers<[1], [0], [0], [1], [0, 0, 1, 1], [], []>} : vector<2x32xbf16>, vector<32x128xbf16>, vector<2x128xf32> -> vector<2x128xf32>
    %699 = arith.addf %696, %698 : vector<2x128xf32>
    %700 = vector.extract_strided_slice %699 {offsets = [0, 0], sizes = [2, 96], strides = [1, 1]} : vector<2x128xf32> to vector<2x96xf32>
    %cst_309 = arith.constant 5.000000e-01 : f32
    %701 = vector.broadcast %cst_309 : f32 to vector<2x96xf32>
    %702 = arith.mulf %701, %700 : vector<2x96xf32>
    %703 = math.tanh %702 : vector<2x96xf32>
    %cst_310 = arith.constant 1.000000e+00 : f32
    %704 = vector.broadcast %cst_310 : f32 to vector<2x96xf32>
    %705 = arith.addf %703, %704 : vector<2x96xf32>
    %cst_311 = arith.constant 5.000000e-01 : f32
    %706 = vector.broadcast %cst_311 : f32 to vector<2x96xf32>
    %707 = arith.mulf %706, %705 : vector<2x96xf32>
    %708 = vector.extract_strided_slice %707 {offsets = [0, 0], sizes = [2, 32], strides = [1, 1]} : vector<2x96xf32> to vector<2x32xf32>
    %709 = vector.extract_strided_slice %707 {offsets = [0, 32], sizes = [2, 32], strides = [1, 1]} : vector<2x96xf32> to vector<2x32xf32>
    %710 = vector.extract_strided_slice %707 {offsets = [0, 64], sizes = [2, 32], strides = [1, 1]} : vector<2x96xf32> to vector<2x32xf32>
    %711 = vector.extract_strided_slice %699 {offsets = [0, 96], sizes = [2, 32], strides = [1, 1]} : vector<2x128xf32> to vector<2x32xf32>
    %712 = math.tanh %711 : vector<2x32xf32>
    %713 = arith.mulf %709, %693 : vector<2x32xf32>
    %714 = arith.mulf %708, %712 : vector<2x32xf32>
    %715 = arith.addf %713, %714 : vector<2x32xf32>
    %716 = math.tanh %715 : vector<2x32xf32>
    %717 = arith.mulf %710, %716 : vector<2x32xf32>
    %718 = vector.broadcast %691 : i32 to vector<2x1xi32>
    %719 = arith.cmpi slt, %718, %3 : vector<2x1xi32>
    %720 = vector.shape_cast %719 : vector<2x1xi1> to vector<2x1xi1>
    %721 = vector.broadcast %720 : vector<2x1xi1> to vector<2x32xi1>
    %722 = arith.select %721, %717, %692 : vector<2x32xi1>, vector<2x32xf32>
    %c0_312 = arith.constant 0 : index
    %c0_313 = arith.constant 0 : index
    %723 = vector.load %arg9[%c0_312, %c0_313] : memref<2x32xf32, #tpu.memory_space<vmem>>, vector<2x32xf32>
    tpu.vector_store %arg9[%c0_312, %c0_313], %722 {strides = array<i32>} : memref<2x32xf32, #tpu.memory_space<vmem>>, vector<2x32xf32>,
    %724 = vector.shape_cast %719 : vector<2x1xi1> to vector<2x1xi1>
    %725 = vector.broadcast %724 : vector<2x1xi1> to vector<2x32xi1>
    %726 = arith.select %725, %715, %693 : vector<2x32xi1>, vector<2x32xf32>
    %c0_314 = arith.constant 0 : index
    %c0_315 = arith.constant 0 : index
    %727 = vector.load %arg10[%c0_314, %c0_315] : memref<2x32xf32, #tpu.memory_space<vmem>>, vector<2x32xf32>
    tpu.vector_store %arg10[%c0_314, %c0_315], %726 {strides = array<i32>} : memref<2x32xf32, #tpu.memory_space<vmem>>, vector<2x32xf32>,
    %cst_316 = arith.constant 0.000000e+00 : f32
    %728 = vector.shape_cast %719 : vector<2x1xi1> to vector<2x1xi1>
    %729 = vector.broadcast %728 : vector<2x1xi1> to vector<2x32xi1>
    %730 = vector.broadcast %cst_316 : f32 to vector<2x32xf32>
    %731 = arith.select %729, %717, %730 : vector<2x32xi1>, vector<2x32xf32>
    %732 = arith.truncf %731 : vector<2x32xf32> to vector<2x32xbf16>
    %c0_317 = arith.constant 0 : index
    %c0_318 = arith.constant 0 : index
    %c0_319 = arith.constant 0 : index
    %733 = vector.load %arg6[%c0_317, %c0_318, %c0_319] : memref<8x2x32xbf16, #tpu.memory_space<vmem>>, vector<1x2x32xbf16>
    %734 = vector.shape_cast %733 : vector<1x2x32xbf16> to vector<2x32xbf16>
    %735 = vector.shape_cast %732 : vector<2x32xbf16> to vector<1x2x32xbf16>
    tpu.vector_store %arg6[%c0_317, %c0_318, %c0_319], %735 {strides = array<i32>} : memref<8x2x32xbf16, #tpu.memory_space<vmem>>, vector<1x2x32xbf16>,
    return
  }
  func.func @transform_0(%arg0: i32) -> (i32, i32) {
    %c0_i32 = arith.constant 0 : i32
    %c0_i32_0 = arith.constant 0 : i32
    %c0_i32_1 = arith.constant 0 : i32
    return %c0_i32, %c0_i32_0 : i32, i32
  }
  func.func @transform_1(%arg0: i32) -> (i32, i32, i32) {
    %c0_i32 = arith.constant 0 : i32
    %c0_i32_0 = arith.constant 0 : i32
    %c0_i32_1 = arith.constant 0 : i32
    return %arg0, %c0_i32, %c0_i32_0 : i32, i32, i32
  }
  func.func @transform_2(%arg0: i32) -> (i32, i32, i32) {
    %c0_i32 = arith.constant 0 : i32
    %0 = arith.subi %c0_i32, %arg0 : i32
    %c0_i32_0 = arith.constant 0 : i32
    %c0_i32_1 = arith.constant 0 : i32
    %c0_i32_2 = arith.constant 0 : i32
    return %0, %c0_i32_0, %c0_i32_1 : i32, i32, i32
  }
  func.func @transform_3(%arg0: i32) -> (i32, i32, i32) {
    %c0_i32 = arith.constant 0 : i32
    %c0_i32_0 = arith.constant 0 : i32
    %c0_i32_1 = arith.constant 0 : i32
    %c0_i32_2 = arith.constant 0 : i32
    return %c0_i32, %c0_i32_0, %c0_i32_1 : i32, i32, i32
  }
  func.func @transform_4(%arg0: i32) -> (i32, i32, i32) {
    %c0_i32 = arith.constant 0 : i32
    %c0_i32_0 = arith.constant 0 : i32
    %c0_i32_1 = arith.constant 0 : i32
    return %arg0, %c0_i32, %c0_i32_0 : i32, i32, i32
  }
  func.func @transform_5(%arg0: i32) -> (i32, i32, i32) {
    %c0_i32 = arith.constant 0 : i32
    %0 = arith.subi %c0_i32, %arg0 : i32
    %c0_i32_0 = arith.constant 0 : i32
    %c0_i32_1 = arith.constant 0 : i32
    %c0_i32_2 = arith.constant 0 : i32
    return %0, %c0_i32_0, %c0_i32_1 : i32, i32, i32
  }
}

</mosaic_0001>

<llo_original>
// kernel: tpu_custom_call.1
$region0: #{tpu_custom_call.1}
  #allocation0 [shape = 'u32[]', space=smem, size = 0x4, offset = 0x4, fixed_abs, tag = 'smem constant byte address 0x4 - core index']
  #allocation1 [shape = 'u32[144,128]{1,0:T(1,128)}', space=vmem, size = 0x12000, scoped, tag = 'internal scratch']
  #allocation2 [shape = 'f32[2,32]{1,0:T(2,128)}', space=vmem, size = 0x400, scoped, tag = 'scratch operand']
  #allocation3 [shape = 'f32[2,32]{1,0:T(2,128)}', space=vmem, size = 0x400, scoped, tag = 'scratch operand']
  #allocation4 [shape = 'f32[2,32]{1,0:T(2,128)}', space=vmem, size = 0x400, scoped, tag = 'scratch operand']
  #allocation5 [shape = 'f32[2,32]{1,0:T(2,128)}', space=vmem, size = 0x400, scoped, tag = 'scratch operand']
  %s0 = inlined_call_operand.vmem [shape: s32[2,1], index: 0, kind: input, shape index: {}]
  %s1 = inlined_call_operand.hbm [shape: bf16[8,2,128], index: 1, kind: input, shape index: {}]
  %s2 = inlined_call_operand.vmem [shape: bf16[8,2,128], index: 2, kind: input, shape index: {}]
  %s3 = inlined_call_operand.hbm [shape: bf16[2,32,128], index: 3, kind: input, shape index: {}]
  %s4 = inlined_call_operand.hbm [shape: bf16[8,2,32], index: 4, kind: output, shape index: {0}]
  %s5 = inlined_call_operand.hbm [shape: bf16[8,2,32], index: 5, kind: output, shape index: {1}]
  %6 = xla_tuple %s4, %s5
  %s7 = sld [smem:[#allocation0]]
  $region46: #{tpu_custom_call.1} parent=0
    _
  %s9 = ssub.s32 1, %s7
  %s10 = scalar_select 0, %s9, %s7
  $region1: #{tpu_custom_call.1} parent=0
    #allocation6 [shape = 'u8[4096]{0}', space=vmem, size = 0x1000, scoped, tag = 'input window, operand 1, single buffered']
    #allocation7 [shape = 's32[1]{0}', space=sflag, size = 0x4, scoped, tag = 'scoped memory for tpu_custom_call.1']
    #allocation8 [shape = 's32[1]{0}', space=sflag, size = 0x4, scoped, tag = 'scoped memory for tpu_custom_call.1']
    #allocation9 [shape = 'u8[16384]{0}', space=vmem, size = 0x4000, scoped, tag = 'input window, operand 3, single buffered']
    #allocation10 [shape = 's32[1]{0}', space=sflag, size = 0x4, scoped, tag = 'scoped memory for tpu_custom_call.1']
    #allocation11 [shape = 'u8[4096]{0}', space=vmem, size = 0x1000, scoped, tag = 'output window, operand 0, single buffered']
    #allocation12 [shape = 'u8[4096]{0}', space=vmem, size = 0x1000, scoped, tag = 'output window, operand 1, single buffered']
    #allocation13 [shape = 's32[1]{0}', space=sflag, size = 0x4, scoped, tag = 'scoped memory for tpu_custom_call.1']
    %11 = vsyncpa [#allocation7], 0
    %12 = vsyncpa [#allocation10], 0
    %13 = vsyncpa [#allocation8], 0
    %14 = vsyncpa [#allocation13], 0
    // Predicated region
    $region2: #{tpu_custom_call.1} parent=1 // pred_check
      _
    $region3: #{tpu_custom_call.1} parent=1 // pred_check_branch
      %16 = sbr.rel (0) target = $region5
    $region4: #{tpu_custom_call.1} parent=1 // pred_region
      _
    $region5: #{tpu_custom_call.1} parent=1 // pred_fallthru
      _
    // Predicated region
    $region6: #{tpu_custom_call.1} parent=1 // pred_check
      _
    $region7: #{tpu_custom_call.1} parent=1 // pred_check_branch
      %18 = sbr.rel (0) target = $region9
    $region8: #{tpu_custom_call.1} parent=1 // pred_region
      %s20 = ssub.s32 128, 128
      %21 = vsyncadd [#allocation7], %s20
      %s22 = sshll.u32 [#allocation6], 4
      %s23 = int_to_ptr.vmem [resolvable:$true] %s22
      %28 = dma.hbm_to_vmem [thread:$0]  %s1, 128, %s23, [#allocation7], 16, 16, 1
    $region9: #{tpu_custom_call.1} parent=1 // pred_fallthru
      _
    // Predicated region
    $region10: #{tpu_custom_call.1} parent=1 // pred_check
      _
    $region11: #{tpu_custom_call.1} parent=1 // pred_check_branch
      %30 = sbr.rel (0) target = $region13
    $region12: #{tpu_custom_call.1} parent=1 // pred_region
      %s31 = ssub.s32 0, 0
      %s32 = smul.u32 8, %s31
      %p33 = scmp.lt.s32.totalorder %s32, 7
      %s34 = scalar_select %p33, %s32, 7
      %s35 = scalar_lea.vmem %s2, %s34
      %s36 = ssub.s32 0, 0
      %s37 = smul.u32 8, %s36
    $region13: #{tpu_custom_call.1} parent=1 // pred_fallthru
      _
    // Predicated region
    $region14: #{tpu_custom_call.1} parent=1 // pred_check
      _
    $region15: #{tpu_custom_call.1} parent=1 // pred_check_branch
      %39 = sbr.rel (0) target = $region17
    $region16: #{tpu_custom_call.1} parent=1 // pred_region
      %s41 = ssub.s32 512, 512
      %42 = vsyncadd [#allocation10], %s41
      %s43 = sshll.u32 [#allocation9], 4
      %s44 = int_to_ptr.vmem [resolvable:$true] %s43
      %49 = dma.hbm_to_vmem [thread:$0]  %s3, 512, %s44, [#allocation10], 64, 64, 4
    $region17: #{tpu_custom_call.1} parent=1 // pred_fallthru
      _
    // Predicated region
    $region18: #{tpu_custom_call.1} parent=1 // pred_check
      _
    $region19: #{tpu_custom_call.1} parent=1 // pred_check_branch
      %51 = sbr.rel (0) target = $region21
    $region20: #{tpu_custom_call.1} parent=1 // pred_region
      %52 = dma.done [#allocation7], 128
    $region21: #{tpu_custom_call.1} parent=1 // pred_fallthru
      _
    // Predicated region
    $region22: #{tpu_custom_call.1} parent=1 // pred_check
      _
    $region23: #{tpu_custom_call.1} parent=1 // pred_check_branch
      %54 = sbr.rel (0) target = $region25
    $region24: #{tpu_custom_call.1} parent=1 // pred_region
      %55 = dma.done [#allocation10], 512
    $region25: #{tpu_custom_call.1} parent=1 // pred_fallthru
      _
    %s56 = ssub.s32 0, 0
    %s57 = smul.u32 8, %s56
    %p58 = scmp.lt.s32.totalorder %s57, 7
    %s59 = scalar_select %p58, %s57, 7
    %s60 = scalar_lea.vmem %s2, %s59
    %s61 = ssub.s32 0, 0
    %s62 = smul.u32 8, %s61
    %p63 = scmp.lt.s32.totalorder %s62, 7
    %s64 = scalar_select %p63, %s62, 7
    %s65 = scalar_lea.vmem %s2, %s64
    %s66 = ssub.s32 0, 0
    %s67 = smul.u32 8, %s66
    %s68 = ssub.s32 0, 0
    %s69 = smul.u32 8, %s68
    %p71 = scmp.eq.s32.totalorder 0, 0
    // Predicated region
    $region26: #{tpu_custom_call.1} parent=1 // pred_check
      %p72 = pneg %p71
    $region27: #{tpu_custom_call.1} parent=1 // pred_check_branch
      %74 = sbr.rel (%p72) target = $region29
    $region28: #{tpu_custom_call.1} parent=1 // pred_region
      %vm75 = vcmask 254976
      %76 = vst.msk [vmem:[#allocation2] sm:$0x3] %vm75, 0.0
      %77 = vst.msk [vmem:[#allocation3] sm:$0x3] %vm75, 0.0
      %78 = vst.msk [vmem:[#allocation4] sm:$0x3] %vm75, 0.0
      %79 = vst.msk [vmem:[#allocation5] sm:$0x3] %vm75, 0.0
    $region29: #{tpu_custom_call.1} parent=1 // pred_fallthru
      _
    %v80 = vld [vmem:[%s0] sm:$0x3]
    %v81 = vld [vmem:[#allocation9] sm:$0xf]
    %v82 = vld [vmem:[#allocation9 + $0x4] sm:$0xf]
    %v83 = vld [vmem:[#allocation9 + $0x8] sm:$0xf]
    %v84 = vld [vmem:[#allocation9 + $0xc] sm:$0xf]
    %s85 = scalar_lea.vmem [#allocation9], 16
    %v86 = vld [vmem:[%s85] sm:$0xf]
    %v87 = vld [vmem:[%s85 + $0x4] sm:$0xf]
    %v88 = vld [vmem:[%s85 + $0x8] sm:$0xf]
    %v89 = vld [vmem:[%s85 + $0xc] sm:$0xf]
    %s90 = smul.u32 0, 8
    %v91 = vld [vmem:[#allocation2] sm:$0x3]
    %v92 = vld [vmem:[#allocation3] sm:$0x3]
    %v93 = vld [vmem:[#allocation6] sm:$0x1]
    %v94 = vunpack.c.l.bf16 %v93
    %v95 = vpack.c.bf16 %v91, %v91
    %v100 = vunpack.c.l.b16 %v81
    %v101 = vunpack.c.l.b16 %v82
    %v102 = vunpack.c.l.b16 %v83
    %v103 = vunpack.c.l.b16 %v84
    %v104 = vpack.c.b16 %v101, %v100
    %v105 = vpack.c.b16 %v103, %v102
    %vm108 = vcmask 261120
    %v110 = vsel %vm108, %v95, 0
    %112 = vmatprep.subr.bf16.mxu0 0
    %113 = vmatpush1.bf16.msra.mxu0 %v104
    %114 = vmatprep.subr.bf16.mxu0 0
    %115 = vmatpush1.bf16.msra.mxu0 %v105
    %116 = vmatprep.subr.bf16.mxu0 0
    %117 = vmatpush1.bf16.msra.mxu0 0
    %118 = vmatprep.subr.bf16.mxu0 0
    %119 = vmatpush1.bf16.msra.mxu0 0
    %120 = vmatprep.subr.bf16.mxu0 0
    %121 = vmatpush1.bf16.msra.mxu0 0
    %122 = vmatprep.subr.bf16.mxu0 0
    %123 = vmatpush1.bf16.msra.mxu0 0
    %124 = vmatprep.subr.bf16.mxu0 0
    %125 = vmatpush1.bf16.msra.mxu0 0
    %126 = vmatprep.subr.bf16.mxu0 0
    %127 = vmatpush1.bf16.msra.mxu0 0
    %128 = vmatprep.subr.bf16.mxu0 0
    %129 = vmatpush1.bf16.msra.mxu0 0
    %130 = vmatprep.subr.bf16.mxu0 0
    %131 = vmatpush1.bf16.msra.mxu0 0
    %132 = vmatprep.subr.bf16.mxu0 0
    %133 = vmatpush1.bf16.msra.mxu0 0
    %134 = vmatprep.subr.bf16.mxu0 0
    %135 = vmatpush1.bf16.msra.mxu0 0
    %136 = vmatprep.subr.bf16.mxu0 0
    %137 = vmatpush1.bf16.msra.mxu0 0
    %138 = vmatprep.subr.bf16.mxu0 0
    %139 = vmatpush1.bf16.msra.mxu0 0
    %140 = vmatprep.subr.bf16.mxu0 0
    %141 = vmatpush1.bf16.msra.mxu0 0
    %142 = vmatprep.subr.bf16.mxu0 0
    %143 = vmatpush1.bf16.msra.mxu0 0
    %144 = vmatprep.mubr.bf16.mxu0 0
    %145 = vmatmul.mubr.bf16.gmra.mrb[0].mxu0 %v110
    %v146 = vpop.f32.mrb[0].mxu0
    %v147 = vadd.f32 0.0, %v146
    %v148 = vpop.f32.mrb[0].mxu0
    %v149 = vpop.f32.mrb[0].mxu0
    %v150 = vpop.f32.mrb[0].mxu0
    %151 = vdwg.mxu0
    %v152 = vadd.f32 %v94, %v147
    %v153 = vmul.f32 %v152, 0.5
    %v154 = vtanh.pop %v153
    %v155 = vadd.f32 %v154, 1.0
    %v156 = vmul.f32 %v155, 0.5
    %v157 = vtanh.pop %v152
    %v160 = vunpack.c.l.s4 1983009808
    %v161 = vunpack.c.0.s8 %v160
    %v162 = vlaneseq
    %v163 = vshrl.u32 %v162, 7
    %v164 = vsub.s32 %v161, %v163
    %v165 = vrot.slane %v92, %v164
    %166 = vrot.lane.b32.xlu0 %v165, 32
    %v167 = vpop.permute.xlu0 %166
    %v169 = vmul.f32 %v156, %v167
    %171 = vrot.lane.b32.xlu0 %v157, 32
    %v172 = vpop.permute.xlu0 %171
    %v174 = vmul.f32 %v156, %v172
    %176 = vrot.lane.b32.xlu0 %v174, 32
    %v177 = vpop.permute.xlu0 %176
    %v179 = vadd.f32 %v169, %v177
    %v180 = vtanh.pop %v179
    %182 = vrot.lane.b32.xlu0 %v180, 32
    %v183 = vpop.permute.xlu0 %182
    %v185 = vmul.f32 %v156, %v183
    %v186 = vstv %s90
    %vm187 = vcmp.lt.s32.totalorder %v186, %v80
    %v188 = vsel %vm187, 1, 0
    %189 = vset.pattern.permute.xlu0 0
    %190 = vperm.xlu0 %189, %v188
    %v191 = vpop.permute.xlu0 %190
    %vm192 = vcmp.eq.s32.totalorder %v191, 1
    %v195 = vunpack.c.l.s4 1983009808
    %v196 = vunpack.c.0.s8 %v195
    %v197 = vlaneseq
    %v198 = vshrl.u32 %v197, 7
    %v199 = vsub.s32 %v196, %v198
    %v200 = vrot.slane %v185, %v199
    %201 = vrot.lane.b32.xlu0 %v200, 64
    %v202 = vpop.permute.xlu0 %201
    %v204 = vsel %vm192, %v202, %v91
    %vm205 = vcmask 254976
    %206 = vst.msk [vmem:[#allocation2] sm:$0x3] %vm205, %v204
    %v209 = vunpack.c.l.s4 1983009808
    %v210 = vunpack.c.0.s8 %v209
    %v211 = vlaneseq
    %v212 = vshrl.u32 %v211, 7
    %v213 = vsub.s32 %v210, %v212
    %v214 = vrot.slane %v179, %v213
    %215 = vrot.lane.b32.xlu0 %v214, 96
    %v216 = vpop.permute.xlu0 %215
    %v218 = vsel %vm192, %v216, %v92
    %219 = vst.msk [vmem:[#allocation3] sm:$0x3] %vm205, %v218
    %v220 = vsel %vm192, %v202, 0.0
    %v221 = vpack.c.bf16 %v220, %v220
    %vm222 = vcmask 253952
    %223 = vst.msk [vmem:[#allocation11] sm:$0x1] %vm222, %v221
    %s224 = ssub.s32 7, %s90
    %v225 = vld [vmem:[#allocation4] sm:$0x3]
    %v226 = vld [vmem:[#allocation5] sm:$0x3]
    %s227 = scalar_lea.vmem %s65, 7
    %v228 = vld [vmem:[%s227] sm:$0x1]
    %v229 = vunpack.c.l.bf16 %v228
    %v230 = vpack.c.bf16 %v225, %v225
    %v235 = vunpack.c.l.b16 %v86
    %v236 = vunpack.c.l.b16 %v87
    %v237 = vunpack.c.l.b16 %v88
    %v238 = vunpack.c.l.b16 %v89
    %v239 = vpack.c.b16 %v236, %v235
    %v240 = vpack.c.b16 %v238, %v237
    %v244 = vsel %vm108, %v230, 0
    %246 = vmatprep.subr.bf16.mxu0 0
    %247 = vmatpush1.bf16.msra.mxu0 %v239
    %248 = vmatprep.subr.bf16.mxu0 0
    %249 = vmatpush1.bf16.msra.mxu0 %v240
    %250 = vmatprep.subr.bf16.mxu0 0
    %251 = vmatpush1.bf16.msra.mxu0 0
    %252 = vmatprep.subr.bf16.mxu0 0
    %253 = vmatpush1.bf16.msra.mxu0 0
    %254 = vmatprep.subr.bf16.mxu0 0
    %255 = vmatpush1.bf16.msra.mxu0 0
    %256 = vmatprep.subr.bf16.mxu0 0
    %257 = vmatpush1.bf16.msra.mxu0 0
    %258 = vmatprep.subr.bf16.mxu0 0
    %259 = vmatpush1.bf16.msra.mxu0 0
    %260 = vmatprep.subr.bf16.mxu0 0
    %261 = vmatpush1.bf16.msra.mxu0 0
    %262 = vmatprep.subr.bf16.mxu0 0
    %263 = vmatpush1.bf16.msra.mxu0 0
    %264 = vmatprep.subr.bf16.mxu0 0
    %265 = vmatpush1.bf16.msra.mxu0 0
    %266 = vmatprep.subr.bf16.mxu0 0
    %267 = vmatpush1.bf16.msra.mxu0 0
    %268 = vmatprep.subr.bf16.mxu0 0
    %269 = vmatpush1.bf16.msra.mxu0 0
    %270 = vmatprep.subr.bf16.mxu0 0
    %271 = vmatpush1.bf16.msra.mxu0 0
    %272 = vmatprep.subr.bf16.mxu0 0
    %273 = vmatpush1.bf16.msra.mxu0 0
    %274 = vmatprep.subr.bf16.mxu0 0
    %275 = vmatpush1.bf16.msra.mxu0 0
    %276 = vmatprep.subr.bf16.mxu0 0
    %277 = vmatpush1.bf16.msra.mxu0 0
    %278 = vmatprep.mubr.bf16.mxu0 0
    %279 = vmatmul.mubr.bf16.gmra.mrb[0].mxu0 %v244
    %v280 = vpop.f32.mrb[0].mxu0
    %v281 = vadd.f32 0.0, %v280
    %v282 = vpop.f32.mrb[0].mxu0
    %v283 = vpop.f32.mrb[0].mxu0
    %v284 = vpop.f32.mrb[0].mxu0
    %285 = vdwg.mxu0
    %v286 = vadd.f32 %v229, %v281
    %v287 = vmul.f32 %v286, 0.5
    %v288 = vtanh.pop %v287
    %v289 = vadd.f32 %v288, 1.0
    %v290 = vmul.f32 %v289, 0.5
    %v291 = vtanh.pop %v286
    %v294 = vunpack.c.l.s4 1983009808
    %v295 = vunpack.c.0.s8 %v294
    %v296 = vlaneseq
    %v297 = vshrl.u32 %v296, 7
    %v298 = vsub.s32 %v295, %v297
    %v299 = vrot.slane %v226, %v298
    %300 = vrot.lane.b32.xlu0 %v299, 32
    %v301 = vpop.permute.xlu0 %300
    %v303 = vmul.f32 %v290, %v301
    %305 = vrot.lane.b32.xlu0 %v291, 32
    %v306 = vpop.permute.xlu0 %305
    %v308 = vmul.f32 %v290, %v306
    %310 = vrot.lane.b32.xlu0 %v308, 32
    %v311 = vpop.permute.xlu0 %310
    %v313 = vadd.f32 %v303, %v311
    %v314 = vtanh.pop %v313
    %316 = vrot.lane.b32.xlu0 %v314, 32
    %v317 = vpop.permute.xlu0 %316
    %v319 = vmul.f32 %v290, %v317
    %v320 = vstv %s224
    %vm321 = vcmp.lt.s32.totalorder %v320, %v80
    %v322 = vsel %vm321, 1, 0
    %323 = vset.pattern.permute.xlu0 0
    %324 = vperm.xlu0 %323, %v322
    %v325 = vpop.permute.xlu0 %324
    %vm326 = vcmp.eq.s32.totalorder %v325, 1
    %v329 = vunpack.c.l.s4 1983009808
    %v330 = vunpack.c.0.s8 %v329
    %v331 = vlaneseq
    %v332 = vshrl.u32 %v331, 7
    %v333 = vsub.s32 %v330, %v332
    %v334 = vrot.slane %v319, %v333
    %335 = vrot.lane.b32.xlu0 %v334, 64
    %v336 = vpop.permute.xlu0 %335
    %v338 = vsel %vm326, %v336, %v225
    %339 = vst.msk [vmem:[#allocation4] sm:$0x3] %vm205, %v338
    %v342 = vunpack.c.l.s4 1983009808
    %v343 = vunpack.c.0.s8 %v342
    %v344 = vlaneseq
    %v345 = vshrl.u32 %v344, 7
    %v346 = vsub.s32 %v343, %v345
    %v347 = vrot.slane %v313, %v346
    %348 = vrot.lane.b32.xlu0 %v347, 96
    %v349 = vpop.permute.xlu0 %348
    %v351 = vsel %vm326, %v349, %v226
    %352 = vst.msk [vmem:[#allocation5] sm:$0x3] %vm205, %v351
    %v353 = vsel %vm326, %v336, 0.0
    %v354 = vpack.c.bf16 %v353, %v353
    %s355 = scalar_lea.vmem [#allocation12], 7
    %356 = vst.msk [vmem:[%s355] sm:$0x1] %vm222, %v354
    %s357 = sadd.s32 %s90, 1
    %v358 = vld [vmem:[#allocation2] sm:$0x3]
    %v359 = vld [vmem:[#allocation3] sm:$0x3]
    %s360 = scalar_lea.vmem [#allocation6], 1
    %v361 = vld [vmem:[%s360] sm:$0x1]
    %v362 = vunpack.c.l.bf16 %v361
    %v363 = vpack.c.bf16 %v358, %v358
    %v365 = vsel %vm108, %v363, 0
    %367 = vmatprep.subr.bf16.mxu0 0
    %368 = vmatpush1.bf16.msra.mxu0 %v104
    %369 = vmatprep.subr.bf16.mxu0 0
    %370 = vmatpush1.bf16.msra.mxu0 %v105
    %371 = vmatprep.subr.bf16.mxu0 0
    %372 = vmatpush1.bf16.msra.mxu0 0
    %373 = vmatprep.subr.bf16.mxu0 0
    %374 = vmatpush1.bf16.msra.mxu0 0
    %375 = vmatprep.subr.bf16.mxu0 0
    %376 = vmatpush1.bf16.msra.mxu0 0
    %377 = vmatprep.subr.bf16.mxu0 0
    %378 = vmatpush1.bf16.msra.mxu0 0
    %379 = vmatprep.subr.bf16.mxu0 0
    %380 = vmatpush1.bf16.msra.mxu0 0
    %381 = vmatprep.subr.bf16.mxu0 0
    %382 = vmatpush1.bf16.msra.mxu0 0
    %383 = vmatprep.subr.bf16.mxu0 0
    %384 = vmatpush1.bf16.msra.mxu0 0
    %385 = vmatprep.subr.bf16.mxu0 0
    %386 = vmatpush1.bf16.msra.mxu0 0
    %387 = vmatprep.subr.bf16.mxu0 0
    %388 = vmatpush1.bf16.msra.mxu0 0
    %389 = vmatprep.subr.bf16.mxu0 0
    %390 = vmatpush1.bf16.msra.mxu0 0
    %391 = vmatprep.subr.bf16.mxu0 0
    %392 = vmatpush1.bf16.msra.mxu0 0
    %393 = vmatprep.subr.bf16.mxu0 0
    %394 = vmatpush1.bf16.msra.mxu0 0
    %395 = vmatprep.subr.bf16.mxu0 0
    %396 = vmatpush1.bf16.msra.mxu0 0
    %397 = vmatprep.subr.bf16.mxu0 0
    %398 = vmatpush1.bf16.msra.mxu0 0
    %399 = vmatprep.mubr.bf16.mxu0 0
    %400 = vmatmul.mubr.bf16.gmra.mrb[0].mxu0 %v365
    %v401 = vpop.f32.mrb[0].mxu0
    %v402 = vadd.f32 0.0, %v401
    %v403 = vpop.f32.mrb[0].mxu0
    %v404 = vpop.f32.mrb[0].mxu0
    %v405 = vpop.f32.mrb[0].mxu0
    %406 = vdwg.mxu0
    %v407 = vadd.f32 %v362, %v402
    %v408 = vmul.f32 %v407, 0.5
    %v409 = vtanh.pop %v408
    %v410 = vadd.f32 %v409, 1.0
    %v411 = vmul.f32 %v410, 0.5
    %v412 = vtanh.pop %v407
    %v415 = vunpack.c.l.s4 1983009808
    %v416 = vunpack.c.0.s8 %v415
    %v417 = vlaneseq
    %v418 = vshrl.u32 %v417, 7
    %v419 = vsub.s32 %v416, %v418
    %v420 = vrot.slane %v359, %v419
    %421 = vrot.lane.b32.xlu0 %v420, 32
    %v422 = vpop.permute.xlu0 %421
    %v424 = vmul.f32 %v411, %v422
    %426 = vrot.lane.b32.xlu0 %v412, 32
    %v427 = vpop.permute.xlu0 %426
    %v429 = vmul.f32 %v411, %v427
    %431 = vrot.lane.b32.xlu0 %v429, 32
    %v432 = vpop.permute.xlu0 %431
    %v434 = vadd.f32 %v424, %v432
    %v435 = vtanh.pop %v434
    %437 = vrot.lane.b32.xlu0 %v435, 32
    %v438 = vpop.permute.xlu0 %437
    %v440 = vmul.f32 %v411, %v438
    %v441 = vstv %s357
    %vm442 = vcmp.lt.s32.totalorder %v441, %v80
    %v443 = vsel %vm442, 1, 0
    %444 = vset.pattern.permute.xlu0 0
    %445 = vperm.xlu0 %444, %v443
    %v446 = vpop.permute.xlu0 %445
    %vm447 = vcmp.eq.s32.totalorder %v446, 1
    %v450 = vunpack.c.l.s4 1983009808
    %v451 = vunpack.c.0.s8 %v450
    %v452 = vlaneseq
    %v453 = vshrl.u32 %v452, 7
    %v454 = vsub.s32 %v451, %v453
    %v455 = vrot.slane %v440, %v454
    %456 = vrot.lane.b32.xlu0 %v455, 64
    %v457 = vpop.permute.xlu0 %456
    %v459 = vsel %vm447, %v457, %v358
    %460 = vst.msk [vmem:[#allocation2] sm:$0x3] %vm205, %v459
    %v463 = vunpack.c.l.s4 1983009808
    %v464 = vunpack.c.0.s8 %v463
    %v465 = vlaneseq
    %v466 = vshrl.u32 %v465, 7
    %v467 = vsub.s32 %v464, %v466
    %v468 = vrot.slane %v434, %v467
    %469 = vrot.lane.b32.xlu0 %v468, 96
    %v470 = vpop.permute.xlu0 %469
    %v472 = vsel %vm447, %v470, %v359
    %473 = vst.msk [vmem:[#allocation3] sm:$0x3] %vm205, %v472
    %v474 = vsel %vm447, %v457, 0.0
    %v475 = vpack.c.bf16 %v474, %v474
    %s476 = scalar_lea.vmem [#allocation11], 1
    %477 = vst.msk [vmem:[%s476] sm:$0x1] %vm222, %v475
    %s478 = ssub.s32 6, %s90
    %v479 = vld [vmem:[#allocation4] sm:$0x3]
    %v480 = vld [vmem:[#allocation5] sm:$0x3]
    %s481 = scalar_lea.vmem %s65, 6
    %v482 = vld [vmem:[%s481] sm:$0x1]
    %v483 = vunpack.c.l.bf16 %v482
    %v484 = vpack.c.bf16 %v479, %v479
    %v486 = vsel %vm108, %v484, 0
    %488 = vmatprep.subr.bf16.mxu0 0
    %489 = vmatpush1.bf16.msra.mxu0 %v239
    %490 = vmatprep.subr.bf16.mxu0 0
    %491 = vmatpush1.bf16.msra.mxu0 %v240
    %492 = vmatprep.subr.bf16.mxu0 0
    %493 = vmatpush1.bf16.msra.mxu0 0
    %494 = vmatprep.subr.bf16.mxu0 0
    %495 = vmatpush1.bf16.msra.mxu0 0
    %496 = vmatprep.subr.bf16.mxu0 0
    %497 = vmatpush1.bf16.msra.mxu0 0
    %498 = vmatprep.subr.bf16.mxu0 0
    %499 = vmatpush1.bf16.msra.mxu0 0
    %500 = vmatprep.subr.bf16.mxu0 0
    %501 = vmatpush1.bf16.msra.mxu0 0
    %502 = vmatprep.subr.bf16.mxu0 0
    %503 = vmatpush1.bf16.msra.mxu0 0
    %504 = vmatprep.subr.bf16.mxu0 0
    %505 = vmatpush1.bf16.msra.mxu0 0
    %506 = vmatprep.subr.bf16.mxu0 0
    %507 = vmatpush1.bf16.msra.mxu0 0
    %508 = vmatprep.subr.bf16.mxu0 0
    %509 = vmatpush1.bf16.msra.mxu0 0
    %510 = vmatprep.subr.bf16.mxu0 0
    %511 = vmatpush1.bf16.msra.mxu0 0
    %512 = vmatprep.subr.bf16.mxu0 0
    %513 = vmatpush1.bf16.msra.mxu0 0
    %514 = vmatprep.subr.bf16.mxu0 0
    %515 = vmatpush1.bf16.msra.mxu0 0
    %516 = vmatprep.subr.bf16.mxu0 0
    %517 = vmatpush1.bf16.msra.mxu0 0
    %518 = vmatprep.subr.bf16.mxu0 0
    %519 = vmatpush1.bf16.msra.mxu0 0
    %520 = vmatprep.mubr.bf16.mxu0 0
    %521 = vmatmul.mubr.bf16.gmra.mrb[0].mxu0 %v486
    %v522 = vpop.f32.mrb[0].mxu0
    %v523 = vadd.f32 0.0, %v522
    %v524 = vpop.f32.mrb[0].mxu0
    %v525 = vpop.f32.mrb[0].mxu0
    %v526 = vpop.f32.mrb[0].mxu0
    %527 = vdwg.mxu0
    %v528 = vadd.f32 %v483, %v523
    %v529 = vmul.f32 %v528, 0.5
    %v530 = vtanh.pop %v529
    %v531 = vadd.f32 %v530, 1.0
    %v532 = vmul.f32 %v531, 0.5
    %v533 = vtanh.pop %v528
    %v536 = vunpack.c.l.s4 1983009808
    %v537 = vunpack.c.0.s8 %v536
    %v538 = vlaneseq
    %v539 = vshrl.u32 %v538, 7
    %v540 = vsub.s32 %v537, %v539
    %v541 = vrot.slane %v480, %v540
    %542 = vrot.lane.b32.xlu0 %v541, 32
    %v543 = vpop.permute.xlu0 %542
    %v545 = vmul.f32 %v532, %v543
    %547 = vrot.lane.b32.xlu0 %v533, 32
    %v548 = vpop.permute.xlu0 %547
    %v550 = vmul.f32 %v532, %v548
    %552 = vrot.lane.b32.xlu0 %v550, 32
    %v553 = vpop.permute.xlu0 %552
    %v555 = vadd.f32 %v545, %v553
    %v556 = vtanh.pop %v555
    %558 = vrot.lane.b32.xlu0 %v556, 32
    %v559 = vpop.permute.xlu0 %558
    %v561 = vmul.f32 %v532, %v559
    %v562 = vstv %s478
    %vm563 = vcmp.lt.s32.totalorder %v562, %v80
    %v564 = vsel %vm563, 1, 0
    %565 = vset.pattern.permute.xlu0 0
    %566 = vperm.xlu0 %565, %v564
    %v567 = vpop.permute.xlu0 %566
    %vm568 = vcmp.eq.s32.totalorder %v567, 1
    %v571 = vunpack.c.l.s4 1983009808
    %v572 = vunpack.c.0.s8 %v571
    %v573 = vlaneseq
    %v574 = vshrl.u32 %v573, 7
    %v575 = vsub.s32 %v572, %v574
    %v576 = vrot.slane %v561, %v575
    %577 = vrot.lane.b32.xlu0 %v576, 64
    %v578 = vpop.permute.xlu0 %577
    %v580 = vsel %vm568, %v578, %v479
    %581 = vst.msk [vmem:[#allocation4] sm:$0x3] %vm205, %v580
    %v584 = vunpack.c.l.s4 1983009808
    %v585 = vunpack.c.0.s8 %v584
    %v586 = vlaneseq
    %v587 = vshrl.u32 %v586, 7
    %v588 = vsub.s32 %v585, %v587
    %v589 = vrot.slane %v555, %v588
    %590 = vrot.lane.b32.xlu0 %v589, 96
    %v591 = vpop.permute.xlu0 %590
    %v593 = vsel %vm568, %v591, %v480
    %594 = vst.msk [vmem:[#allocation5] sm:$0x3] %vm205, %v593
    %v595 = vsel %vm568, %v578, 0.0
    %v596 = vpack.c.bf16 %v595, %v595
    %s597 = scalar_lea.vmem [#allocation12], 6
    %598 = vst.msk [vmem:[%s597] sm:$0x1] %vm222, %v596
    %s599 = sadd.s32 %s90, 2
    %v600 = vld [vmem:[#allocation2] sm:$0x3]
    %v601 = vld [vmem:[#allocation3] sm:$0x3]
    %s602 = scalar_lea.vmem [#allocation6], 2
    %v603 = vld [vmem:[%s602] sm:$0x1]
    %v604 = vunpack.c.l.bf16 %v603
    %v605 = vpack.c.bf16 %v600, %v600
    %v607 = vsel %vm108, %v605, 0
    %609 = vmatprep.subr.bf16.mxu0 0
    %610 = vmatpush1.bf16.msra.mxu0 %v104
    %611 = vmatprep.subr.bf16.mxu0 0
    %612 = vmatpush1.bf16.msra.mxu0 %v105
    %613 = vmatprep.subr.bf16.mxu0 0
    %614 = vmatpush1.bf16.msra.mxu0 0
    %615 = vmatprep.subr.bf16.mxu0 0
    %616 = vmatpush1.bf16.msra.mxu0 0
    %617 = vmatprep.subr.bf16.mxu0 0
    %618 = vmatpush1.bf16.msra.mxu0 0
    %619 = vmatprep.subr.bf16.mxu0 0
    %620 = vmatpush1.bf16.msra.mxu0 0
    %621 = vmatprep.subr.bf16.mxu0 0
    %622 = vmatpush1.bf16.msra.mxu0 0
    %623 = vmatprep.subr.bf16.mxu0 0
    %624 = vmatpush1.bf16.msra.mxu0 0
    %625 = vmatprep.subr.bf16.mxu0 0
    %626 = vmatpush1.bf16.msra.mxu0 0
    %627 = vmatprep.subr.bf16.mxu0 0
    %628 = vmatpush1.bf16.msra.mxu0 0
    %629 = vmatprep.subr.bf16.mxu0 0
    %630 = vmatpush1.bf16.msra.mxu0 0
    %631 = vmatprep.subr.bf16.mxu0 0
    %632 = vmatpush1.bf16.msra.mxu0 0
    %633 = vmatprep.subr.bf16.mxu0 0
    %634 = vmatpush1.bf16.msra.mxu0 0
    %635 = vmatprep.subr.bf16.mxu0 0
    %636 = vmatpush1.bf16.msra.mxu0 0
    %637 = vmatprep.subr.bf16.mxu0 0
    %638 = vmatpush1.bf16.msra.mxu0 0
    %639 = vmatprep.subr.bf16.mxu0 0
    %640 = vmatpush1.bf16.msra.mxu0 0
    %641 = vmatprep.mubr.bf16.mxu0 0
    %642 = vmatmul.mubr.bf16.gmra.mrb[0].mxu0 %v607
    %v643 = vpop.f32.mrb[0].mxu0
    %v644 = vadd.f32 0.0, %v643
    %v645 = vpop.f32.mrb[0].mxu0
    %v646 = vpop.f32.mrb[0].mxu0
    %v647 = vpop.f32.mrb[0].mxu0
    %648 = vdwg.mxu0
    %v649 = vadd.f32 %v604, %v644
    %v650 = vmul.f32 %v649, 0.5
    %v651 = vtanh.pop %v650
    %v652 = vadd.f32 %v651, 1.0
    %v653 = vmul.f32 %v652, 0.5
    %v654 = vtanh.pop %v649
    %v657 = vunpack.c.l.s4 1983009808
    %v658 = vunpack.c.0.s8 %v657
    %v659 = vlaneseq
    %v660 = vshrl.u32 %v659, 7
    %v661 = vsub.s32 %v658, %v660
    %v662 = vrot.slane %v601, %v661
    %663 = vrot.lane.b32.xlu0 %v662, 32
    %v664 = vpop.permute.xlu0 %663
    %v666 = vmul.f32 %v653, %v664
    %668 = vrot.lane.b32.xlu0 %v654, 32
    %v669 = vpop.permute.xlu0 %668
    %v671 = vmul.f32 %v653, %v669
    %673 = vrot.lane.b32.xlu0 %v671, 32
    %v674 = vpop.permute.xlu0 %673
    %v676 = vadd.f32 %v666, %v674
    %v677 = vtanh.pop %v676
    %679 = vrot.lane.b32.xlu0 %v677, 32
    %v680 = vpop.permute.xlu0 %679
    %v682 = vmul.f32 %v653, %v680
    %v683 = vstv %s599
    %vm684 = vcmp.lt.s32.totalorder %v683, %v80
    %v685 = vsel %vm684, 1, 0
    %686 = vset.pattern.permute.xlu0 0
    %687 = vperm.xlu0 %686, %v685
    %v688 = vpop.permute.xlu0 %687
    %vm689 = vcmp.eq.s32.totalorder %v688, 1
    %v692 = vunpack.c.l.s4 1983009808
    %v693 = vunpack.c.0.s8 %v692
    %v694 = vlaneseq
    %v695 = vshrl.u32 %v694, 7
    %v696 = vsub.s32 %v693, %v695
    %v697 = vrot.slane %v682, %v696
    %698 = vrot.lane.b32.xlu0 %v697, 64
    %v699 = vpop.permute.xlu0 %698
    %v701 = vsel %vm689, %v699, %v600
    %702 = vst.msk [vmem:[#allocation2] sm:$0x3] %vm205, %v701
    %v705 = vunpack.c.l.s4 1983009808
    %v706 = vunpack.c.0.s8 %v705
    %v707 = vlaneseq
    %v708 = vshrl.u32 %v707, 7
    %v709 = vsub.s32 %v706, %v708
    %v710 = vrot.slane %v676, %v709
    %711 = vrot.lane.b32.xlu0 %v710, 96
    %v712 = vpop.permute.xlu0 %711
    %v714 = vsel %vm689, %v712, %v601
    %715 = vst.msk [vmem:[#allocation3] sm:$0x3] %vm205, %v714
    %v716 = vsel %vm689, %v699, 0.0
    %v717 = vpack.c.bf16 %v716, %v716
    %s718 = scalar_lea.vmem [#allocation11], 2
    %719 = vst.msk [vmem:[%s718] sm:$0x1] %vm222, %v717
    %s720 = ssub.s32 5, %s90
    %v721 = vld [vmem:[#allocation4] sm:$0x3]
    %v722 = vld [vmem:[#allocation5] sm:$0x3]
    %s723 = scalar_lea.vmem %s65, 5
    %v724 = vld [vmem:[%s723] sm:$0x1]
    %v725 = vunpack.c.l.bf16 %v724
    %v726 = vpack.c.bf16 %v721, %v721
    %v728 = vsel %vm108, %v726, 0
    %730 = vmatprep.subr.bf16.mxu0 0
    %731 = vmatpush1.bf16.msra.mxu0 %v239
    %732 = vmatprep.subr.bf16.mxu0 0
    %733 = vmatpush1.bf16.msra.mxu0 %v240
    %734 = vmatprep.subr.bf16.mxu0 0
    %735 = vmatpush1.bf16.msra.mxu0 0
    %736 = vmatprep.subr.bf16.mxu0 0
    %737 = vmatpush1.bf16.msra.mxu0 0
    %738 = vmatprep.subr.bf16.mxu0 0
    %739 = vmatpush1.bf16.msra.mxu0 0
    %740 = vmatprep.subr.bf16.mxu0 0
    %741 = vmatpush1.bf16.msra.mxu0 0
    %742 = vmatprep.subr.bf16.mxu0 0
    %743 = vmatpush1.bf16.msra.mxu0 0
    %744 = vmatprep.subr.bf16.mxu0 0
    %745 = vmatpush1.bf16.msra.mxu0 0
    %746 = vmatprep.subr.bf16.mxu0 0
    %747 = vmatpush1.bf16.msra.mxu0 0
    %748 = vmatprep.subr.bf16.mxu0 0
    %749 = vmatpush1.bf16.msra.mxu0 0
    %750 = vmatprep.subr.bf16.mxu0 0
    %751 = vmatpush1.bf16.msra.mxu0 0
    %752 = vmatprep.subr.bf16.mxu0 0
    %753 = vmatpush1.bf16.msra.mxu0 0
    %754 = vmatprep.subr.bf16.mxu0 0
    %755 = vmatpush1.bf16.msra.mxu0 0
    %756 = vmatprep.subr.bf16.mxu0 0
    %757 = vmatpush1.bf16.msra.mxu0 0
    %758 = vmatprep.subr.bf16.mxu0 0
    %759 = vmatpush1.bf16.msra.mxu0 0
    %760 = vmatprep.subr.bf16.mxu0 0
    %761 = vmatpush1.bf16.msra.mxu0 0
    %762 = vmatprep.mubr.bf16.mxu0 0
    %763 = vmatmul.mubr.bf16.gmra.mrb[0].mxu0 %v728
    %v764 = vpop.f32.mrb[0].mxu0
    %v765 = vadd.f32 0.0, %v764
    %v766 = vpop.f32.mrb[0].mxu0
    %v767 = vpop.f32.mrb[0].mxu0
    %v768 = vpop.f32.mrb[0].mxu0
    %769 = vdwg.mxu0
    %v770 = vadd.f32 %v725, %v765
    %v771 = vmul.f32 %v770, 0.5
    %v772 = vtanh.pop %v771
    %v773 = vadd.f32 %v772, 1.0
    %v774 = vmul.f32 %v773, 0.5
    %v775 = vtanh.pop %v770
    %v778 = vunpack.c.l.s4 1983009808
    %v779 = vunpack.c.0.s8 %v778
    %v780 = vlaneseq
    %v781 = vshrl.u32 %v780, 7
    %v782 = vsub.s32 %v779, %v781
    %v783 = vrot.slane %v722, %v782
    %784 = vrot.lane.b32.xlu0 %v783, 32
    %v785 = vpop.permute.xlu0 %784
    %v787 = vmul.f32 %v774, %v785
    %789 = vrot.lane.b32.xlu0 %v775, 32
    %v790 = vpop.permute.xlu0 %789
    %v792 = vmul.f32 %v774, %v790
    %794 = vrot.lane.b32.xlu0 %v792, 32
    %v795 = vpop.permute.xlu0 %794
    %v797 = vadd.f32 %v787, %v795
    %v798 = vtanh.pop %v797
    %800 = vrot.lane.b32.xlu0 %v798, 32
    %v801 = vpop.permute.xlu0 %800
    %v803 = vmul.f32 %v774, %v801
    %v804 = vstv %s720
    %vm805 = vcmp.lt.s32.totalorder %v804, %v80
    %v806 = vsel %vm805, 1, 0
    %807 = vset.pattern.permute.xlu0 0
    %808 = vperm.xlu0 %807, %v806
    %v809 = vpop.permute.xlu0 %808
    %vm810 = vcmp.eq.s32.totalorder %v809, 1
    %v813 = vunpack.c.l.s4 1983009808
    %v814 = vunpack.c.0.s8 %v813
    %v815 = vlaneseq
    %v816 = vshrl.u32 %v815, 7
    %v817 = vsub.s32 %v814, %v816
    %v818 = vrot.slane %v803, %v817
    %819 = vrot.lane.b32.xlu0 %v818, 64
    %v820 = vpop.permute.xlu0 %819
    %v822 = vsel %vm810, %v820, %v721
    %823 = vst.msk [vmem:[#allocation4] sm:$0x3] %vm205, %v822
    %v826 = vunpack.c.l.s4 1983009808
    %v827 = vunpack.c.0.s8 %v826
    %v828 = vlaneseq
    %v829 = vshrl.u32 %v828, 7
    %v830 = vsub.s32 %v827, %v829
    %v831 = vrot.slane %v797, %v830
    %832 = vrot.lane.b32.xlu0 %v831, 96
    %v833 = vpop.permute.xlu0 %832
    %v835 = vsel %vm810, %v833, %v722
    %836 = vst.msk [vmem:[#allocation5] sm:$0x3] %vm205, %v835
    %v837 = vsel %vm810, %v820, 0.0
    %v838 = vpack.c.bf16 %v837, %v837
    %s839 = scalar_lea.vmem [#allocation12], 5
    %840 = vst.msk [vmem:[%s839] sm:$0x1] %vm222, %v838
    %s841 = sadd.s32 %s90, 3
    %v842 = vld [vmem:[#allocation2] sm:$0x3]
    %v843 = vld [vmem:[#allocation3] sm:$0x3]
    %s844 = scalar_lea.vmem [#allocation6], 3
    %v845 = vld [vmem:[%s844] sm:$0x1]
    %v846 = vunpack.c.l.bf16 %v845
    %v847 = vpack.c.bf16 %v842, %v842
    %v849 = vsel %vm108, %v847, 0
    %851 = vmatprep.subr.bf16.mxu0 0
    %852 = vmatpush1.bf16.msra.mxu0 %v104
    %853 = vmatprep.subr.bf16.mxu0 0
    %854 = vmatpush1.bf16.msra.mxu0 %v105
    %855 = vmatprep.subr.bf16.mxu0 0
    %856 = vmatpush1.bf16.msra.mxu0 0
    %857 = vmatprep.subr.bf16.mxu0 0
    %858 = vmatpush1.bf16.msra.mxu0 0
    %859 = vmatprep.subr.bf16.mxu0 0
    %860 = vmatpush1.bf16.msra.mxu0 0
    %861 = vmatprep.subr.bf16.mxu0 0
    %862 = vmatpush1.bf16.msra.mxu0 0
    %863 = vmatprep.subr.bf16.mxu0 0
    %864 = vmatpush1.bf16.msra.mxu0 0
    %865 = vmatprep.subr.bf16.mxu0 0
    %866 = vmatpush1.bf16.msra.mxu0 0
    %867 = vmatprep.subr.bf16.mxu0 0
    %868 = vmatpush1.bf16.msra.mxu0 0
    %869 = vmatprep.subr.bf16.mxu0 0
    %870 = vmatpush1.bf16.msra.mxu0 0
    %871 = vmatprep.subr.bf16.mxu0 0
    %872 = vmatpush1.bf16.msra.mxu0 0
    %873 = vmatprep.subr.bf16.mxu0 0
    %874 = vmatpush1.bf16.msra.mxu0 0
    %875 = vmatprep.subr.bf16.mxu0 0
    %876 = vmatpush1.bf16.msra.mxu0 0
    %877 = vmatprep.subr.bf16.mxu0 0
    %878 = vmatpush1.bf16.msra.mxu0 0
    %879 = vmatprep.subr.bf16.mxu0 0
    %880 = vmatpush1.bf16.msra.mxu0 0
    %881 = vmatprep.subr.bf16.mxu0 0
    %882 = vmatpush1.bf16.msra.mxu0 0
    %883 = vmatprep.mubr.bf16.mxu0 0
    %884 = vmatmul.mubr.bf16.gmra.mrb[0].mxu0 %v849
    %v885 = vpop.f32.mrb[0].mxu0
    %v886 = vadd.f32 0.0, %v885
    %v887 = vpop.f32.mrb[0].mxu0
    %v888 = vpop.f32.mrb[0].mxu0
    %v889 = vpop.f32.mrb[0].mxu0
    %890 = vdwg.mxu0
    %v891 = vadd.f32 %v846, %v886
    %v892 = vmul.f32 %v891, 0.5
    %v893 = vtanh.pop %v892
    %v894 = vadd.f32 %v893, 1.0
    %v895 = vmul.f32 %v894, 0.5
    %v896 = vtanh.pop %v891
    %v899 = vunpack.c.l.s4 1983009808
    %v900 = vunpack.c.0.s8 %v899
    %v901 = vlaneseq
    %v902 = vshrl.u32 %v901, 7
    %v903 = vsub.s32 %v900, %v902
    %v904 = vrot.slane %v843, %v903
    %905 = vrot.lane.b32.xlu0 %v904, 32
    %v906 = vpop.permute.xlu0 %905
    %v908 = vmul.f32 %v895, %v906
    %910 = vrot.lane.b32.xlu0 %v896, 32
    %v911 = vpop.permute.xlu0 %910
    %v913 = vmul.f32 %v895, %v911
    %915 = vrot.lane.b32.xlu0 %v913, 32
    %v916 = vpop.permute.xlu0 %915
    %v918 = vadd.f32 %v908, %v916
    %v919 = vtanh.pop %v918
    %921 = vrot.lane.b32.xlu0 %v919, 32
    %v922 = vpop.permute.xlu0 %921
    %v924 = vmul.f32 %v895, %v922
    %v925 = vstv %s841
    %vm926 = vcmp.lt.s32.totalorder %v925, %v80
    %v927 = vsel %vm926, 1, 0
    %928 = vset.pattern.permute.xlu0 0
    %929 = vperm.xlu0 %928, %v927
    %v930 = vpop.permute.xlu0 %929
    %vm931 = vcmp.eq.s32.totalorder %v930, 1
    %v934 = vunpack.c.l.s4 1983009808
    %v935 = vunpack.c.0.s8 %v934
    %v936 = vlaneseq
    %v937 = vshrl.u32 %v936, 7
    %v938 = vsub.s32 %v935, %v937
    %v939 = vrot.slane %v924, %v938
    %940 = vrot.lane.b32.xlu0 %v939, 64
    %v941 = vpop.permute.xlu0 %940
    %v943 = vsel %vm931, %v941, %v842
    %944 = vst.msk [vmem:[#allocation2] sm:$0x3] %vm205, %v943
    %v947 = vunpack.c.l.s4 1983009808
    %v948 = vunpack.c.0.s8 %v947
    %v949 = vlaneseq
    %v950 = vshrl.u32 %v949, 7
    %v951 = vsub.s32 %v948, %v950
    %v952 = vrot.slane %v918, %v951
    %953 = vrot.lane.b32.xlu0 %v952, 96
    %v954 = vpop.permute.xlu0 %953
    %v956 = vsel %vm931, %v954, %v843
    %957 = vst.msk [vmem:[#allocation3] sm:$0x3] %vm205, %v956
    %v958 = vsel %vm931, %v941, 0.0
    %v959 = vpack.c.bf16 %v958, %v958
    %s960 = scalar_lea.vmem [#allocation11], 3
    %961 = vst.msk [vmem:[%s960] sm:$0x1] %vm222, %v959
    %s962 = ssub.s32 4, %s90
    %v963 = vld [vmem:[#allocation4] sm:$0x3]
    %v964 = vld [vmem:[#allocation5] sm:$0x3]
    %s965 = scalar_lea.vmem %s65, 4
    %v966 = vld [vmem:[%s965] sm:$0x1]
    %v967 = vunpack.c.l.bf16 %v966
    %v968 = vpack.c.bf16 %v963, %v963
    %v970 = vsel %vm108, %v968, 0
    %972 = vmatprep.subr.bf16.mxu0 0
    %973 = vmatpush1.bf16.msra.mxu0 %v239
    %974 = vmatprep.subr.bf16.mxu0 0
    %975 = vmatpush1.bf16.msra.mxu0 %v240
    %976 = vmatprep.subr.bf16.mxu0 0
    %977 = vmatpush1.bf16.msra.mxu0 0
    %978 = vmatprep.subr.bf16.mxu0 0
    %979 = vmatpush1.bf16.msra.mxu0 0
    %980 = vmatprep.subr.bf16.mxu0 0
    %981 = vmatpush1.bf16.msra.mxu0 0
    %982 = vmatprep.subr.bf16.mxu0 0
    %983 = vmatpush1.bf16.msra.mxu0 0
    %984 = vmatprep.subr.bf16.mxu0 0
    %985 = vmatpush1.bf16.msra.mxu0 0
    %986 = vmatprep.subr.bf16.mxu0 0
    %987 = vmatpush1.bf16.msra.mxu0 0
    %988 = vmatprep.subr.bf16.mxu0 0
    %989 = vmatpush1.bf16.msra.mxu0 0
    %990 = vmatprep.subr.bf16.mxu0 0
    %991 = vmatpush1.bf16.msra.mxu0 0
    %992 = vmatprep.subr.bf16.mxu0 0
    %993 = vmatpush1.bf16.msra.mxu0 0
    %994 = vmatprep.subr.bf16.mxu0 0
    %995 = vmatpush1.bf16.msra.mxu0 0
    %996 = vmatprep.subr.bf16.mxu0 0
    %997 = vmatpush1.bf16.msra.mxu0 0
    %998 = vmatprep.subr.bf16.mxu0 0
    %999 = vmatpush1.bf16.msra.mxu0 0
    %1000 = vmatprep.subr.bf16.mxu0 0
    %1001 = vmatpush1.bf16.msra.mxu0 0
    %1002 = vmatprep.subr.bf16.mxu0 0
    %1003 = vmatpush1.bf16.msra.mxu0 0
    %1004 = vmatprep.mubr.bf16.mxu0 0
    %1005 = vmatmul.mubr.bf16.gmra.mrb[0].mxu0 %v970
    %v1006 = vpop.f32.mrb[0].mxu0
    %v1007 = vadd.f32 0.0, %v1006
    %v1008 = vpop.f32.mrb[0].mxu0
    %v1009 = vpop.f32.mrb[0].mxu0
    %v1010 = vpop.f32.mrb[0].mxu0
    %1011 = vdwg.mxu0
    %v1012 = vadd.f32 %v967, %v1007
    %v1013 = vmul.f32 %v1012, 0.5
    %v1014 = vtanh.pop %v1013
    %v1015 = vadd.f32 %v1014, 1.0
    %v1016 = vmul.f32 %v1015, 0.5
    %v1017 = vtanh.pop %v1012
    %v1020 = vunpack.c.l.s4 1983009808
    %v1021 = vunpack.c.0.s8 %v1020
    %v1022 = vlaneseq
    %v1023 = vshrl.u32 %v1022, 7
    %v1024 = vsub.s32 %v1021, %v1023
    %v1025 = vrot.slane %v964, %v1024
    %1026 = vrot.lane.b32.xlu0 %v1025, 32
    %v1027 = vpop.permute.xlu0 %1026
    %v1029 = vmul.f32 %v1016, %v1027
    %1031 = vrot.lane.b32.xlu0 %v1017, 32
    %v1032 = vpop.permute.xlu0 %1031
    %v1034 = vmul.f32 %v1016, %v1032
    %1036 = vrot.lane.b32.xlu0 %v1034, 32
    %v1037 = vpop.permute.xlu0 %1036
    %v1039 = vadd.f32 %v1029, %v1037
    %v1040 = vtanh.pop %v1039
    %1042 = vrot.lane.b32.xlu0 %v1040, 32
    %v1043 = vpop.permute.xlu0 %1042
    %v1045 = vmul.f32 %v1016, %v1043
    %v1046 = vstv %s962
    %vm1047 = vcmp.lt.s32.totalorder %v1046, %v80
    %v1048 = vsel %vm1047, 1, 0
    %1049 = vset.pattern.permute.xlu0 0
    %1050 = vperm.xlu0 %1049, %v1048
    %v1051 = vpop.permute.xlu0 %1050
    %vm1052 = vcmp.eq.s32.totalorder %v1051, 1
    %v1055 = vunpack.c.l.s4 1983009808
    %v1056 = vunpack.c.0.s8 %v1055
    %v1057 = vlaneseq
    %v1058 = vshrl.u32 %v1057, 7
    %v1059 = vsub.s32 %v1056, %v1058
    %v1060 = vrot.slane %v1045, %v1059
    %1061 = vrot.lane.b32.xlu0 %v1060, 64
    %v1062 = vpop.permute.xlu0 %1061
    %v1064 = vsel %vm1052, %v1062, %v963
    %1065 = vst.msk [vmem:[#allocation4] sm:$0x3] %vm205, %v1064
    %v1068 = vunpack.c.l.s4 1983009808
    %v1069 = vunpack.c.0.s8 %v1068
    %v1070 = vlaneseq
    %v1071 = vshrl.u32 %v1070, 7
    %v1072 = vsub.s32 %v1069, %v1071
    %v1073 = vrot.slane %v1039, %v1072
    %1074 = vrot.lane.b32.xlu0 %v1073, 96
    %v1075 = vpop.permute.xlu0 %1074
    %v1077 = vsel %vm1052, %v1075, %v964
    %1078 = vst.msk [vmem:[#allocation5] sm:$0x3] %vm205, %v1077
    %v1079 = vsel %vm1052, %v1062, 0.0
    %v1080 = vpack.c.bf16 %v1079, %v1079
    %s1081 = scalar_lea.vmem [#allocation12], 4
    %1082 = vst.msk [vmem:[%s1081] sm:$0x1] %vm222, %v1080
    %s1083 = sadd.s32 %s90, 4
    %v1084 = vld [vmem:[#allocation2] sm:$0x3]
    %v1085 = vld [vmem:[#allocation3] sm:$0x3]
    %s1086 = scalar_lea.vmem [#allocation6], 4
    %v1087 = vld [vmem:[%s1086] sm:$0x1]
    %v1088 = vunpack.c.l.bf16 %v1087
    %v1089 = vpack.c.bf16 %v1084, %v1084
    %v1091 = vsel %vm108, %v1089, 0
    %1093 = vmatprep.subr.bf16.mxu0 0
    %1094 = vmatpush1.bf16.msra.mxu0 %v104
    %1095 = vmatprep.subr.bf16.mxu0 0
    %1096 = vmatpush1.bf16.msra.mxu0 %v105
    %1097 = vmatprep.subr.bf16.mxu0 0
    %1098 = vmatpush1.bf16.msra.mxu0 0
    %1099 = vmatprep.subr.bf16.mxu0 0
    %1100 = vmatpush1.bf16.msra.mxu0 0
    %1101 = vmatprep.subr.bf16.mxu0 0
    %1102 = vmatpush1.bf16.msra.mxu0 0
    %1103 = vmatprep.subr.bf16.mxu0 0
    %1104 = vmatpush1.bf16.msra.mxu0 0
    %1105 = vmatprep.subr.bf16.mxu0 0
    %1106 = vmatpush1.bf16.msra.mxu0 0
    %1107 = vmatprep.subr.bf16.mxu0 0
    %1108 = vmatpush1.bf16.msra.mxu0 0
    %1109 = vmatprep.subr.bf16.mxu0 0
    %1110 = vmatpush1.bf16.msra.mxu0 0
    %1111 = vmatprep.subr.bf16.mxu0 0
    %1112 = vmatpush1.bf16.msra.mxu0 0
    %1113 = vmatprep.subr.bf16.mxu0 0
    %1114 = vmatpush1.bf16.msra.mxu0 0
    %1115 = vmatprep.subr.bf16.mxu0 0
    %1116 = vmatpush1.bf16.msra.mxu0 0
    %1117 = vmatprep.subr.bf16.mxu0 0
    %1118 = vmatpush1.bf16.msra.mxu0 0
    %1119 = vmatprep.subr.bf16.mxu0 0
    %1120 = vmatpush1.bf16.msra.mxu0 0
    %1121 = vmatprep.subr.bf16.mxu0 0
    %1122 = vmatpush1.bf16.msra.mxu0 0
    %1123 = vmatprep.subr.bf16.mxu0 0
    %1124 = vmatpush1.bf16.msra.mxu0 0
    %1125 = vmatprep.mubr.bf16.mxu0 0
    %1126 = vmatmul.mubr.bf16.gmra.mrb[0].mxu0 %v1091
    %v1127 = vpop.f32.mrb[0].mxu0
    %v1128 = vadd.f32 0.0, %v1127
    %v1129 = vpop.f32.mrb[0].mxu0
    %v1130 = vpop.f32.mrb[0].mxu0
    %v1131 = vpop.f32.mrb[0].mxu0
    %1132 = vdwg.mxu0
    %v1133 = vadd.f32 %v1088, %v1128
    %v1134 = vmul.f32 %v1133, 0.5
    %v1135 = vtanh.pop %v1134
    %v1136 = vadd.f32 %v1135, 1.0
    %v1137 = vmul.f32 %v1136, 0.5
    %v1138 = vtanh.pop %v1133
    %v1141 = vunpack.c.l.s4 1983009808
    %v1142 = vunpack.c.0.s8 %v1141
    %v1143 = vlaneseq
    %v1144 = vshrl.u32 %v1143, 7
    %v1145 = vsub.s32 %v1142, %v1144
    %v1146 = vrot.slane %v1085, %v1145
    %1147 = vrot.lane.b32.xlu0 %v1146, 32
    %v1148 = vpop.permute.xlu0 %1147
    %v1150 = vmul.f32 %v1137, %v1148
    %1152 = vrot.lane.b32.xlu0 %v1138, 32
    %v1153 = vpop.permute.xlu0 %1152
    %v1155 = vmul.f32 %v1137, %v1153
    %1157 = vrot.lane.b32.xlu0 %v1155, 32
    %v1158 = vpop.permute.xlu0 %1157
    %v1160 = vadd.f32 %v1150, %v1158
    %v1161 = vtanh.pop %v1160
    %1163 = vrot.lane.b32.xlu0 %v1161, 32
    %v1164 = vpop.permute.xlu0 %1163
    %v1166 = vmul.f32 %v1137, %v1164
    %v1167 = vstv %s1083
    %vm1168 = vcmp.lt.s32.totalorder %v1167, %v80
    %v1169 = vsel %vm1168, 1, 0
    %1170 = vset.pattern.permute.xlu0 0
    %1171 = vperm.xlu0 %1170, %v1169
    %v1172 = vpop.permute.xlu0 %1171
    %vm1173 = vcmp.eq.s32.totalorder %v1172, 1
    %v1176 = vunpack.c.l.s4 1983009808
    %v1177 = vunpack.c.0.s8 %v1176
    %v1178 = vlaneseq
    %v1179 = vshrl.u32 %v1178, 7
    %v1180 = vsub.s32 %v1177, %v1179
    %v1181 = vrot.slane %v1166, %v1180
    %1182 = vrot.lane.b32.xlu0 %v1181, 64
    %v1183 = vpop.permute.xlu0 %1182
    %v1185 = vsel %vm1173, %v1183, %v1084
    %1186 = vst.msk [vmem:[#allocation2] sm:$0x3] %vm205, %v1185
    %v1189 = vunpack.c.l.s4 1983009808
    %v1190 = vunpack.c.0.s8 %v1189
    %v1191 = vlaneseq
    %v1192 = vshrl.u32 %v1191, 7
    %v1193 = vsub.s32 %v1190, %v1192
    %v1194 = vrot.slane %v1160, %v1193
    %1195 = vrot.lane.b32.xlu0 %v1194, 96
    %v1196 = vpop.permute.xlu0 %1195
    %v1198 = vsel %vm1173, %v1196, %v1085
    %1199 = vst.msk [vmem:[#allocation3] sm:$0x3] %vm205, %v1198
    %v1200 = vsel %vm1173, %v1183, 0.0
    %v1201 = vpack.c.bf16 %v1200, %v1200
    %s1202 = scalar_lea.vmem [#allocation11], 4
    %1203 = vst.msk [vmem:[%s1202] sm:$0x1] %vm222, %v1201
    %s1204 = ssub.s32 3, %s90
    %v1205 = vld [vmem:[#allocation4] sm:$0x3]
    %v1206 = vld [vmem:[#allocation5] sm:$0x3]
    %s1207 = scalar_lea.vmem %s65, 3
    %v1208 = vld [vmem:[%s1207] sm:$0x1]
    %v1209 = vunpack.c.l.bf16 %v1208
    %v1210 = vpack.c.bf16 %v1205, %v1205
    %v1212 = vsel %vm108, %v1210, 0
    %1214 = vmatprep.subr.bf16.mxu0 0
    %1215 = vmatpush1.bf16.msra.mxu0 %v239
    %1216 = vmatprep.subr.bf16.mxu0 0
    %1217 = vmatpush1.bf16.msra.mxu0 %v240
    %1218 = vmatprep.subr.bf16.mxu0 0
    %1219 = vmatpush1.bf16.msra.mxu0 0
    %1220 = vmatprep.subr.bf16.mxu0 0
    %1221 = vmatpush1.bf16.msra.mxu0 0
    %1222 = vmatprep.subr.bf16.mxu0 0
    %1223 = vmatpush1.bf16.msra.mxu0 0
    %1224 = vmatprep.subr.bf16.mxu0 0
    %1225 = vmatpush1.bf16.msra.mxu0 0
    %1226 = vmatprep.subr.bf16.mxu0 0
    %1227 = vmatpush1.bf16.msra.mxu0 0
    %1228 = vmatprep.subr.bf16.mxu0 0
    %1229 = vmatpush1.bf16.msra.mxu0 0
    %1230 = vmatprep.subr.bf16.mxu0 0
    %1231 = vmatpush1.bf16.msra.mxu0 0
    %1232 = vmatprep.subr.bf16.mxu0 0
    %1233 = vmatpush1.bf16.msra.mxu0 0
    %1234 = vmatprep.subr.bf16.mxu0 0
    %1235 = vmatpush1.bf16.msra.mxu0 0
    %1236 = vmatprep.subr.bf16.mxu0 0
    %1237 = vmatpush1.bf16.msra.mxu0 0
    %1238 = vmatprep.subr.bf16.mxu0 0
    %1239 = vmatpush1.bf16.msra.mxu0 0
    %1240 = vmatprep.subr.bf16.mxu0 0
    %1241 = vmatpush1.bf16.msra.mxu0 0
    %1242 = vmatprep.subr.bf16.mxu0 0
    %1243 = vmatpush1.bf16.msra.mxu0 0
    %1244 = vmatprep.subr.bf16.mxu0 0
    %1245 = vmatpush1.bf16.msra.mxu0 0
    %1246 = vmatprep.mubr.bf16.mxu0 0
    %1247 = vmatmul.mubr.bf16.gmra.mrb[0].mxu0 %v1212
    %v1248 = vpop.f32.mrb[0].mxu0
    %v1249 = vadd.f32 0.0, %v1248
    %v1250 = vpop.f32.mrb[0].mxu0
    %v1251 = vpop.f32.mrb[0].mxu0
    %v1252 = vpop.f32.mrb[0].mxu0
    %1253 = vdwg.mxu0
    %v1254 = vadd.f32 %v1209, %v1249
    %v1255 = vmul.f32 %v1254, 0.5
    %v1256 = vtanh.pop %v1255
    %v1257 = vadd.f32 %v1256, 1.0
    %v1258 = vmul.f32 %v1257, 0.5
    %v1259 = vtanh.pop %v1254
    %v1262 = vunpack.c.l.s4 1983009808
    %v1263 = vunpack.c.0.s8 %v1262
    %v1264 = vlaneseq
    %v1265 = vshrl.u32 %v1264, 7
    %v1266 = vsub.s32 %v1263, %v1265
    %v1267 = vrot.slane %v1206, %v1266
    %1268 = vrot.lane.b32.xlu0 %v1267, 32
    %v1269 = vpop.permute.xlu0 %1268
    %v1271 = vmul.f32 %v1258, %v1269
    %1273 = vrot.lane.b32.xlu0 %v1259, 32
    %v1274 = vpop.permute.xlu0 %1273
    %v1276 = vmul.f32 %v1258, %v1274
    %1278 = vrot.lane.b32.xlu0 %v1276, 32
    %v1279 = vpop.permute.xlu0 %1278
    %v1281 = vadd.f32 %v1271, %v1279
    %v1282 = vtanh.pop %v1281
    %1284 = vrot.lane.b32.xlu0 %v1282, 32
    %v1285 = vpop.permute.xlu0 %1284
    %v1287 = vmul.f32 %v1258, %v1285
    %v1288 = vstv %s1204
    %vm1289 = vcmp.lt.s32.totalorder %v1288, %v80
    %v1290 = vsel %vm1289, 1, 0
    %1291 = vset.pattern.permute.xlu0 0
    %1292 = vperm.xlu0 %1291, %v1290
    %v1293 = vpop.permute.xlu0 %1292
    %vm1294 = vcmp.eq.s32.totalorder %v1293, 1
    %v1297 = vunpack.c.l.s4 1983009808
    %v1298 = vunpack.c.0.s8 %v1297
    %v1299 = vlaneseq
    %v1300 = vshrl.u32 %v1299, 7
    %v1301 = vsub.s32 %v1298, %v1300
    %v1302 = vrot.slane %v1287, %v1301
    %1303 = vrot.lane.b32.xlu0 %v1302, 64
    %v1304 = vpop.permute.xlu0 %1303
    %v1306 = vsel %vm1294, %v1304, %v1205
    %1307 = vst.msk [vmem:[#allocation4] sm:$0x3] %vm205, %v1306
    %v1310 = vunpack.c.l.s4 1983009808
    %v1311 = vunpack.c.0.s8 %v1310
    %v1312 = vlaneseq
    %v1313 = vshrl.u32 %v1312, 7
    %v1314 = vsub.s32 %v1311, %v1313
    %v1315 = vrot.slane %v1281, %v1314
    %1316 = vrot.lane.b32.xlu0 %v1315, 96
    %v1317 = vpop.permute.xlu0 %1316
    %v1319 = vsel %vm1294, %v1317, %v1206
    %1320 = vst.msk [vmem:[#allocation5] sm:$0x3] %vm205, %v1319
    %v1321 = vsel %vm1294, %v1304, 0.0
    %v1322 = vpack.c.bf16 %v1321, %v1321
    %s1323 = scalar_lea.vmem [#allocation12], 3
    %1324 = vst.msk [vmem:[%s1323] sm:$0x1] %vm222, %v1322
    %s1325 = sadd.s32 %s90, 5
    %v1326 = vld [vmem:[#allocation2] sm:$0x3]
    %v1327 = vld [vmem:[#allocation3] sm:$0x3]
    %s1328 = scalar_lea.vmem [#allocation6], 5
    %v1329 = vld [vmem:[%s1328] sm:$0x1]
    %v1330 = vunpack.c.l.bf16 %v1329
    %v1331 = vpack.c.bf16 %v1326, %v1326
    %v1333 = vsel %vm108, %v1331, 0
    %1335 = vmatprep.subr.bf16.mxu0 0
    %1336 = vmatpush1.bf16.msra.mxu0 %v104
    %1337 = vmatprep.subr.bf16.mxu0 0
    %1338 = vmatpush1.bf16.msra.mxu0 %v105
    %1339 = vmatprep.subr.bf16.mxu0 0
    %1340 = vmatpush1.bf16.msra.mxu0 0
    %1341 = vmatprep.subr.bf16.mxu0 0
    %1342 = vmatpush1.bf16.msra.mxu0 0
    %1343 = vmatprep.subr.bf16.mxu0 0
    %1344 = vmatpush1.bf16.msra.mxu0 0
    %1345 = vmatprep.subr.bf16.mxu0 0
    %1346 = vmatpush1.bf16.msra.mxu0 0
    %1347 = vmatprep.subr.bf16.mxu0 0
    %1348 = vmatpush1.bf16.msra.mxu0 0
    %1349 = vmatprep.subr.bf16.mxu0 0
    %1350 = vmatpush1.bf16.msra.mxu0 0
    %1351 = vmatprep.subr.bf16.mxu0 0
    %1352 = vmatpush1.bf16.msra.mxu0 0
    %1353 = vmatprep.subr.bf16.mxu0 0
    %1354 = vmatpush1.bf16.msra.mxu0 0
    %1355 = vmatprep.subr.bf16.mxu0 0
    %1356 = vmatpush1.bf16.msra.mxu0 0
    %1357 = vmatprep.subr.bf16.mxu0 0
    %1358 = vmatpush1.bf16.msra.mxu0 0
    %1359 = vmatprep.subr.bf16.mxu0 0
    %1360 = vmatpush1.bf16.msra.mxu0 0
    %1361 = vmatprep.subr.bf16.mxu0 0
    %1362 = vmatpush1.bf16.msra.mxu0 0
    %1363 = vmatprep.subr.bf16.mxu0 0
    %1364 = vmatpush1.bf16.msra.mxu0 0
    %1365 = vmatprep.subr.bf16.mxu0 0
    %1366 = vmatpush1.bf16.msra.mxu0 0
    %1367 = vmatprep.mubr.bf16.mxu0 0
    %1368 = vmatmul.mubr.bf16.gmra.mrb[0].mxu0 %v1333
    %v1369 = vpop.f32.mrb[0].mxu0
    %v1370 = vadd.f32 0.0, %v1369
    %v1371 = vpop.f32.mrb[0].mxu0
    %v1372 = vpop.f32.mrb[0].mxu0
    %v1373 = vpop.f32.mrb[0].mxu0
    %1374 = vdwg.mxu0
    %v1375 = vadd.f32 %v1330, %v1370
    %v1376 = vmul.f32 %v1375, 0.5
    %v1377 = vtanh.pop %v1376
    %v1378 = vadd.f32 %v1377, 1.0
    %v1379 = vmul.f32 %v1378, 0.5
    %v1380 = vtanh.pop %v1375
    %v1383 = vunpack.c.l.s4 1983009808
    %v1384 = vunpack.c.0.s8 %v1383
    %v1385 = vlaneseq
    %v1386 = vshrl.u32 %v1385, 7
    %v1387 = vsub.s32 %v1384, %v1386
    %v1388 = vrot.slane %v1327, %v1387
    %1389 = vrot.lane.b32.xlu0 %v1388, 32
    %v1390 = vpop.permute.xlu0 %1389
    %v1392 = vmul.f32 %v1379, %v1390
    %1394 = vrot.lane.b32.xlu0 %v1380, 32
    %v1395 = vpop.permute.xlu0 %1394
    %v1397 = vmul.f32 %v1379, %v1395
    %1399 = vrot.lane.b32.xlu0 %v1397, 32
    %v1400 = vpop.permute.xlu0 %1399
    %v1402 = vadd.f32 %v1392, %v1400
    %v1403 = vtanh.pop %v1402
    %1405 = vrot.lane.b32.xlu0 %v1403, 32
    %v1406 = vpop.permute.xlu0 %1405
    %v1408 = vmul.f32 %v1379, %v1406
    %v1409 = vstv %s1325
    %vm1410 = vcmp.lt.s32.totalorder %v1409, %v80
    %v1411 = vsel %vm1410, 1, 0
    %1412 = vset.pattern.permute.xlu0 0
    %1413 = vperm.xlu0 %1412, %v1411
    %v1414 = vpop.permute.xlu0 %1413
    %vm1415 = vcmp.eq.s32.totalorder %v1414, 1
    %v1418 = vunpack.c.l.s4 1983009808
    %v1419 = vunpack.c.0.s8 %v1418
    %v1420 = vlaneseq
    %v1421 = vshrl.u32 %v1420, 7
    %v1422 = vsub.s32 %v1419, %v1421
    %v1423 = vrot.slane %v1408, %v1422
    %1424 = vrot.lane.b32.xlu0 %v1423, 64
    %v1425 = vpop.permute.xlu0 %1424
    %v1427 = vsel %vm1415, %v1425, %v1326
    %1428 = vst.msk [vmem:[#allocation2] sm:$0x3] %vm205, %v1427
    %v1431 = vunpack.c.l.s4 1983009808
    %v1432 = vunpack.c.0.s8 %v1431
    %v1433 = vlaneseq
    %v1434 = vshrl.u32 %v1433, 7
    %v1435 = vsub.s32 %v1432, %v1434
    %v1436 = vrot.slane %v1402, %v1435
    %1437 = vrot.lane.b32.xlu0 %v1436, 96
    %v1438 = vpop.permute.xlu0 %1437
    %v1440 = vsel %vm1415, %v1438, %v1327
    %1441 = vst.msk [vmem:[#allocation3] sm:$0x3] %vm205, %v1440
    %v1442 = vsel %vm1415, %v1425, 0.0
    %v1443 = vpack.c.bf16 %v1442, %v1442
    %s1444 = scalar_lea.vmem [#allocation11], 5
    %1445 = vst.msk [vmem:[%s1444] sm:$0x1] %vm222, %v1443
    %s1446 = ssub.s32 2, %s90
    %v1447 = vld [vmem:[#allocation4] sm:$0x3]
    %v1448 = vld [vmem:[#allocation5] sm:$0x3]
    %s1449 = scalar_lea.vmem %s65, 2
    %v1450 = vld [vmem:[%s1449] sm:$0x1]
    %v1451 = vunpack.c.l.bf16 %v1450
    %v1452 = vpack.c.bf16 %v1447, %v1447
    %v1454 = vsel %vm108, %v1452, 0
    %1456 = vmatprep.subr.bf16.mxu0 0
    %1457 = vmatpush1.bf16.msra.mxu0 %v239
    %1458 = vmatprep.subr.bf16.mxu0 0
    %1459 = vmatpush1.bf16.msra.mxu0 %v240
    %1460 = vmatprep.subr.bf16.mxu0 0
    %1461 = vmatpush1.bf16.msra.mxu0 0
    %1462 = vmatprep.subr.bf16.mxu0 0
    %1463 = vmatpush1.bf16.msra.mxu0 0
    %1464 = vmatprep.subr.bf16.mxu0 0
    %1465 = vmatpush1.bf16.msra.mxu0 0
    %1466 = vmatprep.subr.bf16.mxu0 0
    %1467 = vmatpush1.bf16.msra.mxu0 0
    %1468 = vmatprep.subr.bf16.mxu0 0
    %1469 = vmatpush1.bf16.msra.mxu0 0
    %1470 = vmatprep.subr.bf16.mxu0 0
    %1471 = vmatpush1.bf16.msra.mxu0 0
    %1472 = vmatprep.subr.bf16.mxu0 0
    %1473 = vmatpush1.bf16.msra.mxu0 0
    %1474 = vmatprep.subr.bf16.mxu0 0
    %1475 = vmatpush1.bf16.msra.mxu0 0
    %1476 = vmatprep.subr.bf16.mxu0 0
    %1477 = vmatpush1.bf16.msra.mxu0 0
    %1478 = vmatprep.subr.bf16.mxu0 0
    %1479 = vmatpush1.bf16.msra.mxu0 0
    %1480 = vmatprep.subr.bf16.mxu0 0
    %1481 = vmatpush1.bf16.msra.mxu0 0
    %1482 = vmatprep.subr.bf16.mxu0 0
    %1483 = vmatpush1.bf16.msra.mxu0 0
    %1484 = vmatprep.subr.bf16.mxu0 0
    %1485 = vmatpush1.bf16.msra.mxu0 0
    %1486 = vmatprep.subr.bf16.mxu0 0
    %1487 = vmatpush1.bf16.msra.mxu0 0
    %1488 = vmatprep.mubr.bf16.mxu0 0
    %1489 = vmatmul.mubr.bf16.gmra.mrb[0].mxu0 %v1454
    %v1490 = vpop.f32.mrb[0].mxu0
    %v1491 = vadd.f32 0.0, %v1490
    %v1492 = vpop.f32.mrb[0].mxu0
    %v1493 = vpop.f32.mrb[0].mxu0
    %v1494 = vpop.f32.mrb[0].mxu0
    %1495 = vdwg.mxu0
    %v1496 = vadd.f32 %v1451, %v1491
    %v1497 = vmul.f32 %v1496, 0.5
    %v1498 = vtanh.pop %v1497
    %v1499 = vadd.f32 %v1498, 1.0
    %v1500 = vmul.f32 %v1499, 0.5
    %v1501 = vtanh.pop %v1496
    %v1504 = vunpack.c.l.s4 1983009808
    %v1505 = vunpack.c.0.s8 %v1504
    %v1506 = vlaneseq
    %v1507 = vshrl.u32 %v1506, 7
    %v1508 = vsub.s32 %v1505, %v1507
    %v1509 = vrot.slane %v1448, %v1508
    %1510 = vrot.lane.b32.xlu0 %v1509, 32
    %v1511 = vpop.permute.xlu0 %1510
    %v1513 = vmul.f32 %v1500, %v1511
    %1515 = vrot.lane.b32.xlu0 %v1501, 32
    %v1516 = vpop.permute.xlu0 %1515
    %v1518 = vmul.f32 %v1500, %v1516
    %1520 = vrot.lane.b32.xlu0 %v1518, 32
    %v1521 = vpop.permute.xlu0 %1520
    %v1523 = vadd.f32 %v1513, %v1521
    %v1524 = vtanh.pop %v1523
    %1526 = vrot.lane.b32.xlu0 %v1524, 32
    %v1527 = vpop.permute.xlu0 %1526
    %v1529 = vmul.f32 %v1500, %v1527
    %v1530 = vstv %s1446
    %vm1531 = vcmp.lt.s32.totalorder %v1530, %v80
    %v1532 = vsel %vm1531, 1, 0
    %1533 = vset.pattern.permute.xlu0 0
    %1534 = vperm.xlu0 %1533, %v1532
    %v1535 = vpop.permute.xlu0 %1534
    %vm1536 = vcmp.eq.s32.totalorder %v1535, 1
    %v1539 = vunpack.c.l.s4 1983009808
    %v1540 = vunpack.c.0.s8 %v1539
    %v1541 = vlaneseq
    %v1542 = vshrl.u32 %v1541, 7
    %v1543 = vsub.s32 %v1540, %v1542
    %v1544 = vrot.slane %v1529, %v1543
    %1545 = vrot.lane.b32.xlu0 %v1544, 64
    %v1546 = vpop.permute.xlu0 %1545
    %v1548 = vsel %vm1536, %v1546, %v1447
    %1549 = vst.msk [vmem:[#allocation4] sm:$0x3] %vm205, %v1548
    %v1552 = vunpack.c.l.s4 1983009808
    %v1553 = vunpack.c.0.s8 %v1552
    %v1554 = vlaneseq
    %v1555 = vshrl.u32 %v1554, 7
    %v1556 = vsub.s32 %v1553, %v1555
    %v1557 = vrot.slane %v1523, %v1556
    %1558 = vrot.lane.b32.xlu0 %v1557, 96
    %v1559 = vpop.permute.xlu0 %1558
    %v1561 = vsel %vm1536, %v1559, %v1448
    %1562 = vst.msk [vmem:[#allocation5] sm:$0x3] %vm205, %v1561
    %v1563 = vsel %vm1536, %v1546, 0.0
    %v1564 = vpack.c.bf16 %v1563, %v1563
    %s1565 = scalar_lea.vmem [#allocation12], 2
    %1566 = vst.msk [vmem:[%s1565] sm:$0x1] %vm222, %v1564
    %s1567 = sadd.s32 %s90, 6
    %v1568 = vld [vmem:[#allocation2] sm:$0x3]
    %v1569 = vld [vmem:[#allocation3] sm:$0x3]
    %s1570 = scalar_lea.vmem [#allocation6], 6
    %v1571 = vld [vmem:[%s1570] sm:$0x1]
    %v1572 = vunpack.c.l.bf16 %v1571
    %v1573 = vpack.c.bf16 %v1568, %v1568
    %v1575 = vsel %vm108, %v1573, 0
    %1577 = vmatprep.subr.bf16.mxu0 0
    %1578 = vmatpush1.bf16.msra.mxu0 %v104
    %1579 = vmatprep.subr.bf16.mxu0 0
    %1580 = vmatpush1.bf16.msra.mxu0 %v105
    %1581 = vmatprep.subr.bf16.mxu0 0
    %1582 = vmatpush1.bf16.msra.mxu0 0
    %1583 = vmatprep.subr.bf16.mxu0 0
    %1584 = vmatpush1.bf16.msra.mxu0 0
    %1585 = vmatprep.subr.bf16.mxu0 0
    %1586 = vmatpush1.bf16.msra.mxu0 0
    %1587 = vmatprep.subr.bf16.mxu0 0
    %1588 = vmatpush1.bf16.msra.mxu0 0
    %1589 = vmatprep.subr.bf16.mxu0 0
    %1590 = vmatpush1.bf16.msra.mxu0 0
    %1591 = vmatprep.subr.bf16.mxu0 0
    %1592 = vmatpush1.bf16.msra.mxu0 0
    %1593 = vmatprep.subr.bf16.mxu0 0
    %1594 = vmatpush1.bf16.msra.mxu0 0
    %1595 = vmatprep.subr.bf16.mxu0 0
    %1596 = vmatpush1.bf16.msra.mxu0 0
    %1597 = vmatprep.subr.bf16.mxu0 0
    %1598 = vmatpush1.bf16.msra.mxu0 0
    %1599 = vmatprep.subr.bf16.mxu0 0
    %1600 = vmatpush1.bf16.msra.mxu0 0
    %1601 = vmatprep.subr.bf16.mxu0 0
    %1602 = vmatpush1.bf16.msra.mxu0 0
    %1603 = vmatprep.subr.bf16.mxu0 0
    %1604 = vmatpush1.bf16.msra.mxu0 0
    %1605 = vmatprep.subr.bf16.mxu0 0
    %1606 = vmatpush1.bf16.msra.mxu0 0
    %1607 = vmatprep.subr.bf16.mxu0 0
    %1608 = vmatpush1.bf16.msra.mxu0 0
    %1609 = vmatprep.mubr.bf16.mxu0 0
    %1610 = vmatmul.mubr.bf16.gmra.mrb[0].mxu0 %v1575
    %v1611 = vpop.f32.mrb[0].mxu0
    %v1612 = vadd.f32 0.0, %v1611
    %v1613 = vpop.f32.mrb[0].mxu0
    %v1614 = vpop.f32.mrb[0].mxu0
    %v1615 = vpop.f32.mrb[0].mxu0
    %1616 = vdwg.mxu0
    %v1617 = vadd.f32 %v1572, %v1612
    %v1618 = vmul.f32 %v1617, 0.5
    %v1619 = vtanh.pop %v1618
    %v1620 = vadd.f32 %v1619, 1.0
    %v1621 = vmul.f32 %v1620, 0.5
    %v1622 = vtanh.pop %v1617
    %v1625 = vunpack.c.l.s4 1983009808
    %v1626 = vunpack.c.0.s8 %v1625
    %v1627 = vlaneseq
    %v1628 = vshrl.u32 %v1627, 7
    %v1629 = vsub.s32 %v1626, %v1628
    %v1630 = vrot.slane %v1569, %v1629
    %1631 = vrot.lane.b32.xlu0 %v1630, 32
    %v1632 = vpop.permute.xlu0 %1631
    %v1634 = vmul.f32 %v1621, %v1632
    %1636 = vrot.lane.b32.xlu0 %v1622, 32
    %v1637 = vpop.permute.xlu0 %1636
    %v1639 = vmul.f32 %v1621, %v1637
    %1641 = vrot.lane.b32.xlu0 %v1639, 32
    %v1642 = vpop.permute.xlu0 %1641
    %v1644 = vadd.f32 %v1634, %v1642
    %v1645 = vtanh.pop %v1644
    %1647 = vrot.lane.b32.xlu0 %v1645, 32
    %v1648 = vpop.permute.xlu0 %1647
    %v1650 = vmul.f32 %v1621, %v1648
    %v1651 = vstv %s1567
    %vm1652 = vcmp.lt.s32.totalorder %v1651, %v80
    %v1653 = vsel %vm1652, 1, 0
    %1654 = vset.pattern.permute.xlu0 0
    %1655 = vperm.xlu0 %1654, %v1653
    %v1656 = vpop.permute.xlu0 %1655
    %vm1657 = vcmp.eq.s32.totalorder %v1656, 1
    %v1660 = vunpack.c.l.s4 1983009808
    %v1661 = vunpack.c.0.s8 %v1660
    %v1662 = vlaneseq
    %v1663 = vshrl.u32 %v1662, 7
    %v1664 = vsub.s32 %v1661, %v1663
    %v1665 = vrot.slane %v1650, %v1664
    %1666 = vrot.lane.b32.xlu0 %v1665, 64
    %v1667 = vpop.permute.xlu0 %1666
    %v1669 = vsel %vm1657, %v1667, %v1568
    %1670 = vst.msk [vmem:[#allocation2] sm:$0x3] %vm205, %v1669
    %v1673 = vunpack.c.l.s4 1983009808
    %v1674 = vunpack.c.0.s8 %v1673
    %v1675 = vlaneseq
    %v1676 = vshrl.u32 %v1675, 7
    %v1677 = vsub.s32 %v1674, %v1676
    %v1678 = vrot.slane %v1644, %v1677
    %1679 = vrot.lane.b32.xlu0 %v1678, 96
    %v1680 = vpop.permute.xlu0 %1679
    %v1682 = vsel %vm1657, %v1680, %v1569
    %1683 = vst.msk [vmem:[#allocation3] sm:$0x3] %vm205, %v1682
    %v1684 = vsel %vm1657, %v1667, 0.0
    %v1685 = vpack.c.bf16 %v1684, %v1684
    %s1686 = scalar_lea.vmem [#allocation11], 6
    %1687 = vst.msk [vmem:[%s1686] sm:$0x1] %vm222, %v1685
    %s1688 = ssub.s32 1, %s90
    %v1689 = vld [vmem:[#allocation4] sm:$0x3]
    %v1690 = vld [vmem:[#allocation5] sm:$0x3]
    %s1691 = scalar_lea.vmem %s65, 1
    %v1692 = vld [vmem:[%s1691] sm:$0x1]
    %v1693 = vunpack.c.l.bf16 %v1692
    %v1694 = vpack.c.bf16 %v1689, %v1689
    %v1696 = vsel %vm108, %v1694, 0
    %1698 = vmatprep.subr.bf16.mxu0 0
    %1699 = vmatpush1.bf16.msra.mxu0 %v239
    %1700 = vmatprep.subr.bf16.mxu0 0
    %1701 = vmatpush1.bf16.msra.mxu0 %v240
    %1702 = vmatprep.subr.bf16.mxu0 0
    %1703 = vmatpush1.bf16.msra.mxu0 0
    %1704 = vmatprep.subr.bf16.mxu0 0
    %1705 = vmatpush1.bf16.msra.mxu0 0
    %1706 = vmatprep.subr.bf16.mxu0 0
    %1707 = vmatpush1.bf16.msra.mxu0 0
    %1708 = vmatprep.subr.bf16.mxu0 0
    %1709 = vmatpush1.bf16.msra.mxu0 0
    %1710 = vmatprep.subr.bf16.mxu0 0
    %1711 = vmatpush1.bf16.msra.mxu0 0
    %1712 = vmatprep.subr.bf16.mxu0 0
    %1713 = vmatpush1.bf16.msra.mxu0 0
    %1714 = vmatprep.subr.bf16.mxu0 0
    %1715 = vmatpush1.bf16.msra.mxu0 0
    %1716 = vmatprep.subr.bf16.mxu0 0
    %1717 = vmatpush1.bf16.msra.mxu0 0
    %1718 = vmatprep.subr.bf16.mxu0 0
    %1719 = vmatpush1.bf16.msra.mxu0 0
    %1720 = vmatprep.subr.bf16.mxu0 0
    %1721 = vmatpush1.bf16.msra.mxu0 0
    %1722 = vmatprep.subr.bf16.mxu0 0
    %1723 = vmatpush1.bf16.msra.mxu0 0
    %1724 = vmatprep.subr.bf16.mxu0 0
    %1725 = vmatpush1.bf16.msra.mxu0 0
    %1726 = vmatprep.subr.bf16.mxu0 0
    %1727 = vmatpush1.bf16.msra.mxu0 0
    %1728 = vmatprep.subr.bf16.mxu0 0
    %1729 = vmatpush1.bf16.msra.mxu0 0
    %1730 = vmatprep.mubr.bf16.mxu0 0
    %1731 = vmatmul.mubr.bf16.gmra.mrb[0].mxu0 %v1696
    %v1732 = vpop.f32.mrb[0].mxu0
    %v1733 = vadd.f32 0.0, %v1732
    %v1734 = vpop.f32.mrb[0].mxu0
    %v1735 = vpop.f32.mrb[0].mxu0
    %v1736 = vpop.f32.mrb[0].mxu0
    %1737 = vdwg.mxu0
    %v1738 = vadd.f32 %v1693, %v1733
    %v1739 = vmul.f32 %v1738, 0.5
    %v1740 = vtanh.pop %v1739
    %v1741 = vadd.f32 %v1740, 1.0
    %v1742 = vmul.f32 %v1741, 0.5
    %v1743 = vtanh.pop %v1738
    %v1746 = vunpack.c.l.s4 1983009808
    %v1747 = vunpack.c.0.s8 %v1746
    %v1748 = vlaneseq
    %v1749 = vshrl.u32 %v1748, 7
    %v1750 = vsub.s32 %v1747, %v1749
    %v1751 = vrot.slane %v1690, %v1750
    %1752 = vrot.lane.b32.xlu0 %v1751, 32
    %v1753 = vpop.permute.xlu0 %1752
    %v1755 = vmul.f32 %v1742, %v1753
    %1757 = vrot.lane.b32.xlu0 %v1743, 32
    %v1758 = vpop.permute.xlu0 %1757
    %v1760 = vmul.f32 %v1742, %v1758
    %1762 = vrot.lane.b32.xlu0 %v1760, 32
    %v1763 = vpop.permute.xlu0 %1762
    %v1765 = vadd.f32 %v1755, %v1763
    %v1766 = vtanh.pop %v1765
    %1768 = vrot.lane.b32.xlu0 %v1766, 32
    %v1769 = vpop.permute.xlu0 %1768
    %v1771 = vmul.f32 %v1742, %v1769
    %v1772 = vstv %s1688
    %vm1773 = vcmp.lt.s32.totalorder %v1772, %v80
    %v1774 = vsel %vm1773, 1, 0
    %1775 = vset.pattern.permute.xlu0 0
    %1776 = vperm.xlu0 %1775, %v1774
    %v1777 = vpop.permute.xlu0 %1776
    %vm1778 = vcmp.eq.s32.totalorder %v1777, 1
    %v1781 = vunpack.c.l.s4 1983009808
    %v1782 = vunpack.c.0.s8 %v1781
    %v1783 = vlaneseq
    %v1784 = vshrl.u32 %v1783, 7
    %v1785 = vsub.s32 %v1782, %v1784
    %v1786 = vrot.slane %v1771, %v1785
    %1787 = vrot.lane.b32.xlu0 %v1786, 64
    %v1788 = vpop.permute.xlu0 %1787
    %v1790 = vsel %vm1778, %v1788, %v1689
    %1791 = vst.msk [vmem:[#allocation4] sm:$0x3] %vm205, %v1790
    %v1794 = vunpack.c.l.s4 1983009808
    %v1795 = vunpack.c.0.s8 %v1794
    %v1796 = vlaneseq
    %v1797 = vshrl.u32 %v1796, 7
    %v1798 = vsub.s32 %v1795, %v1797
    %v1799 = vrot.slane %v1765, %v1798
    %1800 = vrot.lane.b32.xlu0 %v1799, 96
    %v1801 = vpop.permute.xlu0 %1800
    %v1803 = vsel %vm1778, %v1801, %v1690
    %1804 = vst.msk [vmem:[#allocation5] sm:$0x3] %vm205, %v1803
    %v1805 = vsel %vm1778, %v1788, 0.0
    %v1806 = vpack.c.bf16 %v1805, %v1805
    %s1807 = scalar_lea.vmem [#allocation12], 1
    %1808 = vst.msk [vmem:[%s1807] sm:$0x1] %vm222, %v1806
    %s1809 = sadd.s32 %s90, 7
    %v1810 = vld [vmem:[#allocation2] sm:$0x3]
    %v1811 = vld [vmem:[#allocation3] sm:$0x3]
    %s1812 = scalar_lea.vmem [#allocation6], 7
    %v1813 = vld [vmem:[%s1812] sm:$0x1]
    %v1814 = vunpack.c.l.bf16 %v1813
    %v1815 = vpack.c.bf16 %v1810, %v1810
    %v1817 = vsel %vm108, %v1815, 0
    %1819 = vmatprep.subr.bf16.mxu0 0
    %1820 = vmatpush1.bf16.msra.mxu0 %v104
    %1821 = vmatprep.subr.bf16.mxu0 0
    %1822 = vmatpush1.bf16.msra.mxu0 %v105
    %1823 = vmatprep.subr.bf16.mxu0 0
    %1824 = vmatpush1.bf16.msra.mxu0 0
    %1825 = vmatprep.subr.bf16.mxu0 0
    %1826 = vmatpush1.bf16.msra.mxu0 0
    %1827 = vmatprep.subr.bf16.mxu0 0
    %1828 = vmatpush1.bf16.msra.mxu0 0
    %1829 = vmatprep.subr.bf16.mxu0 0
    %1830 = vmatpush1.bf16.msra.mxu0 0
    %1831 = vmatprep.subr.bf16.mxu0 0
    %1832 = vmatpush1.bf16.msra.mxu0 0
    %1833 = vmatprep.subr.bf16.mxu0 0
    %1834 = vmatpush1.bf16.msra.mxu0 0
    %1835 = vmatprep.subr.bf16.mxu0 0
    %1836 = vmatpush1.bf16.msra.mxu0 0
    %1837 = vmatprep.subr.bf16.mxu0 0
    %1838 = vmatpush1.bf16.msra.mxu0 0
    %1839 = vmatprep.subr.bf16.mxu0 0
    %1840 = vmatpush1.bf16.msra.mxu0 0
    %1841 = vmatprep.subr.bf16.mxu0 0
    %1842 = vmatpush1.bf16.msra.mxu0 0
    %1843 = vmatprep.subr.bf16.mxu0 0
    %1844 = vmatpush1.bf16.msra.mxu0 0
    %1845 = vmatprep.subr.bf16.mxu0 0
    %1846 = vmatpush1.bf16.msra.mxu0 0
    %1847 = vmatprep.subr.bf16.mxu0 0
    %1848 = vmatpush1.bf16.msra.mxu0 0
    %1849 = vmatprep.subr.bf16.mxu0 0
    %1850 = vmatpush1.bf16.msra.mxu0 0
    %1851 = vmatprep.mubr.bf16.mxu0 0
    %1852 = vmatmul.mubr.bf16.gmra.mrb[0].mxu0 %v1817
    %v1853 = vpop.f32.mrb[0].mxu0
    %v1854 = vadd.f32 0.0, %v1853
    %v1855 = vpop.f32.mrb[0].mxu0
    %v1856 = vpop.f32.mrb[0].mxu0
    %v1857 = vpop.f32.mrb[0].mxu0
    %1858 = vdwg.mxu0
    %v1859 = vadd.f32 %v1814, %v1854
    %v1860 = vmul.f32 %v1859, 0.5
    %v1861 = vtanh.pop %v1860
    %v1862 = vadd.f32 %v1861, 1.0
    %v1863 = vmul.f32 %v1862, 0.5
    %v1864 = vtanh.pop %v1859
    %v1867 = vunpack.c.l.s4 1983009808
    %v1868 = vunpack.c.0.s8 %v1867
    %v1869 = vlaneseq
    %v1870 = vshrl.u32 %v1869, 7
    %v1871 = vsub.s32 %v1868, %v1870
    %v1872 = vrot.slane %v1811, %v1871
    %1873 = vrot.lane.b32.xlu0 %v1872, 32
    %v1874 = vpop.permute.xlu0 %1873
    %v1876 = vmul.f32 %v1863, %v1874
    %1878 = vrot.lane.b32.xlu0 %v1864, 32
    %v1879 = vpop.permute.xlu0 %1878
    %v1881 = vmul.f32 %v1863, %v1879
    %1883 = vrot.lane.b32.xlu0 %v1881, 32
    %v1884 = vpop.permute.xlu0 %1883
    %v1886 = vadd.f32 %v1876, %v1884
    %v1887 = vtanh.pop %v1886
    %1889 = vrot.lane.b32.xlu0 %v1887, 32
    %v1890 = vpop.permute.xlu0 %1889
    %v1892 = vmul.f32 %v1863, %v1890
    %v1893 = vstv %s1809
    %vm1894 = vcmp.lt.s32.totalorder %v1893, %v80
    %v1895 = vsel %vm1894, 1, 0
    %1896 = vset.pattern.permute.xlu0 0
    %1897 = vperm.xlu0 %1896, %v1895
    %v1898 = vpop.permute.xlu0 %1897
    %vm1899 = vcmp.eq.s32.totalorder %v1898, 1
    %v1902 = vunpack.c.l.s4 1983009808
    %v1903 = vunpack.c.0.s8 %v1902
    %v1904 = vlaneseq
    %v1905 = vshrl.u32 %v1904, 7
    %v1906 = vsub.s32 %v1903, %v1905
    %v1907 = vrot.slane %v1892, %v1906
    %1908 = vrot.lane.b32.xlu0 %v1907, 64
    %v1909 = vpop.permute.xlu0 %1908
    %v1911 = vsel %vm1899, %v1909, %v1810
    %1912 = vst.msk [vmem:[#allocation2] sm:$0x3] %vm205, %v1911
    %v1915 = vunpack.c.l.s4 1983009808
    %v1916 = vunpack.c.0.s8 %v1915
    %v1917 = vlaneseq
    %v1918 = vshrl.u32 %v1917, 7
    %v1919 = vsub.s32 %v1916, %v1918
    %v1920 = vrot.slane %v1886, %v1919
    %1921 = vrot.lane.b32.xlu0 %v1920, 96
    %v1922 = vpop.permute.xlu0 %1921
    %v1924 = vsel %vm1899, %v1922, %v1811
    %1925 = vst.msk [vmem:[#allocation3] sm:$0x3] %vm205, %v1924
    %v1926 = vsel %vm1899, %v1909, 0.0
    %v1927 = vpack.c.bf16 %v1926, %v1926
    %s1928 = scalar_lea.vmem [#allocation11], 7
    %1929 = vst.msk [vmem:[%s1928] sm:$0x1] %vm222, %v1927
    %s1930 = ssub.s32 0, %s90
    %v1931 = vld [vmem:[#allocation4] sm:$0x3]
    %v1932 = vld [vmem:[#allocation5] sm:$0x3]
    %v1933 = vld [vmem:[%s65] sm:$0x1]
    %v1934 = vunpack.c.l.bf16 %v1933
    %v1935 = vpack.c.bf16 %v1931, %v1931
    %v1937 = vsel %vm108, %v1935, 0
    %1939 = vmatprep.subr.bf16.mxu0 0
    %1940 = vmatpush1.bf16.msra.mxu0 %v239
    %1941 = vmatprep.subr.bf16.mxu0 0
    %1942 = vmatpush1.bf16.msra.mxu0 %v240
    %1943 = vmatprep.subr.bf16.mxu0 0
    %1944 = vmatpush1.bf16.msra.mxu0 0
    %1945 = vmatprep.subr.bf16.mxu0 0
    %1946 = vmatpush1.bf16.msra.mxu0 0
    %1947 = vmatprep.subr.bf16.mxu0 0
    %1948 = vmatpush1.bf16.msra.mxu0 0
    %1949 = vmatprep.subr.bf16.mxu0 0
    %1950 = vmatpush1.bf16.msra.mxu0 0
    %1951 = vmatprep.subr.bf16.mxu0 0
    %1952 = vmatpush1.bf16.msra.mxu0 0
    %1953 = vmatprep.subr.bf16.mxu0 0
    %1954 = vmatpush1.bf16.msra.mxu0 0
    %1955 = vmatprep.subr.bf16.mxu0 0
    %1956 = vmatpush1.bf16.msra.mxu0 0
    %1957 = vmatprep.subr.bf16.mxu0 0
    %1958 = vmatpush1.bf16.msra.mxu0 0
    %1959 = vmatprep.subr.bf16.mxu0 0
    %1960 = vmatpush1.bf16.msra.mxu0 0
    %1961 = vmatprep.subr.bf16.mxu0 0
    %1962 = vmatpush1.bf16.msra.mxu0 0
    %1963 = vmatprep.subr.bf16.mxu0 0
    %1964 = vmatpush1.bf16.msra.mxu0 0
    %1965 = vmatprep.subr.bf16.mxu0 0
    %1966 = vmatpush1.bf16.msra.mxu0 0
    %1967 = vmatprep.subr.bf16.mxu0 0
    %1968 = vmatpush1.bf16.msra.mxu0 0
    %1969 = vmatprep.subr.bf16.mxu0 0
    %1970 = vmatpush1.bf16.msra.mxu0 0
    %1971 = vmatprep.mubr.bf16.mxu0 0
    %1972 = vmatmul.mubr.bf16.gmra.mrb[0].mxu0 %v1937
    %v1973 = vpop.f32.mrb[0].mxu0
    %v1974 = vadd.f32 0.0, %v1973
    %v1975 = vpop.f32.mrb[0].mxu0
    %v1976 = vpop.f32.mrb[0].mxu0
    %v1977 = vpop.f32.mrb[0].mxu0
    %1978 = vdwg.mxu0
    %v1979 = vadd.f32 %v1934, %v1974
    %v1980 = vmul.f32 %v1979, 0.5
    %v1981 = vtanh.pop %v1980
    %v1982 = vadd.f32 %v1981, 1.0
    %v1983 = vmul.f32 %v1982, 0.5
    %v1984 = vtanh.pop %v1979
    %v1987 = vunpack.c.l.s4 1983009808
    %v1988 = vunpack.c.0.s8 %v1987
    %v1989 = vlaneseq
    %v1990 = vshrl.u32 %v1989, 7
    %v1991 = vsub.s32 %v1988, %v1990
    %v1992 = vrot.slane %v1932, %v1991
    %1993 = vrot.lane.b32.xlu0 %v1992, 32
    %v1994 = vpop.permute.xlu0 %1993
    %v1996 = vmul.f32 %v1983, %v1994
    %1998 = vrot.lane.b32.xlu0 %v1984, 32
    %v1999 = vpop.permute.xlu0 %1998
    %v2001 = vmul.f32 %v1983, %v1999
    %2003 = vrot.lane.b32.xlu0 %v2001, 32
    %v2004 = vpop.permute.xlu0 %2003
    %v2006 = vadd.f32 %v1996, %v2004
    %v2007 = vtanh.pop %v2006
    %2009 = vrot.lane.b32.xlu0 %v2007, 32
    %v2010 = vpop.permute.xlu0 %2009
    %v2012 = vmul.f32 %v1983, %v2010
    %v2013 = vstv %s1930
    %vm2014 = vcmp.lt.s32.totalorder %v2013, %v80
    %v2015 = vsel %vm2014, 1, 0
    %2016 = vset.pattern.permute.xlu0 0
    %2017 = vperm.xlu0 %2016, %v2015
    %v2018 = vpop.permute.xlu0 %2017
    %vm2019 = vcmp.eq.s32.totalorder %v2018, 1
    %v2022 = vunpack.c.l.s4 1983009808
    %v2023 = vunpack.c.0.s8 %v2022
    %v2024 = vlaneseq
    %v2025 = vshrl.u32 %v2024, 7
    %v2026 = vsub.s32 %v2023, %v2025
    %v2027 = vrot.slane %v2012, %v2026
    %2028 = vrot.lane.b32.xlu0 %v2027, 64
    %v2029 = vpop.permute.xlu0 %2028
    %v2031 = vsel %vm2019, %v2029, %v1931
    %2032 = vst.msk [vmem:[#allocation4] sm:$0x3] %vm205, %v2031
    %v2035 = vunpack.c.l.s4 1983009808
    %v2036 = vunpack.c.0.s8 %v2035
    %v2037 = vlaneseq
    %v2038 = vshrl.u32 %v2037, 7
    %v2039 = vsub.s32 %v2036, %v2038
    %v2040 = vrot.slane %v2006, %v2039
    %2041 = vrot.lane.b32.xlu0 %v2040, 96
    %v2042 = vpop.permute.xlu0 %2041
    %v2044 = vsel %vm2019, %v2042, %v1932
    %2045 = vst.msk [vmem:[#allocation5] sm:$0x3] %vm205, %v2044
    %v2046 = vsel %vm2019, %v2029, 0.0
    %v2047 = vpack.c.bf16 %v2046, %v2046
    %2048 = vst.msk [vmem:[#allocation12] sm:$0x1] %vm222, %v2047
    // Predicated region
    $region30: #{tpu_custom_call.1} parent=1 // pred_check
      _
    $region31: #{tpu_custom_call.1} parent=1 // pred_check_branch
      %2050 = sbr.rel (0) target = $region33
    $region32: #{tpu_custom_call.1} parent=1 // pred_region
      %s2052 = ssub.s32 128, 128
      %2053 = vsyncadd [#allocation8], %s2052
      %s2054 = sshll.u32 [#allocation11], 4
      %s2055 = int_to_ptr.vmem [resolvable:$true] %s2054
      %2060 = dma.vmem_to_hbm [thread:$0]  %s2055, 128, %s4, [#allocation8], 16, 16, 1
    $region33: #{tpu_custom_call.1} parent=1 // pred_fallthru
      _
    // Predicated region
    $region34: #{tpu_custom_call.1} parent=1 // pred_check
      _
    $region35: #{tpu_custom_call.1} parent=1 // pred_check_branch
      %2062 = sbr.rel (0) target = $region37
    $region36: #{tpu_custom_call.1} parent=1 // pred_region
      %s2063 = ssub.s32 0, 0
      %s2064 = smul.u32 8, %s2063
      %s2066 = ssub.s32 128, 128
      %2067 = vsyncadd [#allocation13], %s2066
      %s2068 = smul.addr %s2064, 16
      %s2069 = scalar_lea.hbm %s5, %s2068
      %s2070 = sshll.u32 [#allocation12], 4
      %s2071 = int_to_ptr.vmem [resolvable:$true] %s2070
      %2076 = dma.vmem_to_hbm [thread:$0]  %s2071, 128, %s2069, [#allocation13], 16, 16, 1
    $region37: #{tpu_custom_call.1} parent=1 // pred_fallthru
      _
    // Predicated region
    $region38: #{tpu_custom_call.1} parent=1 // pred_check
      _
    $region39: #{tpu_custom_call.1} parent=1 // pred_check_branch
      %2078 = sbr.rel (0) target = $region41
    $region40: #{tpu_custom_call.1} parent=1 // pred_region
      %2079 = dma.done [#allocation8], 128
    $region41: #{tpu_custom_call.1} parent=1 // pred_fallthru
      _
    // Predicated region
    $region42: #{tpu_custom_call.1} parent=1 // pred_check
      _
    $region43: #{tpu_custom_call.1} parent=1 // pred_check_branch
      %2081 = sbr.rel (0) target = $region45
    $region44: #{tpu_custom_call.1} parent=1 // pred_region
      %2082 = dma.done [#allocation13], 128
    $region45: #{tpu_custom_call.1} parent=1 // pred_fallthru
      _
    %2083 = vsyncpa [#allocation7], 1
    %2084 = vsyncpa [#allocation10], 1
    %2085 = vsyncpa [#allocation8], 1
    %2086 = vsyncpa [#allocation13], 1

</llo_original>
